<compile_context>
chip_gen: v7x
topology: tpu7x:2x2x1
jax: 0.10.0
libtpu: 0.0.40
codegen_flags: <defaults>
</compile_context>

<pallas_src>
import math
from functools import partial

import jax
import jax.numpy as jnp
from jax.experimental import pallas as pl
from jax.experimental.pallas import tpu as pltpu


_TARGET_ROWS = 256      # row-tile target (v7x-safe default)
_TARGET_LANE = 512      # N / K / Fh / Skv tile target (multiple of 128)


# ------------------------------ helpers ------------------------------

def _pick_tile(dim, target, align):
    """Largest aligned divisor of dim that is <= target (or dim itself)."""
    if dim <= target:
        return dim
    t = (target // align) * align
    while t >= align:
        if dim % t == 0:
            return t
        t -= align
    return dim   # TODO(synk): cdiv grid + padded tail for awkward dims


def _nbytes(shape, dtype):
    return math.prod(shape) * jnp.dtype(dtype).itemsize


def _mosaic_params(semantics, *blocks):
    """CompilerParams with explicit VMEM limit derived from the block sizes."""
    blk = sum(_nbytes(s, d) for s, d in blocks)
    limit = int(min(64 << 20, max(8 << 20, 3 * blk + (2 << 20))))
    return pltpu.CompilerParams(dimension_semantics=semantics,
                                vmem_limit_bytes=limit)


# ----------------------- tiled linear (y = x @ W + b) -----------------------

def _linear_kernel(x_ref, w_ref, b_ref, o_ref, acc_ref):
    @pl.when(pl.program_id(2) == 0)
    def _():
        acc_ref[...] = jnp.zeros_like(acc_ref)
    acc_ref[...] += jnp.dot(x_ref[...].astype(jnp.bfloat16), w_ref[...],
                            preferred_element_type=jnp.float32)
    @pl.when(pl.program_id(2) == pl.num_programs(2) - 1)
    def _():
        o_ref[...] = (acc_ref[...] + b_ref[...]).astype(o_ref.dtype)


def pallas_linear(x2d, w, b, *, out_dtype=jnp.float32):
    M, K = x2d.shape
    N = w.shape[1]
    tm = _pick_tile(M, _TARGET_ROWS, 8)
    tn = _pick_tile(N, _TARGET_LANE, 128)
    tk = _pick_tile(K, _TARGET_LANE, 128)
    cp = _mosaic_params(
        ("parallel", "parallel", "arbitrary"),
        ((tm, tk), x2d.dtype), ((tk, tn), w.dtype), ((1, tn), jnp.float32),
        ((tm, tn), out_dtype), ((tm, tn), jnp.float32))
    return pl.pallas_call(
        _linear_kernel,
        out_shape=jax.ShapeDtypeStruct((M, N), out_dtype),
        grid=(M // tm, N // tn, K // tk),
        in_specs=[
            pl.BlockSpec((tm, tk), lambda i, j, k: (i, k)),
            pl.BlockSpec((tk, tn), lambda i, j, k: (k, j)),
            pl.BlockSpec((1, tn), lambda i, j, k: (0, j)),
        ],
        out_specs=pl.BlockSpec((tm, tn), lambda i, j, k: (i, j)),
        scratch_shapes=[pltpu.VMEM((tm, tn), jnp.float32)],
        compiler_params=cp,
    )(x2d, w, b.reshape(1, N))


# ------------------ W_o projection + residual + LayerNorm ------------------

def _proj_add_ln_kernel(a_ref, w_ref, b_ref, res_ref, g_ref, bt_ref,
                        o_ref, acc_ref, *, eps):
    @pl.when(pl.program_id(1) == 0)
    def _():
        acc_ref[...] = jnp.zeros_like(acc_ref)
    acc_ref[...] += jnp.dot(a_ref[...].astype(jnp.bfloat16), w_ref[...],
                            preferred_element_type=jnp.float32)
    @pl.when(pl.program_id(1) == pl.num_programs(1) - 1)
    def _():
        z = res_ref[...] + acc_ref[...] + b_ref[...]
        mu = jnp.mean(z, axis=-1, keepdims=True)
        var = jnp.mean(jnp.square(z - mu), axis=-1, keepdims=True)
        o_ref[...] = ((z - mu) * jax.lax.rsqrt(var + eps)
                      * g_ref[...] + bt_ref[...]).astype(o_ref.dtype)


def pallas_proj_add_ln(a2d, w, b, res2d, gamma, beta, *, eps=1e-5):
    M, K = a2d.shape
    N = w.shape[1]                       # LayerNorm needs the full d_model row
    tm = _pick_tile(M, _TARGET_ROWS, 8)
    tk = _pick_tile(K, _TARGET_LANE, 128)
    cp = _mosaic_params(
        ("parallel", "arbitrary"),
        ((tm, tk), a2d.dtype), ((tk, N), w.dtype), ((1, N), jnp.float32),
        ((tm, N), res2d.dtype), ((1, N), jnp.float32), ((1, N), jnp.float32),
        ((tm, N), jnp.float32), ((tm, N), jnp.float32))
    return pl.pallas_call(
        partial(_proj_add_ln_kernel, eps=eps),
        out_shape=jax.ShapeDtypeStruct((M, N), jnp.float32),
        grid=(M // tm, K // tk),
        in_specs=[
            pl.BlockSpec((tm, tk), lambda i, k: (i, k)),   # attention output (bf16)
            pl.BlockSpec((tk, N), lambda i, k: (k, 0)),    # W_o tile
            pl.BlockSpec((1, N), lambda i, k: (0, 0)),     # b_o
            pl.BlockSpec((tm, N), lambda i, k: (i, 0)),    # residual (aliased to out)
            pl.BlockSpec((1, N), lambda i, k: (0, 0)),     # gamma
            pl.BlockSpec((1, N), lambda i, k: (0, 0)),     # beta
        ],
        out_specs=pl.BlockSpec((tm, N), lambda i, k: (i, 0)),
        scratch_shapes=[pltpu.VMEM((tm, N), jnp.float32)],
        input_output_aliases={3: 0},
        compiler_params=cp,
    )(a2d, w, b.reshape(1, N), res2d, gamma.reshape(1, N), beta.reshape(1, N))


# --------------------- FFN (fc1+ReLU+fc2) + residual + LN ---------------------

def _ffn_add_ln_kernel(x_ref, w1_ref, b1_ref, w2_ref, b2_ref, g_ref, bt_ref,
                       o_ref, acc_ref, *, eps):
    @pl.when(pl.program_id(1) == 0)
    def _():
        acc_ref[...] = jnp.zeros_like(acc_ref)
    h = jnp.dot(x_ref[...].astype(jnp.bfloat16), w1_ref[...],
                preferred_element_type=jnp.float32) + b1_ref[...]
    h = jnp.maximum(h, 0.0)                                   # ReLU in f32
    acc_ref[...] += jnp.dot(h.astype(jnp.bfloat16), w2_ref[...],
                            preferred_element_type=jnp.float32)
    @pl.when(pl.program_id(1) == pl.num_programs(1) - 1)
    def _():
        z = x_ref[...] + acc_ref[...] + b2_ref[...]
        mu = jnp.mean(z, axis=-1, keepdims=True)
        var = jnp.mean(jnp.square(z - mu), axis=-1, keepdims=True)
        o_ref[...] = ((z - mu) * jax.lax.rsqrt(var + eps)
                      * g_ref[...] + bt_ref[...]).astype(o_ref.dtype)


def pallas_ffn_add_ln(x2d, w1, b1, w2, b2, gamma, beta, *, eps=1e-5):
    M, D = x2d.shape
    Fh = w1.shape[1]
    tm = _pick_tile(M, _TARGET_ROWS, 8)
    tf = _pick_tile(Fh, _TARGET_LANE, 128)    # tile the hidden dim (v7x VMEM)
    cp = _mosaic_params(
        ("parallel", "arbitrary"),
        ((tm, D), x2d.dtype), ((D, tf), w1.dtype), ((1, tf), jnp.float32),
        ((tf, D), w2.dtype), ((1, D), jnp.float32), ((1, D), jnp.float32),
        ((1, D), jnp.float32), ((tm, D), jnp.float32), ((tm, D), jnp.float32),
        ((tm, tf), jnp.float32))
    return pl.pallas_call(
        partial(_ffn_add_ln_kernel, eps=eps),
        out_shape=jax.ShapeDtypeStruct((M, D), jnp.float32),
        grid=(M // tm, Fh // tf),
        in_specs=[
            pl.BlockSpec((tm, D), lambda i, f: (i, 0)),    # x (residual, aliased)
            pl.BlockSpec((D, tf), lambda i, f: (0, f)),    # W1 tile
            pl.BlockSpec((1, tf), lambda i, f: (0, f)),    # b1 tile
            pl.BlockSpec((tf, D), lambda i, f: (f, 0)),    # W2 tile
            pl.BlockSpec((1, D), lambda i, f: (0, 0)),     # b2
            pl.BlockSpec((1, D), lambda i, f: (0, 0)),     # gamma
            pl.BlockSpec((1, D), lambda i, f: (0, 0)),     # beta
        ],
        out_specs=pl.BlockSpec((tm, D), lambda i, f: (i, 0)),
        scratch_shapes=[pltpu.VMEM((tm, D), jnp.float32)],
        input_output_aliases={0: 0},
        compiler_params=cp,
    )(x2d, w1, b1.reshape(1, Fh), w2, b2.reshape(1, D),
      gamma.reshape(1, D), beta.reshape(1, D))


# --------------------------- flash-style attention ---------------------------

def _mha_kernel(*refs, scale, causal, has_mask):
    if has_mask:
        q_ref, k_ref, v_ref, bias_ref, o_ref, m_sc, l_sc, acc_sc = refs
    else:
        q_ref, k_ref, v_ref, o_ref, m_sc, l_sc, acc_sc = refs
        bias_ref = None
    kv_i = pl.program_id(3)

    @pl.when(kv_i == 0)
    def _():
        m_sc[...] = jnp.full_like(m_sc, -jnp.inf)
        l_sc[...] = jnp.zeros_like(l_sc)
        acc_sc[...] = jnp.zeros_like(acc_sc)

    # fold 1/sqrt(dk) into q (O(tq*dk) instead of O(tq*tkv))
    q = (q_ref[0, 0, :, :].astype(jnp.float32) * scale).astype(jnp.bfloat16)
    k = k_ref[0, 0, :, :].astype(jnp.bfloat16)
    v = v_ref[0, 0, :, :].astype(jnp.bfloat16)

    s = jax.lax.dot_general(q, k, (((1,), (1,)), ((), ())),
                            preferred_element_type=jnp.float32)   # (tq, tkv)
    if causal:
        tq, tkv = s.shape
        rows = pl.program_id(2) * tq + jax.lax.broadcasted_iota(jnp.int32, (tq, tkv), 0)
        cols = kv_i * tkv + jax.lax.broadcasted_iota(jnp.int32, (tq, tkv), 1)
        s = jnp.where(cols > rows, jnp.float32(-1e9), s)
    elif has_mask:
        s = s + bias_ref[0, :, :].astype(jnp.float32)

    m_prev = m_sc[...]
    m_new = jnp.maximum(m_prev, jnp.max(s, axis=-1, keepdims=True))
    alpha = jnp.exp(m_prev - m_new)
    p = jnp.exp(s - m_new)
    l_sc[...] = alpha * l_sc[...] + jnp.sum(p, axis=-1, keepdims=True)
    acc_sc[...] = alpha * acc_sc[...] + jnp.dot(p.astype(jnp.bfloat16), v,
                                                preferred_element_type=jnp.float32)
    m_sc[...] = m_new

    @pl.when(kv_i == pl.num_programs(3) - 1)
    def _():
        o_ref[0, 0, :, :] = (acc_sc[...] / l_sc[...]).astype(o_ref.dtype)


def pallas_mha(q, k, v, *, mask_bias=None, causal=False):
    # q: (B, H, Sq, dk); k, v: (B, H, Skv, dk); mask_bias: (1 or B, Sq, Skv) bf16
    B, H, Sq, dk = q.shape
    Skv = k.shape[2]
    tq = _pick_tile(Sq, _TARGET_ROWS, 8)
    tkv = _pick_tile(Skv, _TARGET_LANE, 128)
    scale = 1.0 / math.sqrt(dk)
    has_mask = (mask_bias is not None) and (not causal)

    in_specs = [
        pl.BlockSpec((1, 1, tq, dk), lambda b, h, qi, ki: (b, h, qi, 0)),
        pl.BlockSpec((1, 1, tkv, dk), lambda b, h, qi, ki: (b, h, ki, 0)),
        pl.BlockSpec((1, 1, tkv, dk), lambda b, h, qi, ki: (b, h, ki, 0)),
    ]
    args = [q, k, v]
    blocks = [((1, 1, tq, dk), q.dtype), ((1, 1, tkv, dk), k.dtype),
              ((1, 1, tkv, dk), v.dtype), ((1, 1, tq, dk), jnp.bfloat16),
              ((tq, 1), jnp.float32), ((tq, 1), jnp.float32),
              ((tq, dk), jnp.float32), ((tq, tkv), jnp.float32)]
    if has_mask:
        if mask_bias.shape[0] == 1:   # shared mask block: reused, never broadcast
            in_specs.append(pl.BlockSpec((1, tq, tkv), lambda b, h, qi, ki: (0, qi, ki)))
        else:
            in_specs.append(pl.BlockSpec((1, tq, tkv), lambda b, h, qi, ki: (b, qi, ki)))
        args.append(mask_bias)
        blocks.append(((1, tq, tkv), mask_bias.dtype))

    cp = _mosaic_params(("parallel", "parallel", "parallel", "arbitrary"), *blocks)
    return pl.pallas_call(
        partial(_mha_kernel, scale=scale, causal=causal, has_mask=has_mask),
        out_shape=jax.ShapeDtypeStruct((B, H, Sq, dk), jnp.bfloat16),
        grid=(B, H, Sq // tq, Skv // tkv),
        in_specs=in_specs,
        out_specs=pl.BlockSpec((1, 1, tq, dk), lambda b, h, qi, ki: (b, h, qi, 0)),
        scratch_shapes=[pltpu.VMEM((tq, 1), jnp.float32),
                        pltpu.VMEM((tq, 1), jnp.float32),
                        pltpu.VMEM((tq, dk), jnp.float32)],
        compiler_params=cp,
    )(*args)


# --------------------------- parameter construction ---------------------------

def make_bayes_linear_params(key, in_f, out_f, prior_sigma=0.1):
    # BayesLinear.reset_parameters + one frozen eps sample:
    #   weight = weight_mu + exp(log(prior_sigma)) * eps
    stdv = 1.0 / math.sqrt(in_f)
    k1, k2, k3, k4 = jax.random.split(key, 4)
    w_mu = jax.random.uniform(k1, (out_f, in_f), jnp.float32, -stdv, stdv)
    w_eps = jax.random.normal(k2, (out_f, in_f), jnp.float32)
    b_mu = jax.random.uniform(k3, (out_f,), jnp.float32, -stdv, stdv)
    b_eps = jax.random.normal(k4, (out_f,), jnp.float32)
    w = (w_mu + prior_sigma * w_eps).T.astype(jnp.bfloat16)   # (in, out) bf16 MXU operand
    b = b_mu + prior_sigma * b_eps                             # f32
    return {"w": w, "b": b}


def make_mha_params(key, d_model):
    ks = jax.random.split(key, 4)
    wq = make_bayes_linear_params(ks[0], d_model, d_model)
    wk = make_bayes_linear_params(ks[1], d_model, d_model)
    wv = make_bayes_linear_params(ks[2], d_model, d_model)
    wo = make_bayes_linear_params(ks[3], d_model, d_model)
    return {
        "wq": wq, "wo": wo,
        # fused projection weights (columns in natural [Q|K|V] order; the
        # head split is the same (..., H, dk) view PyTorch's split_heads uses)
        "w_qkv": jnp.concatenate([wq["w"], wk["w"], wv["w"]], axis=1),
        "b_qkv": jnp.concatenate([wq["b"], wk["b"], wv["b"]], axis=0),
        "w_kv": jnp.concatenate([wk["w"], wv["w"]], axis=1),
        "b_kv": jnp.concatenate([wk["b"], wv["b"]], axis=0),
    }


def make_decoder_layer_params(key, d_model, d_ff):
    ks = jax.random.split(key, 4)
    ln = lambda: {"g": jnp.ones((d_model,), jnp.float32),
                  "b": jnp.zeros((d_model,), jnp.float32)}
    return {
        "self_attn": make_mha_params(ks[0], d_model),
        "cross_attn": make_mha_params(ks[1], d_model),
        "ffn": {"fc1": make_bayes_linear_params(ks[2], d_model, d_ff),
                "fc2": make_bayes_linear_params(ks[3], d_ff, d_model)},
        "norm1": ln(), "norm2": ln(), "norm3": ln(),
    }


# ------------------------------- forward glue -------------------------------

def _mask_to_bias(mask, Sq, Skv):
    """mask==0 -> -1e9 additive bias (bf16); accepts (Sq,Skv)/(1,Sq,Skv)/(B,...)."""
    if mask is None:
        return None
    m = jnp.asarray(mask).reshape(-1, Sq, Skv)
    return jnp.where(m == 0, jnp.float32(-1e9), jnp.float32(0.0)).astype(jnp.bfloat16)


def decoder_layer_forward(params, x, enc_output, src_mask=None, tgt_mask=None,
                          *, num_heads, tgt_causal=False):
    B, S, D = x.shape
    Skv = enc_output.shape[1]
    H = num_heads
    dk = D // H
    x2 = x.reshape(B * S, D)

    tgt_bias = None if tgt_causal else _mask_to_bias(tgt_mask, S, S)
    src_bias = _mask_to_bias(src_mask, S, Skv)

    # --- self attention: fused QKV -> flash attention -> fused Wo+add+LN ---
    sa = params["self_attn"]
    qkv = pallas_linear(x2, sa["w_qkv"], sa["b_qkv"], out_dtype=jnp.bfloat16)
    qkv = qkv.reshape(B, S, 3, H, dk).transpose(2, 0, 3, 1, 4)        # (3,B,H,S,dk)
    attn = pallas_mha(qkv[0], qkv[1], qkv[2], mask_bias=tgt_bias, causal=tgt_causal)
    attn2 = attn.transpose(0, 2, 1, 3).reshape(B * S, D)              # combine heads (bf16)
    x2 = pallas_proj_add_ln(attn2, sa["wo"]["w"], sa["wo"]["b"], x2,
                            params["norm1"]["g"], params["norm1"]["b"])

    # --- cross attention: Q proj + fused KV proj -> attention -> Wo+add+LN ---
    ca = params["cross_attn"]
    q = pallas_linear(x2, ca["wq"]["w"], ca["wq"]["b"], out_dtype=jnp.bfloat16)
    q = q.reshape(B, S, H, dk).transpose(0, 2, 1, 3)                  # (B,H,S,dk)
    kv = pallas_linear(enc_output.reshape(B * Skv, D), ca["w_kv"], ca["b_kv"],
                       out_dtype=jnp.bfloat16)
    kv = kv.reshape(B, Skv, 2, H, dk).transpose(2, 0, 3, 1, 4)        # (2,B,H,Skv,dk)
    attn = pallas_mha(q, kv[0], kv[1], mask_bias=src_bias, causal=False)
    attn2 = attn.transpose(0, 2, 1, 3).reshape(B * S, D)
    x2 = pallas_proj_add_ln(attn2, ca["wo"]["w"], ca["wo"]["b"], x2,
                            params["norm2"]["g"], params["norm2"]["b"])

    # --- fused FFN + residual + LayerNorm (dropout == identity in eval) ---
    ffn = params["ffn"]
    x2 = pallas_ffn_add_ln(x2, ffn["fc1"]["w"], ffn["fc1"]["b"],
                           ffn["fc2"]["w"], ffn["fc2"]["b"],
                           params["norm3"]["g"], params["norm3"]["b"])
    return x2.reshape(B, S, D)


# ----------------------------------- main -----------------------------------

if __name__ == "__main__":
    B, S, D, H, D_FF = 2, 8, 32, 4, 64

    key = jax.random.PRNGKey(0)
    k_params, k_x, k_enc = jax.random.split(key, 3)

    params = make_decoder_layer_params(k_params, D, D_FF)
    x = jax.random.normal(k_x, (B, S, D), jnp.float32)
    enc_output = jax.random.normal(k_enc, (B, S, D), jnp.float32)

    # Path 1: in-kernel causal mask (iota-based, no mask DMA).
    fwd_causal = jax.jit(partial(decoder_layer_forward, num_heads=H, tgt_causal=True))
    out = jax.block_until_ready(fwd_causal(params, x, enc_output, None, None))

    # Path 2: explicit tril mask array (additive-bias path); must match path 1.
    tgt_mask = jnp.tril(jnp.ones((S, S), jnp.int32))[None, :, :]
    fwd_mask = jax.jit(partial(decoder_layer_forward, num_heads=H, tgt_causal=False))
    out_m = jax.block_until_ready(fwd_mask(params, x, enc_output, None, tgt_mask))

    assert out.shape == (B, S, D), out.shape
    assert bool(jnp.all(jnp.isfinite(out)))
    assert bool(jnp.all(jnp.isfinite(out_m)))
    assert bool(jnp.allclose(out, out_m, atol=1e-5, rtol=1e-5))
    print("KERNEL_OK")
</pallas_src>

<mosaic_0001>
module attributes {stable_mosaic.version = 11 : i64} {
  func.func @_linear_kernel(%arg0: i32, %arg1: i32, %arg2: i32, %arg3: memref<16x32xf32, #tpu.memory_space<vmem>>, %arg4: memref<32x96xbf16, #tpu.memory_space<vmem>>, %arg5: memref<1x96xf32, #tpu.memory_space<vmem>>, %arg6: memref<16x96xbf16, #tpu.memory_space<vmem>>, %arg7: memref<16x96xf32, #tpu.memory_space<vmem>>) attributes {dimension_semantics = [#tpu.dimension_semantics<parallel>, #tpu.dimension_semantics<parallel>, #tpu.dimension_semantics<arbitrary>], iteration_bounds = array<i64: 1, 1, 1>, scalar_prefetch = 0 : i64, scratch_operands = 1 : i64, tpu.core_type = #tpu.core_type<tc>, window_params = [{transform_indices = @transform_0, window_bounds = array<i64: 16, 32>}, {transform_indices = @transform_1, window_bounds = array<i64: 32, 96>}, {transform_indices = @transform_2, window_bounds = array<i64: 1, 96>}, {transform_indices = @transform_3, window_bounds = array<i64: 16, 96>}]} {
    %c0_i32 = arith.constant 0 : i32
    %0 = arith.cmpi eq, %arg2, %c0_i32 : i32
    %1 = arith.extui %0 : i1 to i32
    %c0_i32_0 = arith.constant 0 : i32
    %2 = arith.cmpi ne, %1, %c0_i32_0 : i32
    scf.if %2 {
      %cst_10 = arith.constant 0.000000e+00 : f32
      %13 = vector.broadcast %cst_10 : f32 to vector<16x96xf32>
      %c0_11 = arith.constant 0 : index
      %c0_12 = arith.constant 0 : index
      %14 = vector.load %arg7[%c0_11, %c0_12] : memref<16x96xf32, #tpu.memory_space<vmem>>, vector<16x96xf32>
      tpu.vector_store %arg7[%c0_11, %c0_12], %13 {strides = array<i32>} : memref<16x96xf32, #tpu.memory_space<vmem>>, vector<16x96xf32>,
    } else {
    }
    %c0 = arith.constant 0 : index
    %c0_1 = arith.constant 0 : index
    %3 = vector.load %arg7[%c0, %c0_1] : memref<16x96xf32, #tpu.memory_space<vmem>>, vector<16x96xf32>
    %c0_2 = arith.constant 0 : index
    %c0_3 = arith.constant 0 : index
    %4 = vector.load %arg3[%c0_2, %c0_3] : memref<16x32xf32, #tpu.memory_space<vmem>>, vector<16x32xf32>
    %5 = arith.truncf %4 : vector<16x32xf32> to vector<16x32xbf16>
    %c0_4 = arith.constant 0 : index
    %c0_5 = arith.constant 0 : index
    %6 = vector.load %arg4[%c0_4, %c0_5] : memref<32x96xbf16, #tpu.memory_space<vmem>>, vector<32x96xbf16>
    %cst = arith.constant dense<0.000000e+00> : vector<16x96xf32>
    %7 = tpu.matmul %5, %6, %cst {dimension_numbers = #tpu.dot_dimension_numbers<[1], [0], [0], [1], [0, 0, 1, 1], [], []>} : vector<16x32xbf16>, vector<32x96xbf16>, vector<16x96xf32> -> vector<16x96xf32>
    %8 = arith.addf %3, %7 : vector<16x96xf32>
    %c0_6 = arith.constant 0 : index
    %c0_7 = arith.constant 0 : index
    %9 = vector.load %arg7[%c0_6, %c0_7] : memref<16x96xf32, #tpu.memory_space<vmem>>, vector<16x96xf32>
    tpu.vector_store %arg7[%c0_6, %c0_7], %8 {strides = array<i32>} : memref<16x96xf32, #tpu.memory_space<vmem>>, vector<16x96xf32>,
    %c0_i32_8 = arith.constant 0 : i32
    %10 = arith.cmpi eq, %arg2, %c0_i32_8 : i32
    %11 = arith.extui %10 : i1 to i32
    %c0_i32_9 = arith.constant 0 : i32
    %12 = arith.cmpi ne, %11, %c0_i32_9 : i32
    scf.if %12 {
      %c0_10 = arith.constant 0 : index
      %c0_11 = arith.constant 0 : index
      %13 = vector.load %arg7[%c0_10, %c0_11] : memref<16x96xf32, #tpu.memory_space<vmem>>, vector<16x96xf32>
      %c0_12 = arith.constant 0 : index
      %c0_13 = arith.constant 0 : index
      %14 = vector.load %arg5[%c0_12, %c0_13] : memref<1x96xf32, #tpu.memory_space<vmem>>, vector<1x96xf32>
      %15 = vector.broadcast %14 : vector<1x96xf32> to vector<16x96xf32>
      %16 = arith.addf %13, %15 : vector<16x96xf32>
      %17 = arith.truncf %16 : vector<16x96xf32> to vector<16x96xbf16>
      %c0_14 = arith.constant 0 : index
      %c0_15 = arith.constant 0 : index
      %18 = vector.load %arg6[%c0_14, %c0_15] : memref<16x96xbf16, #tpu.memory_space<vmem>>, vector<16x96xbf16>
      tpu.vector_store %arg6[%c0_14, %c0_15], %17 {strides = array<i32>} : memref<16x96xbf16, #tpu.memory_space<vmem>>, vector<16x96xbf16>,
    } else {
    }
    return
  }
  func.func @transform_0(%arg0: i32, %arg1: i32, %arg2: i32) -> (i32, i32) {
    %c0_i32 = arith.constant 0 : i32
    return %arg0, %arg2 : i32, i32
  }
  func.func @transform_1(%arg0: i32, %arg1: i32, %arg2: i32) -> (i32, i32) {
    %c0_i32 = arith.constant 0 : i32
    return %arg2, %arg1 : i32, i32
  }
  func.func @transform_2(%arg0: i32, %arg1: i32, %arg2: i32) -> (i32, i32) {
    %c0_i32 = arith.constant 0 : i32
    %c0_i32_0 = arith.constant 0 : i32
    return %c0_i32, %arg1 : i32, i32
  }
  func.func @transform_3(%arg0: i32, %arg1: i32, %arg2: i32) -> (i32, i32) {
    %c0_i32 = arith.constant 0 : i32
    return %arg0, %arg1 : i32, i32
  }
}

module attributes {stable_mosaic.version = 11 : i64} {
  func.func @_mha_kernel(%arg0: i32, %arg1: i32, %arg2: i32, %arg3: i32, %arg4: memref<1x1x8x8xbf16, #tpu.memory_space<vmem>>, %arg5: memref<1x1x8x8xbf16, #tpu.memory_space<vmem>>, %arg6: memref<1x1x8x8xbf16, #tpu.memory_space<vmem>>, %arg7: memref<1x1x8x8xbf16, #tpu.memory_space<vmem>>, %arg8: memref<8x1xf32, #tpu.memory_space<vmem>>, %arg9: memref<8x1xf32, #tpu.memory_space<vmem>>, %arg10: memref<8x8xf32, #tpu.memory_space<vmem>>) attributes {dimension_semantics = [#tpu.dimension_semantics<parallel>, #tpu.dimension_semantics<parallel>, #tpu.dimension_semantics<parallel>, #tpu.dimension_semantics<arbitrary>], iteration_bounds = array<i64: 2, 4, 1, 1>, scalar_prefetch = 0 : i64, scratch_operands = 3 : i64, tpu.core_type = #tpu.core_type<tc>, window_params = [{transform_indices = @transform_0, window_bounds = array<i64: 1, 1, 8, 8>}, {transform_indices = @transform_1, window_bounds = array<i64: 1, 1, 8, 8>}, {transform_indices = @transform_2, window_bounds = array<i64: 1, 1, 8, 8>}, {transform_indices = @transform_3, window_bounds = array<i64: 1, 1, 8, 8>}]} {
    %c0_i32 = arith.constant 0 : i32
    %0 = arith.cmpi eq, %arg3, %c0_i32 : i32
    %1 = arith.extui %0 : i1 to i32
    %c0_i32_0 = arith.constant 0 : i32
    %2 = arith.cmpi ne, %1, %c0_i32_0 : i32
    scf.if %2 {
      %cst_32 = arith.constant 0xFF800000 : f32
      %51 = vector.broadcast %cst_32 : f32 to vector<8x1xf32>
      %c0_33 = arith.constant 0 : index
      %c0_34 = arith.constant 0 : index
      %52 = vector.load %arg8[%c0_33, %c0_34] : memref<8x1xf32, #tpu.memory_space<vmem>>, vector<8x1xf32>
      tpu.vector_store %arg8[%c0_33, %c0_34], %51 {strides = array<i32>} : memref<8x1xf32, #tpu.memory_space<vmem>>, vector<8x1xf32>,
      %cst_35 = arith.constant 0.000000e+00 : f32
      %53 = vector.broadcast %cst_35 : f32 to vector<8x1xf32>
      %c0_36 = arith.constant 0 : index
      %c0_37 = arith.constant 0 : index
      %54 = vector.load %arg9[%c0_36, %c0_37] : memref<8x1xf32, #tpu.memory_space<vmem>>, vector<8x1xf32>
      tpu.vector_store %arg9[%c0_36, %c0_37], %53 {strides = array<i32>} : memref<8x1xf32, #tpu.memory_space<vmem>>, vector<8x1xf32>,
      %cst_38 = arith.constant 0.000000e+00 : f32
      %55 = vector.broadcast %cst_38 : f32 to vector<8x8xf32>
      %c0_39 = arith.constant 0 : index
      %c0_40 = arith.constant 0 : index
      %56 = vector.load %arg10[%c0_39, %c0_40] : memref<8x8xf32, #tpu.memory_space<vmem>>, vector<8x8xf32>
      tpu.vector_store %arg10[%c0_39, %c0_40], %55 {strides = array<i32>} : memref<8x8xf32, #tpu.memory_space<vmem>>, vector<8x8xf32>,
    } else {
    }
    %c0 = arith.constant 0 : index
    %c0_1 = arith.constant 0 : index
    %c0_2 = arith.constant 0 : index
    %c0_3 = arith.constant 0 : index
    %3 = vector.load %arg4[%c0, %c0_1, %c0_2, %c0_3] : memref<1x1x8x8xbf16, #tpu.memory_space<vmem>>, vector<1x1x8x8xbf16>
    %4 = vector.shape_cast %3 : vector<1x1x8x8xbf16> to vector<8x8xbf16>
    %5 = arith.extf %4 : vector<8x8xbf16> to vector<8x8xf32>
    %cst = arith.constant 0.353553385 : f32
    %6 = vector.broadcast %cst : f32 to vector<8x8xf32>
    %7 = arith.mulf %5, %6 : vector<8x8xf32>
    %8 = arith.truncf %7 : vector<8x8xf32> to vector<8x8xbf16>
    %c0_4 = arith.constant 0 : index
    %c0_5 = arith.constant 0 : index
    %c0_6 = arith.constant 0 : index
    %c0_7 = arith.constant 0 : index
    %9 = vector.load %arg5[%c0_4, %c0_5, %c0_6, %c0_7] : memref<1x1x8x8xbf16, #tpu.memory_space<vmem>>, vector<1x1x8x8xbf16>
    %10 = vector.shape_cast %9 : vector<1x1x8x8xbf16> to vector<8x8xbf16>
    %c0_8 = arith.constant 0 : index
    %c0_9 = arith.constant 0 : index
    %c0_10 = arith.constant 0 : index
    %c0_11 = arith.constant 0 : index
    %11 = vector.load %arg6[%c0_8, %c0_9, %c0_10, %c0_11] : memref<1x1x8x8xbf16, #tpu.memory_space<vmem>>, vector<1x1x8x8xbf16>
    %12 = vector.shape_cast %11 : vector<1x1x8x8xbf16> to vector<8x8xbf16>
    %cst_12 = arith.constant dense<0.000000e+00> : vector<8x8xf32>
    %13 = tpu.matmul %8, %10, %cst_12 {dimension_numbers = #tpu.dot_dimension_numbers<[1], [1], [0], [0], [0, 0, 1, 0], [], []>} : vector<8x8xbf16>, vector<8x8xbf16>, vector<8x8xf32> -> vector<8x8xf32>
    %c8_i32 = arith.constant 8 : i32
    %14 = arith.muli %arg2, %c8_i32 : i32
    %15 = tpu.iota {dimensions = array<i32: 0>} : vector<8x8xi32>
    %16 = vector.broadcast %14 : i32 to vector<8x8xi32>
    %17 = arith.addi %16, %15 : vector<8x8xi32>
    %c8_i32_13 = arith.constant 8 : i32
    %18 = arith.muli %arg3, %c8_i32_13 : i32
    %19 = tpu.iota {dimensions = array<i32: 1>} : vector<8x8xi32>
    %20 = vector.broadcast %18 : i32 to vector<8x8xi32>
    %21 = arith.addi %20, %19 : vector<8x8xi32>
    %22 = arith.cmpi sgt, %21, %17 : vector<8x8xi32>
    %cst_14 = arith.constant -1.000000e+09 : f32
    %23 = vector.broadcast %cst_14 : f32 to vector<8x8xf32>
    %24 = arith.select %22, %23, %13 : vector<8x8xi1>, vector<8x8xf32>
    %c0_15 = arith.constant 0 : index
    %c0_16 = arith.constant 0 : index
    %25 = vector.load %arg8[%c0_15, %c0_16] : memref<8x1xf32, #tpu.memory_space<vmem>>, vector<8x1xf32>
    %cst_17 = arith.constant dense<0xFF800000> : vector<8xf32>
    %26 = vector.multi_reduction <maximumf>, %24, %cst_17 [1] : vector<8x8xf32> to vector<8xf32>
    %27 = vector.shape_cast %26 : vector<8xf32> to vector<8x1xf32>
    %28 = arith.maximumf %25, %27 : vector<8x1xf32>
    %29 = arith.subf %25, %28 : vector<8x1xf32>
    %30 = math.exp %29 : vector<8x1xf32>
    %31 = vector.broadcast %28 : vector<8x1xf32> to vector<8x8xf32>
    %32 = arith.subf %24, %31 : vector<8x8xf32>
    %33 = math.exp %32 : vector<8x8xf32>
    %c0_18 = arith.constant 0 : index
    %c0_19 = arith.constant 0 : index
    %34 = vector.load %arg9[%c0_18, %c0_19] : memref<8x1xf32, #tpu.memory_space<vmem>>, vector<8x1xf32>
    %35 = arith.mulf %30, %34 : vector<8x1xf32>
    %cst_20 = arith.constant dense<0.000000e+00> : vector<8xf32>
    %36 = vector.multi_reduction <add>, %33, %cst_20 [1] : vector<8x8xf32> to vector<8xf32>
    %37 = vector.shape_cast %36 : vector<8xf32> to vector<8x1xf32>
    %38 = arith.addf %35, %37 : vector<8x1xf32>
    %c0_21 = arith.constant 0 : index
    %c0_22 = arith.constant 0 : index
    %39 = vector.load %arg9[%c0_21, %c0_22] : memref<8x1xf32, #tpu.memory_space<vmem>>, vector<8x1xf32>
    tpu.vector_store %arg9[%c0_21, %c0_22], %38 {strides = array<i32>} : memref<8x1xf32, #tpu.memory_space<vmem>>, vector<8x1xf32>,
    %c0_23 = arith.constant 0 : index
    %c0_24 = arith.constant 0 : index
    %40 = vector.load %arg10[%c0_23, %c0_24] : memref<8x8xf32, #tpu.memory_space<vmem>>, vector<8x8xf32>
    %41 = vector.broadcast %30 : vector<8x1xf32> to vector<8x8xf32>
    %42 = arith.mulf %41, %40 : vector<8x8xf32>
    %43 = arith.truncf %33 : vector<8x8xf32> to vector<8x8xbf16>
    %cst_25 = arith.constant dense<0.000000e+00> : vector<8x8xf32>
    %44 = tpu.matmul %43, %12, %cst_25 {dimension_numbers = #tpu.dot_dimension_numbers<[1], [0], [0], [1], [0, 0, 1, 1], [], []>} : vector<8x8xbf16>, vector<8x8xbf16>, vector<8x8xf32> -> vector<8x8xf32>
    %45 = arith.addf %42, %44 : vector<8x8xf32>
    %c0_26 = arith.constant 0 : index
    %c0_27 = arith.constant 0 : index
    %46 = vector.load %arg10[%c0_26, %c0_27] : memref<8x8xf32, #tpu.memory_space<vmem>>, vector<8x8xf32>
    tpu.vector_store %arg10[%c0_26, %c0_27], %45 {strides = array<i32>} : memref<8x8xf32, #tpu.memory_space<vmem>>, vector<8x8xf32>,
    %c0_28 = arith.constant 0 : index
    %c0_29 = arith.constant 0 : index
    %47 = vector.load %arg8[%c0_28, %c0_29] : memref<8x1xf32, #tpu.memory_space<vmem>>, vector<8x1xf32>
    tpu.vector_store %arg8[%c0_28, %c0_29], %28 {strides = array<i32>} : memref<8x1xf32, #tpu.memory_space<vmem>>, vector<8x1xf32>,
    %c0_i32_30 = arith.constant 0 : i32
    %48 = arith.cmpi eq, %arg3, %c0_i32_30 : i32
    %49 = arith.extui %48 : i1 to i32
    %c0_i32_31 = arith.constant 0 : i32
    %50 = arith.cmpi ne, %49, %c0_i32_31 : i32
    scf.if %50 {
      %c0_32 = arith.constant 0 : index
      %c0_33 = arith.constant 0 : index
      %51 = vector.load %arg10[%c0_32, %c0_33] : memref<8x8xf32, #tpu.memory_space<vmem>>, vector<8x8xf32>
      %c0_34 = arith.constant 0 : index
      %c0_35 = arith.constant 0 : index
      %52 = vector.load %arg9[%c0_34, %c0_35] : memref<8x1xf32, #tpu.memory_space<vmem>>, vector<8x1xf32>
      %53 = vector.broadcast %52 : vector<8x1xf32> to vector<8x8xf32>
      %54 = arith.divf %51, %53 : vector<8x8xf32>
      %55 = arith.truncf %54 : vector<8x8xf32> to vector<8x8xbf16>
      %c0_36 = arith.constant 0 : index
      %c0_37 = arith.constant 0 : index
      %c0_38 = arith.constant 0 : index
      %c0_39 = arith.constant 0 : index
      %56 = vector.load %arg7[%c0_36, %c0_37, %c0_38, %c0_39] : memref<1x1x8x8xbf16, #tpu.memory_space<vmem>>, vector<1x1x8x8xbf16>
      %57 = vector.shape_cast %56 : vector<1x1x8x8xbf16> to vector<8x8xbf16>
      %58 = vector.shape_cast %55 : vector<8x8xbf16> to vector<1x1x8x8xbf16>
      tpu.vector_store %arg7[%c0_36, %c0_37, %c0_38, %c0_39], %58 {strides = array<i32>} : memref<1x1x8x8xbf16, #tpu.memory_space<vmem>>, vector<1x1x8x8xbf16>,
    } else {
    }
    return
  }
  func.func @transform_0(%arg0: i32, %arg1: i32, %arg2: i32, %arg3: i32) -> (i32, i32, i32, i32) {
    %c0_i32 = arith.constant 0 : i32
    %c0_i32_0 = arith.constant 0 : i32
    return %arg0, %arg1, %arg2, %c0_i32 : i32, i32, i32, i32
  }
  func.func @transform_1(%arg0: i32, %arg1: i32, %arg2: i32, %arg3: i32) -> (i32, i32, i32, i32) {
    %c0_i32 = arith.constant 0 : i32
    %c0_i32_0 = arith.constant 0 : i32
    return %arg0, %arg1, %arg3, %c0_i32 : i32, i32, i32, i32
  }
  func.func @transform_2(%arg0: i32, %arg1: i32, %arg2: i32, %arg3: i32) -> (i32, i32, i32, i32) {
    %c0_i32 = arith.constant 0 : i32
    %c0_i32_0 = arith.constant 0 : i32
    return %arg0, %arg1, %arg3, %c0_i32 : i32, i32, i32, i32
  }
  func.func @transform_3(%arg0: i32, %arg1: i32, %arg2: i32, %arg3: i32) -> (i32, i32, i32, i32) {
    %c0_i32 = arith.constant 0 : i32
    %c0_i32_0 = arith.constant 0 : i32
    return %arg0, %arg1, %arg2, %c0_i32 : i32, i32, i32, i32
  }
}

module attributes {stable_mosaic.version = 11 : i64} {
  func.func @_proj_add_ln_kernel(%arg0: i32, %arg1: i32, %arg2: memref<16x32xbf16, #tpu.memory_space<vmem>>, %arg3: memref<32x32xbf16, #tpu.memory_space<vmem>>, %arg4: memref<1x32xf32, #tpu.memory_space<vmem>>, %arg5: memref<16x32xf32, #tpu.memory_space<vmem>>, %arg6: memref<1x32xf32, #tpu.memory_space<vmem>>, %arg7: memref<1x32xf32, #tpu.memory_space<vmem>>, %arg8: memref<16x32xf32, #tpu.memory_space<vmem>>, %arg9: memref<16x32xf32, #tpu.memory_space<vmem>>) attributes {dimension_semantics = [#tpu.dimension_semantics<parallel>, #tpu.dimension_semantics<arbitrary>], iteration_bounds = array<i64: 1, 1>, scalar_prefetch = 0 : i64, scratch_operands = 1 : i64, tpu.core_type = #tpu.core_type<tc>, window_params = [{transform_indices = @transform_0, window_bounds = array<i64: 16, 32>}, {transform_indices = @transform_1, window_bounds = array<i64: 32, 32>}, {pipeline_mode = #tpu.pipeline_mode<synchronous>, transform_indices = @transform_2, window_bounds = array<i64: 1, 32>}, {transform_indices = @transform_3, window_bounds = array<i64: 16, 32>}, {pipeline_mode = #tpu.pipeline_mode<synchronous>, transform_indices = @transform_4, window_bounds = array<i64: 1, 32>}, {pipeline_mode = #tpu.pipeline_mode<synchronous>, transform_indices = @transform_5, window_bounds = array<i64: 1, 32>}, {transform_indices = @transform_6, window_bounds = array<i64: 16, 32>}]} {
    %c0_i32 = arith.constant 0 : i32
    %0 = arith.cmpi eq, %arg1, %c0_i32 : i32
    %1 = arith.extui %0 : i1 to i32
    %c0_i32_0 = arith.constant 0 : i32
    %2 = arith.cmpi ne, %1, %c0_i32_0 : i32
    scf.if %2 {
      %cst_10 = arith.constant 0.000000e+00 : f32
      %12 = vector.broadcast %cst_10 : f32 to vector<16x32xf32>
      %c0_11 = arith.constant 0 : index
      %c0_12 = arith.constant 0 : index
      %13 = vector.load %arg9[%c0_11, %c0_12] : memref<16x32xf32, #tpu.memory_space<vmem>>, vector<16x32xf32>
      tpu.vector_store %arg9[%c0_11, %c0_12], %12 {strides = array<i32>} : memref<16x32xf32, #tpu.memory_space<vmem>>, vector<16x32xf32>,
    } else {
    }
    %c0 = arith.constant 0 : index
    %c0_1 = arith.constant 0 : index
    %3 = vector.load %arg9[%c0, %c0_1] : memref<16x32xf32, #tpu.memory_space<vmem>>, vector<16x32xf32>
    %c0_2 = arith.constant 0 : index
    %c0_3 = arith.constant 0 : index
    %4 = vector.load %arg2[%c0_2, %c0_3] : memref<16x32xbf16, #tpu.memory_space<vmem>>, vector<16x32xbf16>
    %c0_4 = arith.constant 0 : index
    %c0_5 = arith.constant 0 : index
    %5 = vector.load %arg3[%c0_4, %c0_5] : memref<32x32xbf16, #tpu.memory_space<vmem>>, vector<32x32xbf16>
    %cst = arith.constant dense<0.000000e+00> : vector<16x32xf32>
    %6 = tpu.matmul %4, %5, %cst {dimension_numbers = #tpu.dot_dimension_numbers<[1], [0], [0], [1], [0, 0, 1, 1], [], []>} : vector<16x32xbf16>, vector<32x32xbf16>, vector<16x32xf32> -> vector<16x32xf32>
    %7 = arith.addf %3, %6 : vector<16x32xf32>
    %c0_6 = arith.constant 0 : index
    %c0_7 = arith.constant 0 : index
    %8 = vector.load %arg9[%c0_6, %c0_7] : memref<16x32xf32, #tpu.memory_space<vmem>>, vector<16x32xf32>
    tpu.vector_store %arg9[%c0_6, %c0_7], %7 {strides = array<i32>} : memref<16x32xf32, #tpu.memory_space<vmem>>, vector<16x32xf32>,
    %c0_i32_8 = arith.constant 0 : i32
    %9 = arith.cmpi eq, %arg1, %c0_i32_8 : i32
    %10 = arith.extui %9 : i1 to i32
    %c0_i32_9 = arith.constant 0 : i32
    %11 = arith.cmpi ne, %10, %c0_i32_9 : i32
    scf.if %11 {
      %c0_10 = arith.constant 0 : index
      %c0_11 = arith.constant 0 : index
      %12 = vector.load %arg5[%c0_10, %c0_11] : memref<16x32xf32, #tpu.memory_space<vmem>>, vector<16x32xf32>
      %c0_12 = arith.constant 0 : index
      %c0_13 = arith.constant 0 : index
      %13 = vector.load %arg9[%c0_12, %c0_13] : memref<16x32xf32, #tpu.memory_space<vmem>>, vector<16x32xf32>
      %14 = arith.addf %12, %13 : vector<16x32xf32>
      %c0_14 = arith.constant 0 : index
      %c0_15 = arith.constant 0 : index
      %15 = vector.load %arg4[%c0_14, %c0_15] : memref<1x32xf32, #tpu.memory_space<vmem>>, vector<1x32xf32>
      %16 = vector.broadcast %15 : vector<1x32xf32> to vector<16x32xf32>
      %17 = arith.addf %14, %16 : vector<16x32xf32>
      %cst_16 = arith.constant dense<0.000000e+00> : vector<16xf32>
      %18 = vector.multi_reduction <add>, %17, %cst_16 [1] : vector<16x32xf32> to vector<16xf32>
      %19 = vector.shape_cast %18 : vector<16xf32> to vector<16x1xf32>
      %cst_17 = arith.constant 3.200000e+01 : f32
      %20 = vector.broadcast %cst_17 : f32 to vector<16x1xf32>
      %21 = arith.divf %19, %20 : vector<16x1xf32>
      %22 = vector.broadcast %21 : vector<16x1xf32> to vector<16x32xf32>
      %23 = arith.subf %17, %22 : vector<16x32xf32>
      %24 = arith.mulf %23, %23 : vector<16x32xf32>
      %cst_18 = arith.constant dense<0.000000e+00> : vector<16xf32>
      %25 = vector.multi_reduction <add>, %24, %cst_18 [1] : vector<16x32xf32> to vector<16xf32>
      %26 = vector.shape_cast %25 : vector<16xf32> to vector<16x1xf32>
      %cst_19 = arith.constant 3.200000e+01 : f32
      %27 = vector.broadcast %cst_19 : f32 to vector<16x1xf32>
      %28 = arith.divf %26, %27 : vector<16x1xf32>
      %29 = vector.broadcast %21 : vector<16x1xf32> to vector<16x32xf32>
      %30 = arith.subf %17, %29 : vector<16x32xf32>
      %cst_20 = arith.constant 9.99999974E-6 : f32
      %31 = vector.broadcast %cst_20 : f32 to vector<16x1xf32>
      %32 = arith.addf %28, %31 : vector<16x1xf32>
      %33 = math.rsqrt %32 : vector<16x1xf32>
      %34 = vector.broadcast %33 : vector<16x1xf32> to vector<16x32xf32>
      %35 = arith.mulf %30, %34 : vector<16x32xf32>
      %c0_21 = arith.constant 0 : index
      %c0_22 = arith.constant 0 : index
      %36 = vector.load %arg6[%c0_21, %c0_22] : memref<1x32xf32, #tpu.memory_space<vmem>>, vector<1x32xf32>
      %37 = vector.broadcast %36 : vector<1x32xf32> to vector<16x32xf32>
      %38 = arith.mulf %35, %37 : vector<16x32xf32>
      %c0_23 = arith.constant 0 : index
      %c0_24 = arith.constant 0 : index
      %39 = vector.load %arg7[%c0_23, %c0_24] : memref<1x32xf32, #tpu.memory_space<vmem>>, vector<1x32xf32>
      %40 = vector.broadcast %39 : vector<1x32xf32> to vector<16x32xf32>
      %41 = arith.addf %38, %40 : vector<16x32xf32>
      %c0_25 = arith.constant 0 : index
      %c0_26 = arith.constant 0 : index
      %42 = vector.load %arg8[%c0_25, %c0_26] : memref<16x32xf32, #tpu.memory_space<vmem>>, vector<16x32xf32>
      tpu.vector_store %arg8[%c0_25, %c0_26], %41 {strides = array<i32>} : memref<16x32xf32, #tpu.memory_space<vmem>>, vector<16x32xf32>,
    } else {
    }
    return
  }
  func.func @transform_0(%arg0: i32, %arg1: i32) -> (i32, i32) {
    %c0_i32 = arith.constant 0 : i32
    return %arg0, %arg1 : i32, i32
  }
  func.func @transform_1(%arg0: i32, %arg1: i32) -> (i32, i32) {
    %c0_i32 = arith.constant 0 : i32
    %c0_i32_0 = arith.constant 0 : i32
    return %arg1, %c0_i32 : i32, i32
  }
  func.func @transform_2(%arg0: i32, %arg1: i32) -> (i32, i32) {
    %c0_i32 = arith.constant 0 : i32
    %c0_i32_0 = arith.constant 0 : i32
    %c0_i32_1 = arith.constant 0 : i32
    return %c0_i32, %c0_i32_0 : i32, i32
  }
  func.func @transform_3(%arg0: i32, %arg1: i32) -> (i32, i32) {
    %c0_i32 = arith.constant 0 : i32
    %c0_i32_0 = arith.constant 0 : i32
    return %arg0, %c0_i32 : i32, i32
  }
  func.func @transform_4(%arg0: i32, %arg1: i32) -> (i32, i32) {
    %c0_i32 = arith.constant 0 : i32
    %c0_i32_0 = arith.constant 0 : i32
    %c0_i32_1 = arith.constant 0 : i32
    return %c0_i32, %c0_i32_0 : i32, i32
  }
  func.func @transform_5(%arg0: i32, %arg1: i32) -> (i32, i32) {
    %c0_i32 = arith.constant 0 : i32
    %c0_i32_0 = arith.constant 0 : i32
    %c0_i32_1 = arith.constant 0 : i32
    return %c0_i32, %c0_i32_0 : i32, i32
  }
  func.func @transform_6(%arg0: i32, %arg1: i32) -> (i32, i32) {
    %c0_i32 = arith.constant 0 : i32
    %c0_i32_0 = arith.constant 0 : i32
    return %arg0, %c0_i32 : i32, i32
  }
}

module attributes {stable_mosaic.version = 11 : i64} {
  func.func @_linear_kernel(%arg0: i32, %arg1: i32, %arg2: i32, %arg3: memref<16x32xf32, #tpu.memory_space<vmem>>, %arg4: memref<32x32xbf16, #tpu.memory_space<vmem>>, %arg5: memref<1x32xf32, #tpu.memory_space<vmem>>, %arg6: memref<16x32xbf16, #tpu.memory_space<vmem>>, %arg7: memref<16x32xf32, #tpu.memory_space<vmem>>) attributes {dimension_semantics = [#tpu.dimension_semantics<parallel>, #tpu.dimension_semantics<parallel>, #tpu.dimension_semantics<arbitrary>], iteration_bounds = array<i64: 1, 1, 1>, scalar_prefetch = 0 : i64, scratch_operands = 1 : i64, tpu.core_type = #tpu.core_type<tc>, window_params = [{transform_indices = @transform_0, window_bounds = array<i64: 16, 32>}, {transform_indices = @transform_1, window_bounds = array<i64: 32, 32>}, {transform_indices = @transform_2, window_bounds = array<i64: 1, 32>}, {transform_indices = @transform_3, window_bounds = array<i64: 16, 32>}]} {
    %c0_i32 = arith.constant 0 : i32
    %0 = arith.cmpi eq, %arg2, %c0_i32 : i32
    %1 = arith.extui %0 : i1 to i32
    %c0_i32_0 = arith.constant 0 : i32
    %2 = arith.cmpi ne, %1, %c0_i32_0 : i32
    scf.if %2 {
      %cst_10 = arith.constant 0.000000e+00 : f32
      %13 = vector.broadcast %cst_10 : f32 to vector<16x32xf32>
      %c0_11 = arith.constant 0 : index
      %c0_12 = arith.constant 0 : index
      %14 = vector.load %arg7[%c0_11, %c0_12] : memref<16x32xf32, #tpu.memory_space<vmem>>, vector<16x32xf32>
      tpu.vector_store %arg7[%c0_11, %c0_12], %13 {strides = array<i32>} : memref<16x32xf32, #tpu.memory_space<vmem>>, vector<16x32xf32>,
    } else {
    }
    %c0 = arith.constant 0 : index
    %c0_1 = arith.constant 0 : index
    %3 = vector.load %arg7[%c0, %c0_1] : memref<16x32xf32, #tpu.memory_space<vmem>>, vector<16x32xf32>
    %c0_2 = arith.constant 0 : index
    %c0_3 = arith.constant 0 : index
    %4 = vector.load %arg3[%c0_2, %c0_3] : memref<16x32xf32, #tpu.memory_space<vmem>>, vector<16x32xf32>
    %5 = arith.truncf %4 : vector<16x32xf32> to vector<16x32xbf16>
    %c0_4 = arith.constant 0 : index
    %c0_5 = arith.constant 0 : index
    %6 = vector.load %arg4[%c0_4, %c0_5] : memref<32x32xbf16, #tpu.memory_space<vmem>>, vector<32x32xbf16>
    %cst = arith.constant dense<0.000000e+00> : vector<16x32xf32>
    %7 = tpu.matmul %5, %6, %cst {dimension_numbers = #tpu.dot_dimension_numbers<[1], [0], [0], [1], [0, 0, 1, 1], [], []>} : vector<16x32xbf16>, vector<32x32xbf16>, vector<16x32xf32> -> vector<16x32xf32>
    %8 = arith.addf %3, %7 : vector<16x32xf32>
    %c0_6 = arith.constant 0 : index
    %c0_7 = arith.constant 0 : index
    %9 = vector.load %arg7[%c0_6, %c0_7] : memref<16x32xf32, #tpu.memory_space<vmem>>, vector<16x32xf32>
    tpu.vector_store %arg7[%c0_6, %c0_7], %8 {strides = array<i32>} : memref<16x32xf32, #tpu.memory_space<vmem>>, vector<16x32xf32>,
    %c0_i32_8 = arith.constant 0 : i32
    %10 = arith.cmpi eq, %arg2, %c0_i32_8 : i32
    %11 = arith.extui %10 : i1 to i32
    %c0_i32_9 = arith.constant 0 : i32
    %12 = arith.cmpi ne, %11, %c0_i32_9 : i32
    scf.if %12 {
      %c0_10 = arith.constant 0 : index
      %c0_11 = arith.constant 0 : index
      %13 = vector.load %arg7[%c0_10, %c0_11] : memref<16x32xf32, #tpu.memory_space<vmem>>, vector<16x32xf32>
      %c0_12 = arith.constant 0 : index
      %c0_13 = arith.constant 0 : index
      %14 = vector.load %arg5[%c0_12, %c0_13] : memref<1x32xf32, #tpu.memory_space<vmem>>, vector<1x32xf32>
      %15 = vector.broadcast %14 : vector<1x32xf32> to vector<16x32xf32>
      %16 = arith.addf %13, %15 : vector<16x32xf32>
      %17 = arith.truncf %16 : vector<16x32xf32> to vector<16x32xbf16>
      %c0_14 = arith.constant 0 : index
      %c0_15 = arith.constant 0 : index
      %18 = vector.load %arg6[%c0_14, %c0_15] : memref<16x32xbf16, #tpu.memory_space<vmem>>, vector<16x32xbf16>
      tpu.vector_store %arg6[%c0_14, %c0_15], %17 {strides = array<i32>} : memref<16x32xbf16, #tpu.memory_space<vmem>>, vector<16x32xbf16>,
    } else {
    }
    return
  }
  func.func @transform_0(%arg0: i32, %arg1: i32, %arg2: i32) -> (i32, i32) {
    %c0_i32 = arith.constant 0 : i32
    return %arg0, %arg2 : i32, i32
  }
  func.func @transform_1(%arg0: i32, %arg1: i32, %arg2: i32) -> (i32, i32) {
    %c0_i32 = arith.constant 0 : i32
    return %arg2, %arg1 : i32, i32
  }
  func.func @transform_2(%arg0: i32, %arg1: i32, %arg2: i32) -> (i32, i32) {
    %c0_i32 = arith.constant 0 : i32
    %c0_i32_0 = arith.constant 0 : i32
    return %c0_i32, %arg1 : i32, i32
  }
  func.func @transform_3(%arg0: i32, %arg1: i32, %arg2: i32) -> (i32, i32) {
    %c0_i32 = arith.constant 0 : i32
    return %arg0, %arg1 : i32, i32
  }
}

module attributes {stable_mosaic.version = 11 : i64} {
  func.func @_linear_kernel(%arg0: i32, %arg1: i32, %arg2: i32, %arg3: memref<16x32xf32, #tpu.memory_space<vmem>>, %arg4: memref<32x64xbf16, #tpu.memory_space<vmem>>, %arg5: memref<1x64xf32, #tpu.memory_space<vmem>>, %arg6: memref<16x64xbf16, #tpu.memory_space<vmem>>, %arg7: memref<16x64xf32, #tpu.memory_space<vmem>>) attributes {dimension_semantics = [#tpu.dimension_semantics<parallel>, #tpu.dimension_semantics<parallel>, #tpu.dimension_semantics<arbitrary>], iteration_bounds = array<i64: 1, 1, 1>, scalar_prefetch = 0 : i64, scratch_operands = 1 : i64, tpu.core_type = #tpu.core_type<tc>, window_params = [{transform_indices = @transform_0, window_bounds = array<i64: 16, 32>}, {transform_indices = @transform_1, window_bounds = array<i64: 32, 64>}, {transform_indices = @transform_2, window_bounds = array<i64: 1, 64>}, {transform_indices = @transform_3, window_bounds = array<i64: 16, 64>}]} {
    %c0_i32 = arith.constant 0 : i32
    %0 = arith.cmpi eq, %arg2, %c0_i32 : i32
    %1 = arith.extui %0 : i1 to i32
    %c0_i32_0 = arith.constant 0 : i32
    %2 = arith.cmpi ne, %1, %c0_i32_0 : i32
    scf.if %2 {
      %cst_10 = arith.constant 0.000000e+00 : f32
      %13 = vector.broadcast %cst_10 : f32 to vector<16x64xf32>
      %c0_11 = arith.constant 0 : index
      %c0_12 = arith.constant 0 : index
      %14 = vector.load %arg7[%c0_11, %c0_12] : memref<16x64xf32, #tpu.memory_space<vmem>>, vector<16x64xf32>
      tpu.vector_store %arg7[%c0_11, %c0_12], %13 {strides = array<i32>} : memref<16x64xf32, #tpu.memory_space<vmem>>, vector<16x64xf32>,
    } else {
    }
    %c0 = arith.constant 0 : index
    %c0_1 = arith.constant 0 : index
    %3 = vector.load %arg7[%c0, %c0_1] : memref<16x64xf32, #tpu.memory_space<vmem>>, vector<16x64xf32>
    %c0_2 = arith.constant 0 : index
    %c0_3 = arith.constant 0 : index
    %4 = vector.load %arg3[%c0_2, %c0_3] : memref<16x32xf32, #tpu.memory_space<vmem>>, vector<16x32xf32>
    %5 = arith.truncf %4 : vector<16x32xf32> to vector<16x32xbf16>
    %c0_4 = arith.constant 0 : index
    %c0_5 = arith.constant 0 : index
    %6 = vector.load %arg4[%c0_4, %c0_5] : memref<32x64xbf16, #tpu.memory_space<vmem>>, vector<32x64xbf16>
    %cst = arith.constant dense<0.000000e+00> : vector<16x64xf32>
    %7 = tpu.matmul %5, %6, %cst {dimension_numbers = #tpu.dot_dimension_numbers<[1], [0], [0], [1], [0, 0, 1, 1], [], []>} : vector<16x32xbf16>, vector<32x64xbf16>, vector<16x64xf32> -> vector<16x64xf32>
    %8 = arith.addf %3, %7 : vector<16x64xf32>
    %c0_6 = arith.constant 0 : index
    %c0_7 = arith.constant 0 : index
    %9 = vector.load %arg7[%c0_6, %c0_7] : memref<16x64xf32, #tpu.memory_space<vmem>>, vector<16x64xf32>
    tpu.vector_store %arg7[%c0_6, %c0_7], %8 {strides = array<i32>} : memref<16x64xf32, #tpu.memory_space<vmem>>, vector<16x64xf32>,
    %c0_i32_8 = arith.constant 0 : i32
    %10 = arith.cmpi eq, %arg2, %c0_i32_8 : i32
    %11 = arith.extui %10 : i1 to i32
    %c0_i32_9 = arith.constant 0 : i32
    %12 = arith.cmpi ne, %11, %c0_i32_9 : i32
    scf.if %12 {
      %c0_10 = arith.constant 0 : index
      %c0_11 = arith.constant 0 : index
      %13 = vector.load %arg7[%c0_10, %c0_11] : memref<16x64xf32, #tpu.memory_space<vmem>>, vector<16x64xf32>
      %c0_12 = arith.constant 0 : index
      %c0_13 = arith.constant 0 : index
      %14 = vector.load %arg5[%c0_12, %c0_13] : memref<1x64xf32, #tpu.memory_space<vmem>>, vector<1x64xf32>
      %15 = vector.broadcast %14 : vector<1x64xf32> to vector<16x64xf32>
      %16 = arith.addf %13, %15 : vector<16x64xf32>
      %17 = arith.truncf %16 : vector<16x64xf32> to vector<16x64xbf16>
      %c0_14 = arith.constant 0 : index
      %c0_15 = arith.constant 0 : index
      %18 = vector.load %arg6[%c0_14, %c0_15] : memref<16x64xbf16, #tpu.memory_space<vmem>>, vector<16x64xbf16>
      tpu.vector_store %arg6[%c0_14, %c0_15], %17 {strides = array<i32>} : memref<16x64xbf16, #tpu.memory_space<vmem>>, vector<16x64xbf16>,
    } else {
    }
    return
  }
  func.func @transform_0(%arg0: i32, %arg1: i32, %arg2: i32) -> (i32, i32) {
    %c0_i32 = arith.constant 0 : i32
    return %arg0, %arg2 : i32, i32
  }
  func.func @transform_1(%arg0: i32, %arg1: i32, %arg2: i32) -> (i32, i32) {
    %c0_i32 = arith.constant 0 : i32
    return %arg2, %arg1 : i32, i32
  }
  func.func @transform_2(%arg0: i32, %arg1: i32, %arg2: i32) -> (i32, i32) {
    %c0_i32 = arith.constant 0 : i32
    %c0_i32_0 = arith.constant 0 : i32
    return %c0_i32, %arg1 : i32, i32
  }
  func.func @transform_3(%arg0: i32, %arg1: i32, %arg2: i32) -> (i32, i32) {
    %c0_i32 = arith.constant 0 : i32
    return %arg0, %arg1 : i32, i32
  }
}

module attributes {stable_mosaic.version = 11 : i64} {
  func.func @_mha_kernel(%arg0: i32, %arg1: i32, %arg2: i32, %arg3: i32, %arg4: memref<1x1x8x8xbf16, #tpu.memory_space<vmem>>, %arg5: memref<1x1x8x8xbf16, #tpu.memory_space<vmem>>, %arg6: memref<1x1x8x8xbf16, #tpu.memory_space<vmem>>, %arg7: memref<1x1x8x8xbf16, #tpu.memory_space<vmem>>, %arg8: memref<8x1xf32, #tpu.memory_space<vmem>>, %arg9: memref<8x1xf32, #tpu.memory_space<vmem>>, %arg10: memref<8x8xf32, #tpu.memory_space<vmem>>) attributes {dimension_semantics = [#tpu.dimension_semantics<parallel>, #tpu.dimension_semantics<parallel>, #tpu.dimension_semantics<parallel>, #tpu.dimension_semantics<arbitrary>], iteration_bounds = array<i64: 2, 4, 1, 1>, scalar_prefetch = 0 : i64, scratch_operands = 3 : i64, tpu.core_type = #tpu.core_type<tc>, window_params = [{transform_indices = @transform_0, window_bounds = array<i64: 1, 1, 8, 8>}, {transform_indices = @transform_1, window_bounds = array<i64: 1, 1, 8, 8>}, {transform_indices = @transform_2, window_bounds = array<i64: 1, 1, 8, 8>}, {transform_indices = @transform_3, window_bounds = array<i64: 1, 1, 8, 8>}]} {
    %c0_i32 = arith.constant 0 : i32
    %0 = arith.cmpi eq, %arg3, %c0_i32 : i32
    %1 = arith.extui %0 : i1 to i32
    %c0_i32_0 = arith.constant 0 : i32
    %2 = arith.cmpi ne, %1, %c0_i32_0 : i32
    scf.if %2 {
      %cst_30 = arith.constant 0xFF800000 : f32
      %40 = vector.broadcast %cst_30 : f32 to vector<8x1xf32>
      %c0_31 = arith.constant 0 : index
      %c0_32 = arith.constant 0 : index
      %41 = vector.load %arg8[%c0_31, %c0_32] : memref<8x1xf32, #tpu.memory_space<vmem>>, vector<8x1xf32>
      tpu.vector_store %arg8[%c0_31, %c0_32], %40 {strides = array<i32>} : memref<8x1xf32, #tpu.memory_space<vmem>>, vector<8x1xf32>,
      %cst_33 = arith.constant 0.000000e+00 : f32
      %42 = vector.broadcast %cst_33 : f32 to vector<8x1xf32>
      %c0_34 = arith.constant 0 : index
      %c0_35 = arith.constant 0 : index
      %43 = vector.load %arg9[%c0_34, %c0_35] : memref<8x1xf32, #tpu.memory_space<vmem>>, vector<8x1xf32>
      tpu.vector_store %arg9[%c0_34, %c0_35], %42 {strides = array<i32>} : memref<8x1xf32, #tpu.memory_space<vmem>>, vector<8x1xf32>,
      %cst_36 = arith.constant 0.000000e+00 : f32
      %44 = vector.broadcast %cst_36 : f32 to vector<8x8xf32>
      %c0_37 = arith.constant 0 : index
      %c0_38 = arith.constant 0 : index
      %45 = vector.load %arg10[%c0_37, %c0_38] : memref<8x8xf32, #tpu.memory_space<vmem>>, vector<8x8xf32>
      tpu.vector_store %arg10[%c0_37, %c0_38], %44 {strides = array<i32>} : memref<8x8xf32, #tpu.memory_space<vmem>>, vector<8x8xf32>,
    } else {
    }
    %c0 = arith.constant 0 : index
    %c0_1 = arith.constant 0 : index
    %c0_2 = arith.constant 0 : index
    %c0_3 = arith.constant 0 : index
    %3 = vector.load %arg4[%c0, %c0_1, %c0_2, %c0_3] : memref<1x1x8x8xbf16, #tpu.memory_space<vmem>>, vector<1x1x8x8xbf16>
    %4 = vector.shape_cast %3 : vector<1x1x8x8xbf16> to vector<8x8xbf16>
    %5 = arith.extf %4 : vector<8x8xbf16> to vector<8x8xf32>
    %cst = arith.constant 0.353553385 : f32
    %6 = vector.broadcast %cst : f32 to vector<8x8xf32>
    %7 = arith.mulf %5, %6 : vector<8x8xf32>
    %8 = arith.truncf %7 : vector<8x8xf32> to vector<8x8xbf16>
    %c0_4 = arith.constant 0 : index
    %c0_5 = arith.constant 0 : index
    %c0_6 = arith.constant 0 : index
    %c0_7 = arith.constant 0 : index
    %9 = vector.load %arg5[%c0_4, %c0_5, %c0_6, %c0_7] : memref<1x1x8x8xbf16, #tpu.memory_space<vmem>>, vector<1x1x8x8xbf16>
    %10 = vector.shape_cast %9 : vector<1x1x8x8xbf16> to vector<8x8xbf16>
    %c0_8 = arith.constant 0 : index
    %c0_9 = arith.constant 0 : index
    %c0_10 = arith.constant 0 : index
    %c0_11 = arith.constant 0 : index
    %11 = vector.load %arg6[%c0_8, %c0_9, %c0_10, %c0_11] : memref<1x1x8x8xbf16, #tpu.memory_space<vmem>>, vector<1x1x8x8xbf16>
    %12 = vector.shape_cast %11 : vector<1x1x8x8xbf16> to vector<8x8xbf16>
    %cst_12 = arith.constant dense<0.000000e+00> : vector<8x8xf32>
    %13 = tpu.matmul %8, %10, %cst_12 {dimension_numbers = #tpu.dot_dimension_numbers<[1], [1], [0], [0], [0, 0, 1, 0], [], []>} : vector<8x8xbf16>, vector<8x8xbf16>, vector<8x8xf32> -> vector<8x8xf32>
    %c0_13 = arith.constant 0 : index
    %c0_14 = arith.constant 0 : index
    %14 = vector.load %arg8[%c0_13, %c0_14] : memref<8x1xf32, #tpu.memory_space<vmem>>, vector<8x1xf32>
    %cst_15 = arith.constant dense<0xFF800000> : vector<8xf32>
    %15 = vector.multi_reduction <maximumf>, %13, %cst_15 [1] : vector<8x8xf32> to vector<8xf32>
    %16 = vector.shape_cast %15 : vector<8xf32> to vector<8x1xf32>
    %17 = arith.maximumf %14, %16 : vector<8x1xf32>
    %18 = arith.subf %14, %17 : vector<8x1xf32>
    %19 = math.exp %18 : vector<8x1xf32>
    %20 = vector.broadcast %17 : vector<8x1xf32> to vector<8x8xf32>
    %21 = arith.subf %13, %20 : vector<8x8xf32>
    %22 = math.exp %21 : vector<8x8xf32>
    %c0_16 = arith.constant 0 : index
    %c0_17 = arith.constant 0 : index
    %23 = vector.load %arg9[%c0_16, %c0_17] : memref<8x1xf32, #tpu.memory_space<vmem>>, vector<8x1xf32>
    %24 = arith.mulf %19, %23 : vector<8x1xf32>
    %cst_18 = arith.constant dense<0.000000e+00> : vector<8xf32>
    %25 = vector.multi_reduction <add>, %22, %cst_18 [1] : vector<8x8xf32> to vector<8xf32>
    %26 = vector.shape_cast %25 : vector<8xf32> to vector<8x1xf32>
    %27 = arith.addf %24, %26 : vector<8x1xf32>
    %c0_19 = arith.constant 0 : index
    %c0_20 = arith.constant 0 : index
    %28 = vector.load %arg9[%c0_19, %c0_20] : memref<8x1xf32, #tpu.memory_space<vmem>>, vector<8x1xf32>
    tpu.vector_store %arg9[%c0_19, %c0_20], %27 {strides = array<i32>} : memref<8x1xf32, #tpu.memory_space<vmem>>, vector<8x1xf32>,
    %c0_21 = arith.constant 0 : index
    %c0_22 = arith.constant 0 : index
    %29 = vector.load %arg10[%c0_21, %c0_22] : memref<8x8xf32, #tpu.memory_space<vmem>>, vector<8x8xf32>
    %30 = vector.broadcast %19 : vector<8x1xf32> to vector<8x8xf32>
    %31 = arith.mulf %30, %29 : vector<8x8xf32>
    %32 = arith.truncf %22 : vector<8x8xf32> to vector<8x8xbf16>
    %cst_23 = arith.constant dense<0.000000e+00> : vector<8x8xf32>
    %33 = tpu.matmul %32, %12, %cst_23 {dimension_numbers = #tpu.dot_dimension_numbers<[1], [0], [0], [1], [0, 0, 1, 1], [], []>} : vector<8x8xbf16>, vector<8x8xbf16>, vector<8x8xf32> -> vector<8x8xf32>
    %34 = arith.addf %31, %33 : vector<8x8xf32>
    %c0_24 = arith.constant 0 : index
    %c0_25 = arith.constant 0 : index
    %35 = vector.load %arg10[%c0_24, %c0_25] : memref<8x8xf32, #tpu.memory_space<vmem>>, vector<8x8xf32>
    tpu.vector_store %arg10[%c0_24, %c0_25], %34 {strides = array<i32>} : memref<8x8xf32, #tpu.memory_space<vmem>>, vector<8x8xf32>,
    %c0_26 = arith.constant 0 : index
    %c0_27 = arith.constant 0 : index
    %36 = vector.load %arg8[%c0_26, %c0_27] : memref<8x1xf32, #tpu.memory_space<vmem>>, vector<8x1xf32>
    tpu.vector_store %arg8[%c0_26, %c0_27], %17 {strides = array<i32>} : memref<8x1xf32, #tpu.memory_space<vmem>>, vector<8x1xf32>,
    %c0_i32_28 = arith.constant 0 : i32
    %37 = arith.cmpi eq, %arg3, %c0_i32_28 : i32
    %38 = arith.extui %37 : i1 to i32
    %c0_i32_29 = arith.constant 0 : i32
    %39 = arith.cmpi ne, %38, %c0_i32_29 : i32
    scf.if %39 {
      %c0_30 = arith.constant 0 : index
      %c0_31 = arith.constant 0 : index
      %40 = vector.load %arg10[%c0_30, %c0_31] : memref<8x8xf32, #tpu.memory_space<vmem>>, vector<8x8xf32>
      %c0_32 = arith.constant 0 : index
      %c0_33 = arith.constant 0 : index
      %41 = vector.load %arg9[%c0_32, %c0_33] : memref<8x1xf32, #tpu.memory_space<vmem>>, vector<8x1xf32>
      %42 = vector.broadcast %41 : vector<8x1xf32> to vector<8x8xf32>
      %43 = arith.divf %40, %42 : vector<8x8xf32>
      %44 = arith.truncf %43 : vector<8x8xf32> to vector<8x8xbf16>
      %c0_34 = arith.constant 0 : index
      %c0_35 = arith.constant 0 : index
      %c0_36 = arith.constant 0 : index
      %c0_37 = arith.constant 0 : index
      %45 = vector.load %arg7[%c0_34, %c0_35, %c0_36, %c0_37] : memref<1x1x8x8xbf16, #tpu.memory_space<vmem>>, vector<1x1x8x8xbf16>
      %46 = vector.shape_cast %45 : vector<1x1x8x8xbf16> to vector<8x8xbf16>
      %47 = vector.shape_cast %44 : vector<8x8xbf16> to vector<1x1x8x8xbf16>
      tpu.vector_store %arg7[%c0_34, %c0_35, %c0_36, %c0_37], %47 {strides = array<i32>} : memref<1x1x8x8xbf16, #tpu.memory_space<vmem>>, vector<1x1x8x8xbf16>,
    } else {
    }
    return
  }
  func.func @transform_0(%arg0: i32, %arg1: i32, %arg2: i32, %arg3: i32) -> (i32, i32, i32, i32) {
    %c0_i32 = arith.constant 0 : i32
    %c0_i32_0 = arith.constant 0 : i32
    return %arg0, %arg1, %arg2, %c0_i32 : i32, i32, i32, i32
  }
  func.func @transform_1(%arg0: i32, %arg1: i32, %arg2: i32, %arg3: i32) -> (i32, i32, i32, i32) {
    %c0_i32 = arith.constant 0 : i32
    %c0_i32_0 = arith.constant 0 : i32
    return %arg0, %arg1, %arg3, %c0_i32 : i32, i32, i32, i32
  }
  func.func @transform_2(%arg0: i32, %arg1: i32, %arg2: i32, %arg3: i32) -> (i32, i32, i32, i32) {
    %c0_i32 = arith.constant 0 : i32
    %c0_i32_0 = arith.constant 0 : i32
    return %arg0, %arg1, %arg3, %c0_i32 : i32, i32, i32, i32
  }
  func.func @transform_3(%arg0: i32, %arg1: i32, %arg2: i32, %arg3: i32) -> (i32, i32, i32, i32) {
    %c0_i32 = arith.constant 0 : i32
    %c0_i32_0 = arith.constant 0 : i32
    return %arg0, %arg1, %arg2, %c0_i32 : i32, i32, i32, i32
  }
}

module attributes {stable_mosaic.version = 11 : i64} {
  func.func @_ffn_add_ln_kernel(%arg0: i32, %arg1: i32, %arg2: memref<16x32xf32, #tpu.memory_space<vmem>>, %arg3: memref<32x64xbf16, #tpu.memory_space<vmem>>, %arg4: memref<1x64xf32, #tpu.memory_space<vmem>>, %arg5: memref<64x32xbf16, #tpu.memory_space<vmem>>, %arg6: memref<1x32xf32, #tpu.memory_space<vmem>>, %arg7: memref<1x32xf32, #tpu.memory_space<vmem>>, %arg8: memref<1x32xf32, #tpu.memory_space<vmem>>, %arg9: memref<16x32xf32, #tpu.memory_space<vmem>>, %arg10: memref<16x32xf32, #tpu.memory_space<vmem>>) attributes {dimension_semantics = [#tpu.dimension_semantics<parallel>, #tpu.dimension_semantics<arbitrary>], iteration_bounds = array<i64: 1, 1>, scalar_prefetch = 0 : i64, scratch_operands = 1 : i64, tpu.core_type = #tpu.core_type<tc>, window_params = [{transform_indices = @transform_0, window_bounds = array<i64: 16, 32>}, {transform_indices = @transform_1, window_bounds = array<i64: 32, 64>}, {transform_indices = @transform_2, window_bounds = array<i64: 1, 64>}, {transform_indices = @transform_3, window_bounds = array<i64: 64, 32>}, {pipeline_mode = #tpu.pipeline_mode<synchronous>, transform_indices = @transform_4, window_bounds = array<i64: 1, 32>}, {pipeline_mode = #tpu.pipeline_mode<synchronous>, transform_indices = @transform_5, window_bounds = array<i64: 1, 32>}, {pipeline_mode = #tpu.pipeline_mode<synchronous>, transform_indices = @transform_6, window_bounds = array<i64: 1, 32>}, {transform_indices = @transform_7, window_bounds = array<i64: 16, 32>}]} {
    %c0_i32 = arith.constant 0 : i32
    %0 = arith.cmpi eq, %arg1, %c0_i32 : i32
    %1 = arith.extui %0 : i1 to i32
    %c0_i32_0 = arith.constant 0 : i32
    %2 = arith.cmpi ne, %1, %c0_i32_0 : i32
    scf.if %2 {
      %cst_16 = arith.constant 0.000000e+00 : f32
      %21 = vector.broadcast %cst_16 : f32 to vector<16x32xf32>
      %c0_17 = arith.constant 0 : index
      %c0_18 = arith.constant 0 : index
      %22 = vector.load %arg10[%c0_17, %c0_18] : memref<16x32xf32, #tpu.memory_space<vmem>>, vector<16x32xf32>
      tpu.vector_store %arg10[%c0_17, %c0_18], %21 {strides = array<i32>} : memref<16x32xf32, #tpu.memory_space<vmem>>, vector<16x32xf32>,
    } else {
    }
    %c0 = arith.constant 0 : index
    %c0_1 = arith.constant 0 : index
    %3 = vector.load %arg2[%c0, %c0_1] : memref<16x32xf32, #tpu.memory_space<vmem>>, vector<16x32xf32>
    %4 = arith.truncf %3 : vector<16x32xf32> to vector<16x32xbf16>
    %c0_2 = arith.constant 0 : index
    %c0_3 = arith.constant 0 : index
    %5 = vector.load %arg3[%c0_2, %c0_3] : memref<32x64xbf16, #tpu.memory_space<vmem>>, vector<32x64xbf16>
    %cst = arith.constant dense<0.000000e+00> : vector<16x64xf32>
    %6 = tpu.matmul %4, %5, %cst {dimension_numbers = #tpu.dot_dimension_numbers<[1], [0], [0], [1], [0, 0, 1, 1], [], []>} : vector<16x32xbf16>, vector<32x64xbf16>, vector<16x64xf32> -> vector<16x64xf32>
    %c0_4 = arith.constant 0 : index
    %c0_5 = arith.constant 0 : index
    %7 = vector.load %arg4[%c0_4, %c0_5] : memref<1x64xf32, #tpu.memory_space<vmem>>, vector<1x64xf32>
    %8 = vector.broadcast %7 : vector<1x64xf32> to vector<16x64xf32>
    %9 = arith.addf %6, %8 : vector<16x64xf32>
    %cst_6 = arith.constant 0.000000e+00 : f32
    %10 = vector.broadcast %cst_6 : f32 to vector<16x64xf32>
    %11 = arith.maximumf %9, %10 : vector<16x64xf32>
    %c0_7 = arith.constant 0 : index
    %c0_8 = arith.constant 0 : index
    %12 = vector.load %arg10[%c0_7, %c0_8] : memref<16x32xf32, #tpu.memory_space<vmem>>, vector<16x32xf32>
    %13 = arith.truncf %11 : vector<16x64xf32> to vector<16x64xbf16>
    %c0_9 = arith.constant 0 : index
    %c0_10 = arith.constant 0 : index
    %14 = vector.load %arg5[%c0_9, %c0_10] : memref<64x32xbf16, #tpu.memory_space<vmem>>, vector<64x32xbf16>
    %cst_11 = arith.constant dense<0.000000e+00> : vector<16x32xf32>
    %15 = tpu.matmul %13, %14, %cst_11 {dimension_numbers = #tpu.dot_dimension_numbers<[1], [0], [0], [1], [0, 0, 1, 1], [], []>} : vector<16x64xbf16>, vector<64x32xbf16>, vector<16x32xf32> -> vector<16x32xf32>
    %16 = arith.addf %12, %15 : vector<16x32xf32>
    %c0_12 = arith.constant 0 : index
    %c0_13 = arith.constant 0 : index
    %17 = vector.load %arg10[%c0_12, %c0_13] : memref<16x32xf32, #tpu.memory_space<vmem>>, vector<16x32xf32>
    tpu.vector_store %arg10[%c0_12, %c0_13], %16 {strides = array<i32>} : memref<16x32xf32, #tpu.memory_space<vmem>>, vector<16x32xf32>,
    %c0_i32_14 = arith.constant 0 : i32
    %18 = arith.cmpi eq, %arg1, %c0_i32_14 : i32
    %19 = arith.extui %18 : i1 to i32
    %c0_i32_15 = arith.constant 0 : i32
    %20 = arith.cmpi ne, %19, %c0_i32_15 : i32
    scf.if %20 {
      %c0_16 = arith.constant 0 : index
      %c0_17 = arith.constant 0 : index
      %21 = vector.load %arg2[%c0_16, %c0_17] : memref<16x32xf32, #tpu.memory_space<vmem>>, vector<16x32xf32>
      %c0_18 = arith.constant 0 : index
      %c0_19 = arith.constant 0 : index
      %22 = vector.load %arg10[%c0_18, %c0_19] : memref<16x32xf32, #tpu.memory_space<vmem>>, vector<16x32xf32>
      %23 = arith.addf %21, %22 : vector<16x32xf32>
      %c0_20 = arith.constant 0 : index
      %c0_21 = arith.constant 0 : index
      %24 = vector.load %arg6[%c0_20, %c0_21] : memref<1x32xf32, #tpu.memory_space<vmem>>, vector<1x32xf32>
      %25 = vector.broadcast %24 : vector<1x32xf32> to vector<16x32xf32>
      %26 = arith.addf %23, %25 : vector<16x32xf32>
      %cst_22 = arith.constant dense<0.000000e+00> : vector<16xf32>
      %27 = vector.multi_reduction <add>, %26, %cst_22 [1] : vector<16x32xf32> to vector<16xf32>
      %28 = vector.shape_cast %27 : vector<16xf32> to vector<16x1xf32>
      %cst_23 = arith.constant 3.200000e+01 : f32
      %29 = vector.broadcast %cst_23 : f32 to vector<16x1xf32>
      %30 = arith.divf %28, %29 : vector<16x1xf32>
      %31 = vector.broadcast %30 : vector<16x1xf32> to vector<16x32xf32>
      %32 = arith.subf %26, %31 : vector<16x32xf32>
      %33 = arith.mulf %32, %32 : vector<16x32xf32>
      %cst_24 = arith.constant dense<0.000000e+00> : vector<16xf32>
      %34 = vector.multi_reduction <add>, %33, %cst_24 [1] : vector<16x32xf32> to vector<16xf32>
      %35 = vector.shape_cast %34 : vector<16xf32> to vector<16x1xf32>
      %cst_25 = arith.constant 3.200000e+01 : f32
      %36 = vector.broadcast %cst_25 : f32 to vector<16x1xf32>
      %37 = arith.divf %35, %36 : vector<16x1xf32>
      %38 = vector.broadcast %30 : vector<16x1xf32> to vector<16x32xf32>
      %39 = arith.subf %26, %38 : vector<16x32xf32>
      %cst_26 = arith.constant 9.99999974E-6 : f32
      %40 = vector.broadcast %cst_26 : f32 to vector<16x1xf32>
      %41 = arith.addf %37, %40 : vector<16x1xf32>
      %42 = math.rsqrt %41 : vector<16x1xf32>
      %43 = vector.broadcast %42 : vector<16x1xf32> to vector<16x32xf32>
      %44 = arith.mulf %39, %43 : vector<16x32xf32>
      %c0_27 = arith.constant 0 : index
      %c0_28 = arith.constant 0 : index
      %45 = vector.load %arg7[%c0_27, %c0_28] : memref<1x32xf32, #tpu.memory_space<vmem>>, vector<1x32xf32>
      %46 = vector.broadcast %45 : vector<1x32xf32> to vector<16x32xf32>
      %47 = arith.mulf %44, %46 : vector<16x32xf32>
      %c0_29 = arith.constant 0 : index
      %c0_30 = arith.constant 0 : index
      %48 = vector.load %arg8[%c0_29, %c0_30] : memref<1x32xf32, #tpu.memory_space<vmem>>, vector<1x32xf32>
      %49 = vector.broadcast %48 : vector<1x32xf32> to vector<16x32xf32>
      %50 = arith.addf %47, %49 : vector<16x32xf32>
      %c0_31 = arith.constant 0 : index
      %c0_32 = arith.constant 0 : index
      %51 = vector.load %arg9[%c0_31, %c0_32] : memref<16x32xf32, #tpu.memory_space<vmem>>, vector<16x32xf32>
      tpu.vector_store %arg9[%c0_31, %c0_32], %50 {strides = array<i32>} : memref<16x32xf32, #tpu.memory_space<vmem>>, vector<16x32xf32>,
    } else {
    }
    return
  }
  func.func @transform_0(%arg0: i32, %arg1: i32) -> (i32, i32) {
    %c0_i32 = arith.constant 0 : i32
    %c0_i32_0 = arith.constant 0 : i32
    return %arg0, %c0_i32 : i32, i32
  }
  func.func @transform_1(%arg0: i32, %arg1: i32) -> (i32, i32) {
    %c0_i32 = arith.constant 0 : i32
    %c0_i32_0 = arith.constant 0 : i32
    return %c0_i32, %arg1 : i32, i32
  }
  func.func @transform_2(%arg0: i32, %arg1: i32) -> (i32, i32) {
    %c0_i32 = arith.constant 0 : i32
    %c0_i32_0 = arith.constant 0 : i32
    return %c0_i32, %arg1 : i32, i32
  }
  func.func @transform_3(%arg0: i32, %arg1: i32) -> (i32, i32) {
    %c0_i32 = arith.constant 0 : i32
    %c0_i32_0 = arith.constant 0 : i32
    return %arg1, %c0_i32 : i32, i32
  }
  func.func @transform_4(%arg0: i32, %arg1: i32) -> (i32, i32) {
    %c0_i32 = arith.constant 0 : i32
    %c0_i32_0 = arith.constant 0 : i32
    %c0_i32_1 = arith.constant 0 : i32
    return %c0_i32, %c0_i32_0 : i32, i32
  }
  func.func @transform_5(%arg0: i32, %arg1: i32) -> (i32, i32) {
    %c0_i32 = arith.constant 0 : i32
    %c0_i32_0 = arith.constant 0 : i32
    %c0_i32_1 = arith.constant 0 : i32
    return %c0_i32, %c0_i32_0 : i32, i32
  }
  func.func @transform_6(%arg0: i32, %arg1: i32) -> (i32, i32) {
    %c0_i32 = arith.constant 0 : i32
    %c0_i32_0 = arith.constant 0 : i32
    %c0_i32_1 = arith.constant 0 : i32
    return %c0_i32, %c0_i32_0 : i32, i32
  }
  func.func @transform_7(%arg0: i32, %arg1: i32) -> (i32, i32) {
    %c0_i32 = arith.constant 0 : i32
    %c0_i32_0 = arith.constant 0 : i32
    return %arg0, %c0_i32 : i32, i32
  }
}

</mosaic_0001>

<llo_original>
// kernel: decoder_layer_forward.8
$region0: #{decoder_layer_forward.8}
  #allocation0 [shape = 'u32[]', space=smem, size = 0x4, offset = 0x4, fixed_abs, tag = 'smem constant byte address 0x4 - core index']
  #allocation1 [shape = 'u32[144,128]{1,0:T(1,128)}', space=vmem, size = 0x12000, scoped, tag = 'internal scratch']
  #allocation2 [shape = 'f32[16,96]{1,0:T(8,128)}', space=vmem, size = 0x2000, scoped, tag = 'scratch operand']
  %s0 = inlined_call_operand.vmem [shape: f32[16,32], index: 0, kind: input, shape index: {}]
  %s1 = inlined_call_operand.vmem [shape: bf16[32,96], index: 1, kind: input, shape index: {}]
  %s2 = inlined_call_operand.vmem [shape: f32[1,96], index: 2, kind: input, shape index: {}]
  %s3 = inlined_call_operand.vmem [shape: bf16[16,96], index: 3, kind: output, shape index: {}]
  %s4 = sld [smem:[#allocation0]]
  $region30: #{decoder_layer_forward.8} parent=0
    _
  %s6 = ssub.s32 1, %s4
  %s7 = scalar_select 0, %s6, %s4
  // Predicated region
  $region2: #{decoder_layer_forward.8} parent=0 // pred_check
    _
  $region3: #{decoder_layer_forward.8} parent=0 // pred_check_branch
    %9 = sbr.rel (0) target = $region5
  $region4: #{decoder_layer_forward.8} parent=0 // pred_region
    _
  $region5: #{decoder_layer_forward.8} parent=0 // pred_fallthru
    _
  // Predicated region
  $region6: #{decoder_layer_forward.8} parent=0 // pred_check
    _
  $region7: #{decoder_layer_forward.8} parent=0 // pred_check_branch
    %11 = sbr.rel (0) target = $region9
  $region8: #{decoder_layer_forward.8} parent=0 // pred_region
    _
  $region9: #{decoder_layer_forward.8} parent=0 // pred_fallthru
    _
  // Predicated region
  $region10: #{decoder_layer_forward.8} parent=0 // pred_check
    _
  $region11: #{decoder_layer_forward.8} parent=0 // pred_check_branch
    %13 = sbr.rel (0) target = $region13
  $region12: #{decoder_layer_forward.8} parent=0 // pred_region
    _
  $region13: #{decoder_layer_forward.8} parent=0 // pred_fallthru
    _
  %p15 = scmp.eq.s32.totalorder 0, 0
  // Predicated region
  $region14: #{decoder_layer_forward.8} parent=0 // pred_check
    %p16 = pneg %p15
  $region15: #{decoder_layer_forward.8} parent=0 // pred_check_branch
    %18 = sbr.rel (%p16) target = $region17
  $region16: #{decoder_layer_forward.8} parent=0 // pred_region
    %vm19 = vcmask 785408
    %20 = vst.msk [vmem:[#allocation2] sm:$0xff] %vm19, 0.0
    %21 = vst.msk [vmem:[#allocation2 + $0x8] sm:$0xff] %vm19, 0.0
  $region17: #{decoder_layer_forward.8} parent=0 // pred_fallthru
    _
  %v22 = vld [vmem:[#allocation2] sm:$0xff]
  %v23 = vld [vmem:[#allocation2 + $0x8] sm:$0xff]
  %v24 = vld [vmem:[%s0] sm:$0xff]
  %v25 = vld [vmem:[%s0 + $0x8] sm:$0xff]
  %v26 = vpack.c.bf16 %v25, %v24
  %v27 = vld [vmem:[%s1] sm:$0xf]
  %v28 = vld [vmem:[%s1 + $0x4] sm:$0xf]
  %v29 = vld [vmem:[%s1 + $0x8] sm:$0xf]
  %v30 = vld [vmem:[%s1 + $0xc] sm:$0xf]
  %v35 = vunpack.c.l.b16 %v27
  %v36 = vunpack.c.l.b16 %v28
  %v37 = vunpack.c.l.b16 %v29
  %v38 = vunpack.c.l.b16 %v30
  %v39 = vpack.c.b16 %v36, %v35
  %v40 = vpack.c.b16 %v38, %v37
  %vm43 = vcmask 261120
  %v45 = vsel %vm43, %v26, 0
  %47 = vmatprep.subr.bf16.mxu0 0
  %48 = vmatpush1.bf16.msra.mxu0 %v39
  %49 = vmatprep.subr.bf16.mxu0 0
  %50 = vmatpush1.bf16.msra.mxu0 %v40
  %51 = vmatprep.subr.bf16.mxu0 0
  %52 = vmatpush1.bf16.msra.mxu0 0
  %53 = vmatprep.subr.bf16.mxu0 0
  %54 = vmatpush1.bf16.msra.mxu0 0
  %55 = vmatprep.subr.bf16.mxu0 0
  %56 = vmatpush1.bf16.msra.mxu0 0
  %57 = vmatprep.subr.bf16.mxu0 0
  %58 = vmatpush1.bf16.msra.mxu0 0
  %59 = vmatprep.subr.bf16.mxu0 0
  %60 = vmatpush1.bf16.msra.mxu0 0
  %61 = vmatprep.subr.bf16.mxu0 0
  %62 = vmatpush1.bf16.msra.mxu0 0
  %63 = vmatprep.subr.bf16.mxu0 0
  %64 = vmatpush1.bf16.msra.mxu0 0
  %65 = vmatprep.subr.bf16.mxu0 0
  %66 = vmatpush1.bf16.msra.mxu0 0
  %67 = vmatprep.subr.bf16.mxu0 0
  %68 = vmatpush1.bf16.msra.mxu0 0
  %69 = vmatprep.subr.bf16.mxu0 0
  %70 = vmatpush1.bf16.msra.mxu0 0
  %71 = vmatprep.subr.bf16.mxu0 0
  %72 = vmatpush1.bf16.msra.mxu0 0
  %73 = vmatprep.subr.bf16.mxu0 0
  %74 = vmatpush1.bf16.msra.mxu0 0
  %75 = vmatprep.subr.bf16.mxu0 0
  %76 = vmatpush1.bf16.msra.mxu0 0
  %77 = vmatprep.subr.bf16.mxu0 0
  %78 = vmatpush1.bf16.msra.mxu0 0
  %79 = vmatprep.mubr.bf16.mxu0 0
  %80 = vmatmul.mubr.bf16.gmra.mrb[0].mxu0 %v45
  %v81 = vpop.f32.mrb[0].mxu0
  %v82 = vadd.f32 0.0, %v81
  %v83 = vpop.f32.mrb[0].mxu0
  %v84 = vpop.f32.mrb[0].mxu0
  %v85 = vadd.f32 0.0, %v84
  %v86 = vpop.f32.mrb[0].mxu0
  %87 = vdwg.mxu0
  %v88 = vadd.f32 %v22, %v82
  %v89 = vadd.f32 %v23, %v85
  %vm90 = vcmask 785408
  %91 = vst.msk [vmem:[#allocation2] sm:$0xff] %vm90, %v88
  %92 = vst.msk [vmem:[#allocation2 + $0x8] sm:$0xff] %vm90, %v89
  // Predicated region
  $region18: #{decoder_layer_forward.8} parent=0 // pred_check
    %p93 = pneg %p15
  $region19: #{decoder_layer_forward.8} parent=0 // pred_check_branch
    %95 = sbr.rel (%p93) target = $region21
  $region20: #{decoder_layer_forward.8} parent=0 // pred_region
    %v96 = vld [vmem:[#allocation2] sm:$0xff]
    %v97 = vld [vmem:[#allocation2 + $0x8] sm:$0xff]
    %v98 = vld [vmem:[%s2] sm:$0x1]
    %v100 = vlaneseq
    %v101 = vshrl.u32 %v100, 7
    %v102 = vsub.s32 0, %v101
    %v103 = vrot.slane %v98, %v102
    %v105 = vadd.f32 %v96, %v103
    %v106 = vadd.f32 %v97, %v103
    %v107 = vpack.c.bf16 %v106, %v105
    %v109 = vunpack.c.l.b16 %v107
    %v110 = vunpack.c.h.b16 %v107
    %v111 = vpack.c.b16 %v109, %v109
    %v112 = vpack.c.b16 %v110, %v110
    %vm115 = vcmask 781312
    %116 = vst.msk [vmem:[%s3] sm:$0xf] %vm115, %v111
    %117 = vst.msk [vmem:[%s3 + $0x4] sm:$0xf] %vm115, %v112
  $region21: #{decoder_layer_forward.8} parent=0 // pred_fallthru
    _
  // Predicated region
  $region22: #{decoder_layer_forward.8} parent=0 // pred_check
    _
  $region23: #{decoder_layer_forward.8} parent=0 // pred_check_branch
    %119 = sbr.rel (0) target = $region25
  $region24: #{decoder_layer_forward.8} parent=0 // pred_region
    _
  $region25: #{decoder_layer_forward.8} parent=0 // pred_fallthru
    _
  // Predicated region
  $region26: #{decoder_layer_forward.8} parent=0 // pred_check
    _
  $region27: #{decoder_layer_forward.8} parent=0 // pred_check_branch
    %121 = sbr.rel (0) target = $region29
  $region28: #{decoder_layer_forward.8} parent=0 // pred_region
    _
  $region29: #{decoder_layer_forward.8} parent=0 // pred_fallthru
    _

// kernel: decoder_layer_forward.11
$region0: #{decoder_layer_forward.11}
  #allocation0 [shape = 'u32[]', space=smem, size = 0x4, offset = 0x4, fixed_abs, tag = 'smem constant byte address 0x4 - core index']
  #allocation1 [shape = 'u32[144,128]{1,0:T(1,128)}', space=vmem, size = 0x12000, scoped, tag = 'internal scratch']
  #allocation2 [shape = 'f32[16,32]{1,0:T(8,128)}', space=vmem, size = 0x2000, scoped, tag = 'scratch operand']
  %s0 = inlined_call_operand.vmem [shape: f32[16,32], index: 0, kind: input, shape index: {}]
  %s1 = inlined_call_operand.vmem [shape: bf16[32,32], index: 1, kind: input, shape index: {}]
  %s2 = inlined_call_operand.vmem [shape: f32[1,32], index: 2, kind: input, shape index: {}]
  %s3 = inlined_call_operand.vmem [shape: bf16[16,32], index: 3, kind: output, shape index: {}]
  %s4 = sld [smem:[#allocation0]]
  $region30: #{decoder_layer_forward.11} parent=0
    _
  %s6 = ssub.s32 1, %s4
  %s7 = scalar_select 0, %s6, %s4
  // Predicated region
  $region2: #{decoder_layer_forward.11} parent=0 // pred_check
    _
  $region3: #{decoder_layer_forward.11} parent=0 // pred_check_branch
    %9 = sbr.rel (0) target = $region5
  $region4: #{decoder_layer_forward.11} parent=0 // pred_region
    _
  $region5: #{decoder_layer_forward.11} parent=0 // pred_fallthru
    _
  // Predicated region
  $region6: #{decoder_layer_forward.11} parent=0 // pred_check
    _
  $region7: #{decoder_layer_forward.11} parent=0 // pred_check_branch
    %11 = sbr.rel (0) target = $region9
  $region8: #{decoder_layer_forward.11} parent=0 // pred_region
    _
  $region9: #{decoder_layer_forward.11} parent=0 // pred_fallthru
    _
  // Predicated region
  $region10: #{decoder_layer_forward.11} parent=0 // pred_check
    _
  $region11: #{decoder_layer_forward.11} parent=0 // pred_check_branch
    %13 = sbr.rel (0) target = $region13
  $region12: #{decoder_layer_forward.11} parent=0 // pred_region
    _
  $region13: #{decoder_layer_forward.11} parent=0 // pred_fallthru
    _
  %p15 = scmp.eq.s32.totalorder 0, 0
  // Predicated region
  $region14: #{decoder_layer_forward.11} parent=0 // pred_check
    %p16 = pneg %p15
  $region15: #{decoder_layer_forward.11} parent=0 // pred_check_branch
    %18 = sbr.rel (%p16) target = $region17
  $region16: #{decoder_layer_forward.11} parent=0 // pred_region
    %vm19 = vcmask 261120
    %20 = vst.msk [vmem:[#allocation2] sm:$0xff] %vm19, 0.0
    %21 = vst.msk [vmem:[#allocation2 + $0x8] sm:$0xff] %vm19, 0.0
  $region17: #{decoder_layer_forward.11} parent=0 // pred_fallthru
    _
  %v22 = vld [vmem:[#allocation2] sm:$0xff]
  %v23 = vld [vmem:[#allocation2 + $0x8] sm:$0xff]
  %v24 = vld [vmem:[%s0] sm:$0xff]
  %v25 = vld [vmem:[%s0 + $0x8] sm:$0xff]
  %v26 = vpack.c.bf16 %v25, %v24
  %v27 = vld [vmem:[%s1] sm:$0xf]
  %v28 = vld [vmem:[%s1 + $0x4] sm:$0xf]
  %v29 = vld [vmem:[%s1 + $0x8] sm:$0xf]
  %v30 = vld [vmem:[%s1 + $0xc] sm:$0xf]
  %v35 = vunpack.c.l.b16 %v27
  %v36 = vunpack.c.l.b16 %v28
  %v37 = vunpack.c.l.b16 %v29
  %v38 = vunpack.c.l.b16 %v30
  %v39 = vpack.c.b16 %v36, %v35
  %v40 = vpack.c.b16 %v38, %v37
  %vm43 = vcmask 261120
  %v45 = vsel %vm43, %v26, 0
  %47 = vmatprep.subr.bf16.mxu0 0
  %48 = vmatpush1.bf16.msra.mxu0 %v39
  %49 = vmatprep.subr.bf16.mxu0 0
  %50 = vmatpush1.bf16.msra.mxu0 %v40
  %51 = vmatprep.subr.bf16.mxu0 0
  %52 = vmatpush1.bf16.msra.mxu0 0
  %53 = vmatprep.subr.bf16.mxu0 0
  %54 = vmatpush1.bf16.msra.mxu0 0
  %55 = vmatprep.subr.bf16.mxu0 0
  %56 = vmatpush1.bf16.msra.mxu0 0
  %57 = vmatprep.subr.bf16.mxu0 0
  %58 = vmatpush1.bf16.msra.mxu0 0
  %59 = vmatprep.subr.bf16.mxu0 0
  %60 = vmatpush1.bf16.msra.mxu0 0
  %61 = vmatprep.subr.bf16.mxu0 0
  %62 = vmatpush1.bf16.msra.mxu0 0
  %63 = vmatprep.subr.bf16.mxu0 0
  %64 = vmatpush1.bf16.msra.mxu0 0
  %65 = vmatprep.subr.bf16.mxu0 0
  %66 = vmatpush1.bf16.msra.mxu0 0
  %67 = vmatprep.subr.bf16.mxu0 0
  %68 = vmatpush1.bf16.msra.mxu0 0
  %69 = vmatprep.subr.bf16.mxu0 0
  %70 = vmatpush1.bf16.msra.mxu0 0
  %71 = vmatprep.subr.bf16.mxu0 0
  %72 = vmatpush1.bf16.msra.mxu0 0
  %73 = vmatprep.subr.bf16.mxu0 0
  %74 = vmatpush1.bf16.msra.mxu0 0
  %75 = vmatprep.subr.bf16.mxu0 0
  %76 = vmatpush1.bf16.msra.mxu0 0
  %77 = vmatprep.subr.bf16.mxu0 0
  %78 = vmatpush1.bf16.msra.mxu0 0
  %79 = vmatprep.mubr.bf16.mxu0 0
  %80 = vmatmul.mubr.bf16.gmra.mrb[0].mxu0 %v45
  %v81 = vpop.f32.mrb[0].mxu0
  %v82 = vadd.f32 0.0, %v81
  %v83 = vpop.f32.mrb[0].mxu0
  %v84 = vpop.f32.mrb[0].mxu0
  %v85 = vadd.f32 0.0, %v84
  %v86 = vpop.f32.mrb[0].mxu0
  %87 = vdwg.mxu0
  %v88 = vadd.f32 %v22, %v82
  %v89 = vadd.f32 %v23, %v85
  %90 = vst.msk [vmem:[#allocation2] sm:$0xff] %vm43, %v88
  %91 = vst.msk [vmem:[#allocation2 + $0x8] sm:$0xff] %vm43, %v89
  // Predicated region
  $region18: #{decoder_layer_forward.11} parent=0 // pred_check
    %p92 = pneg %p15
  $region19: #{decoder_layer_forward.11} parent=0 // pred_check_branch
    %94 = sbr.rel (%p92) target = $region21
  $region20: #{decoder_layer_forward.11} parent=0 // pred_region
    %v95 = vld [vmem:[#allocation2] sm:$0xff]
    %v96 = vld [vmem:[#allocation2 + $0x8] sm:$0xff]
    %v97 = vld [vmem:[%s2] sm:$0x1]
    %v99 = vlaneseq
    %v100 = vshrl.u32 %v99, 7
    %v101 = vsub.s32 0, %v100
    %v102 = vrot.slane %v97, %v101
    %v104 = vadd.f32 %v95, %v102
    %v105 = vadd.f32 %v96, %v102
    %v106 = vpack.c.bf16 %v105, %v104
    %v108 = vunpack.c.l.b16 %v106
    %v109 = vunpack.c.h.b16 %v106
    %v110 = vpack.c.b16 %v108, %v108
    %v111 = vpack.c.b16 %v109, %v109
    %vm114 = vcmask 257024
    %115 = vst.msk [vmem:[%s3] sm:$0xf] %vm114, %v110
    %116 = vst.msk [vmem:[%s3 + $0x4] sm:$0xf] %vm114, %v111
  $region21: #{decoder_layer_forward.11} parent=0 // pred_fallthru
    _
  // Predicated region
  $region22: #{decoder_layer_forward.11} parent=0 // pred_check
    _
  $region23: #{decoder_layer_forward.11} parent=0 // pred_check_branch
    %118 = sbr.rel (0) target = $region25
  $region24: #{decoder_layer_forward.11} parent=0 // pred_region
    _
  $region25: #{decoder_layer_forward.11} parent=0 // pred_fallthru
    _
  // Predicated region
  $region26: #{decoder_layer_forward.11} parent=0 // pred_check
    _
  $region27: #{decoder_layer_forward.11} parent=0 // pred_check_branch
    %120 = sbr.rel (0) target = $region29
  $region28: #{decoder_layer_forward.11} parent=0 // pred_region
    _
  $region29: #{decoder_layer_forward.11} parent=0 // pred_fallthru
    _

// kernel: decoder_layer_forward.10
$region0: #{decoder_layer_forward.10}
  #allocation0 [shape = 'u32[]', space=smem, size = 0x4, offset = 0x4, fixed_abs, tag = 'smem constant byte address 0x4 - core index']
  #allocation1 [shape = 'u32[144,128]{1,0:T(1,128)}', space=vmem, size = 0x12000, scoped, tag = 'internal scratch']
  #allocation2 [shape = 'f32[16,32]{1,0:T(8,128)}', space=vmem, size = 0x2000, scoped, tag = 'scratch operand']
  %s0 = inlined_call_operand.vmem [shape: bf16[16,32], index: 0, kind: input, shape index: {}]
  %s1 = inlined_call_operand.vmem [shape: bf16[32,32], index: 1, kind: input, shape index: {}]
  %s2 = inlined_call_operand.vmem [shape: f32[1,32], index: 2, kind: input, shape index: {}]
  %s3 = inlined_call_operand.vmem [shape: f32[16,32], index: 3, kind: input, shape index: {}, may-alias: {3,6}]
  %s4 = inlined_call_operand.vmem [shape: f32[1,32], index: 4, kind: input, shape index: {}]
  %s5 = inlined_call_operand.vmem [shape: f32[1,32], index: 5, kind: input, shape index: {}]
  %s6 = inlined_call_operand.vmem [shape: f32[16,32], index: 6, kind: output, shape index: {}, may-alias: {3,6}]
  %s7 = sld [smem:[#allocation0]]
  $region42: #{decoder_layer_forward.10} parent=0
    _
  %s9 = ssub.s32 1, %s7
  %s10 = scalar_select 0, %s9, %s7
  // Predicated region
  $region2: #{decoder_layer_forward.10} parent=0 // pred_check
    _
  $region3: #{decoder_layer_forward.10} parent=0 // pred_check_branch
    %12 = sbr.rel (0) target = $region5
  $region4: #{decoder_layer_forward.10} parent=0 // pred_region
    _
  $region5: #{decoder_layer_forward.10} parent=0 // pred_fallthru
    _
  // Predicated region
  $region6: #{decoder_layer_forward.10} parent=0 // pred_check
    _
  $region7: #{decoder_layer_forward.10} parent=0 // pred_check_branch
    %14 = sbr.rel (0) target = $region9
  $region8: #{decoder_layer_forward.10} parent=0 // pred_region
    _
  $region9: #{decoder_layer_forward.10} parent=0 // pred_fallthru
    _
  // Predicated region
  $region10: #{decoder_layer_forward.10} parent=0 // pred_check
    _
  $region11: #{decoder_layer_forward.10} parent=0 // pred_check_branch
    %16 = sbr.rel (0) target = $region13
  $region12: #{decoder_layer_forward.10} parent=0 // pred_region
    _
  $region13: #{decoder_layer_forward.10} parent=0 // pred_fallthru
    _
  // Predicated region
  $region14: #{decoder_layer_forward.10} parent=0 // pred_check
    _
  $region15: #{decoder_layer_forward.10} parent=0 // pred_check_branch
    %18 = sbr.rel (0) target = $region17
  $region16: #{decoder_layer_forward.10} parent=0 // pred_region
    _
  $region17: #{decoder_layer_forward.10} parent=0 // pred_fallthru
    _
  // Predicated region
  $region18: #{decoder_layer_forward.10} parent=0 // pred_check
    _
  $region19: #{decoder_layer_forward.10} parent=0 // pred_check_branch
    %20 = sbr.rel (0) target = $region21
  $region20: #{decoder_layer_forward.10} parent=0 // pred_region
    _
  $region21: #{decoder_layer_forward.10} parent=0 // pred_fallthru
    _
  // Predicated region
  $region22: #{decoder_layer_forward.10} parent=0 // pred_check
    _
  $region23: #{decoder_layer_forward.10} parent=0 // pred_check_branch
    %22 = sbr.rel (0) target = $region25
  $region24: #{decoder_layer_forward.10} parent=0 // pred_region
    _
  $region25: #{decoder_layer_forward.10} parent=0 // pred_fallthru
    _
  %p24 = scmp.eq.s32.totalorder 0, 0
  // Predicated region
  $region26: #{decoder_layer_forward.10} parent=0 // pred_check
    %p25 = pneg %p24
  $region27: #{decoder_layer_forward.10} parent=0 // pred_check_branch
    %27 = sbr.rel (%p25) target = $region29
  $region28: #{decoder_layer_forward.10} parent=0 // pred_region
    %vm28 = vcmask 261120
    %29 = vst.msk [vmem:[#allocation2] sm:$0xff] %vm28, 0.0
    %30 = vst.msk [vmem:[#allocation2 + $0x8] sm:$0xff] %vm28, 0.0
  $region29: #{decoder_layer_forward.10} parent=0 // pred_fallthru
    _
  %v31 = vld [vmem:[#allocation2] sm:$0xff]
  %v32 = vld [vmem:[#allocation2 + $0x8] sm:$0xff]
  %v33 = vld [vmem:[%s0] sm:$0xf]
  %v34 = vld [vmem:[%s0 + $0x4] sm:$0xf]
  %v35 = vld [vmem:[%s1] sm:$0xf]
  %v36 = vld [vmem:[%s1 + $0x4] sm:$0xf]
  %v37 = vld [vmem:[%s1 + $0x8] sm:$0xf]
  %v38 = vld [vmem:[%s1 + $0xc] sm:$0xf]
  %v41 = vunpack.c.l.b16 %v33
  %v42 = vunpack.c.l.b16 %v34
  %v43 = vpack.c.b16 %v42, %v41
  %v48 = vunpack.c.l.b16 %v35
  %v49 = vunpack.c.l.b16 %v36
  %v50 = vunpack.c.l.b16 %v37
  %v51 = vunpack.c.l.b16 %v38
  %v52 = vpack.c.b16 %v49, %v48
  %v53 = vpack.c.b16 %v51, %v50
  %vm56 = vcmask 261120
  %v58 = vsel %vm56, %v43, 0
  %60 = vmatprep.subr.bf16.mxu0 0
  %61 = vmatpush1.bf16.msra.mxu0 %v52
  %62 = vmatprep.subr.bf16.mxu0 0
  %63 = vmatpush1.bf16.msra.mxu0 %v53
  %64 = vmatprep.subr.bf16.mxu0 0
  %65 = vmatpush1.bf16.msra.mxu0 0
  %66 = vmatprep.subr.bf16.mxu0 0
  %67 = vmatpush1.bf16.msra.mxu0 0
  %68 = vmatprep.subr.bf16.mxu0 0
  %69 = vmatpush1.bf16.msra.mxu0 0
  %70 = vmatprep.subr.bf16.mxu0 0
  %71 = vmatpush1.bf16.msra.mxu0 0
  %72 = vmatprep.subr.bf16.mxu0 0
  %73 = vmatpush1.bf16.msra.mxu0 0
  %74 = vmatprep.subr.bf16.mxu0 0
  %75 = vmatpush1.bf16.msra.mxu0 0
  %76 = vmatprep.subr.bf16.mxu0 0
  %77 = vmatpush1.bf16.msra.mxu0 0
  %78 = vmatprep.subr.bf16.mxu0 0
  %79 = vmatpush1.bf16.msra.mxu0 0
  %80 = vmatprep.subr.bf16.mxu0 0
  %81 = vmatpush1.bf16.msra.mxu0 0
  %82 = vmatprep.subr.bf16.mxu0 0
  %83 = vmatpush1.bf16.msra.mxu0 0
  %84 = vmatprep.subr.bf16.mxu0 0
  %85 = vmatpush1.bf16.msra.mxu0 0
  %86 = vmatprep.subr.bf16.mxu0 0
  %87 = vmatpush1.bf16.msra.mxu0 0
  %88 = vmatprep.subr.bf16.mxu0 0
  %89 = vmatpush1.bf16.msra.mxu0 0
  %90 = vmatprep.subr.bf16.mxu0 0
  %91 = vmatpush1.bf16.msra.mxu0 0
  %92 = vmatprep.mubr.bf16.mxu0 0
  %93 = vmatmul.mubr.bf16.gmra.mrb[0].mxu0 %v58
  %v94 = vpop.f32.mrb[0].mxu0
  %v95 = vadd.f32 0.0, %v94
  %v96 = vpop.f32.mrb[0].mxu0
  %v97 = vpop.f32.mrb[0].mxu0
  %v98 = vadd.f32 0.0, %v97
  %v99 = vpop.f32.mrb[0].mxu0
  %100 = vdwg.mxu0
  %v101 = vadd.f32 %v31, %v95
  %v102 = vadd.f32 %v32, %v98
  %103 = vst.msk [vmem:[#allocation2] sm:$0xff] %vm56, %v101
  %104 = vst.msk [vmem:[#allocation2 + $0x8] sm:$0xff] %vm56, %v102
  // Predicated region
  $region30: #{decoder_layer_forward.10} parent=0 // pred_check
    %p105 = pneg %p24
  $region31: #{decoder_layer_forward.10} parent=0 // pred_check_branch
    %107 = sbr.rel (%p105) target = $region33
  $region32: #{decoder_layer_forward.10} parent=0 // pred_region
    %v108 = vld [vmem:[%s3] sm:$0xff]
    %v109 = vld [vmem:[%s3 + $0x8] sm:$0xff]
    %v110 = vld [vmem:[#allocation2] sm:$0xff]
    %v111 = vld [vmem:[#allocation2 + $0x8] sm:$0xff]
    %v112 = vadd.f32 %v108, %v110
    %v113 = vadd.f32 %v109, %v111
    %v114 = vld [vmem:[%s2] sm:$0x1]
    %v116 = vlaneseq
    %v117 = vshrl.u32 %v116, 7
    %v118 = vsub.s32 0, %v117
    %v119 = vrot.slane %v114, %v118
    %v121 = vadd.f32 %v112, %v119
    %v122 = vadd.f32 %v113, %v119
    %v123 = vsel %vm56, %v121, 0.0
    %124 = vadd.xlane.f32.xlu0 %v123
    %v125 = vpop.xlane.xlu0 %124
    %v126 = vsel %vm56, %v122, 0.0
    %127 = vadd.xlane.f32.xlu0 %v126
    %v128 = vpop.xlane.xlu0 %127
    %v129 = vrcp.pop 32.0
    %v130 = vmul.f32 %v125, %v129
    %v131 = vmul.f32 %v128, %v129
    %v132 = vsub.f32 %v121, %v130
    %v133 = vsub.f32 %v122, %v131
    %v134 = vmul.f32 %v132, %v132
    %v135 = vmul.f32 %v133, %v133
    %v136 = vsel %vm56, %v134, 0.0
    %137 = vadd.xlane.f32.xlu0 %v136
    %v138 = vpop.xlane.xlu0 %137
    %v139 = vsel %vm56, %v135, 0.0
    %140 = vadd.xlane.f32.xlu0 %v139
    %v141 = vpop.xlane.xlu0 %140
    %v142 = vmul.f32 %v138, %v129
    %v143 = vmul.f32 %v141, %v129
    %v144 = vadd.f32 %v142, 1e-05
    %v145 = vadd.f32 %v143, 1e-05
    %v146 = vrsqrt.pop %v144
    %v147 = vrsqrt.pop %v145
    %v148 = vmul.f32 %v132, %v146
    %v149 = vmul.f32 %v133, %v147
    %v150 = vld [vmem:[%s4] sm:$0x1]
    %v152 = vlaneseq
    %v153 = vshrl.u32 %v152, 7
    %v154 = vsub.s32 0, %v153
    %v155 = vrot.slane %v150, %v154
    %v157 = vmul.f32 %v148, %v155
    %v158 = vmul.f32 %v149, %v155
    %v159 = vld [vmem:[%s5] sm:$0x1]
    %v161 = vlaneseq
    %v162 = vshrl.u32 %v161, 7
    %v163 = vsub.s32 0, %v162
    %v164 = vrot.slane %v159, %v163
    %v166 = vadd.f32 %v157, %v164
    %v167 = vadd.f32 %v158, %v164
    %168 = vst.msk [vmem:[%s6] sm:$0xff] %vm56, %v166
    %169 = vst.msk [vmem:[%s6 + $0x8] sm:$0xff] %vm56, %v167
  $region33: #{decoder_layer_forward.10} parent=0 // pred_fallthru
    _
  // Predicated region
  $region34: #{decoder_layer_forward.10} parent=0 // pred_check
    _
  $region35: #{decoder_layer_forward.10} parent=0 // pred_check_branch
    %171 = sbr.rel (0) target = $region37
  $region36: #{decoder_layer_forward.10} parent=0 // pred_region
    _
  $region37: #{decoder_layer_forward.10} parent=0 // pred_fallthru
    _
  // Predicated region
  $region38: #{decoder_layer_forward.10} parent=0 // pred_check
    _
  $region39: #{decoder_layer_forward.10} parent=0 // pred_check_branch
    %173 = sbr.rel (0) target = $region41
  $region40: #{decoder_layer_forward.10} parent=0 // pred_region
    _
  $region41: #{decoder_layer_forward.10} parent=0 // pred_fallthru
    _

// kernel: decoder_layer_forward.9
$region0: #{decoder_layer_forward.9}
  #allocation0 [shape = 'u32[]', space=smem, size = 0x4, offset = 0x4, fixed_abs, tag = 'smem constant byte address 0x4 - core index']
  #allocation1 [shape = 'u32[144,128]{1,0:T(1,128)}', space=vmem, size = 0x12000, scoped, tag = 'internal scratch']
  #allocation2 [shape = 'f32[8,1]{1,0:T(8,128)}', space=vmem, size = 0x1000, scoped, tag = 'scratch operand']
  #allocation3 [shape = 'f32[8,1]{1,0:T(8,128)}', space=vmem, size = 0x1000, scoped, tag = 'scratch operand']
  #allocation4 [shape = 'f32[8,8]{1,0:T(8,128)}', space=vmem, size = 0x1000, scoped, tag = 'scratch operand']
  %s0 = inlined_call_operand.vmem [shape: bf16[2,4,8,8], index: 0, kind: input, shape index: {}]
  %s1 = inlined_call_operand.vmem [shape: bf16[2,4,8,8], index: 1, kind: input, shape index: {}]
  %s2 = inlined_call_operand.vmem [shape: bf16[2,4,8,8], index: 2, kind: input, shape index: {}]
  %s3 = inlined_call_operand.vmem [shape: bf16[2,4,8,8], index: 3, kind: output, shape index: {}]
  %s4 = sld [smem:[#allocation0]]
  $region53: #{decoder_layer_forward.9} parent=0
    _
  %s6 = ssub.s32 1, %s4
  %s7 = scalar_select 0, %s6, %s4
  loop: start=0, step=1, limit=10
  $region2: #{decoder_layer_forward.9} parent=0 // loop_pre_header
    _
  $region3: #{decoder_layer_forward.9} parent=0 // loop_header
    %s9 = sphi 0, %s13
    %p10 = scmp.ge.s32.totalorder %s9, 10
    %s16 = sphi 0, %s42
    %s17 = sphi 0, %s38
    %s18 = sphi 0, %s34
    %s19 = sphi 0, %s30
    %s20 = sphi 0, %s16
    %s21 = sphi 0, %s17
    %s22 = sphi 0, %s18
    %s23 = sphi 0, %s19
    %s24 = sphi 0, %s20
    %s25 = sphi 0, %s21
    %s26 = sphi 0, %s22
    %s27 = sphi 0, %s23
    %s49 = sphi 0, %s51
    %s52 = sphi 0, %s49
    %s53 = sphi 0, %s52
    %s69 = sphi 0, %s53
    %s79 = sphi 0, %s81
    %s82 = sphi 0, %s79
    %s83 = sphi 0, %s82
    %s99 = sphi 0, %s83
    %s109 = sphi 0, %s111
    %s112 = sphi 0, %s109
    %s113 = sphi 0, %s112
    %s129 = sphi 0, %s113
    %s139 = sphi 0, %s141
    %s142 = sphi 0, %s139
    %s143 = sphi 0, %s142
    %s159 = sphi 0, %s143
  $region4: #{decoder_layer_forward.9} parent=0 // loop_header_branch
    %12 = sbr.rel (%p10) target = $region8
  $region5: #{decoder_layer_forward.9} parent=0 // loop_body
    %s14 = ssub.s32 %s9, 1
    %s15 = ssub.s32 %s9, 2
    %s28 = sadd.s32 1, %s19
    %p29 = scmp.ge.s32.totalorder %s28, 1
    %s30 = scalar_select %p29, 0, %s28
    %s31 = sadd.s32 1, %s18
    %s32 = scalar_select %p29, %s31, %s18
    %p33 = scmp.ge.s32.totalorder %s32, 1
    %s34 = scalar_select %p33, 0, %s32
    %s35 = sadd.s32 1, %s17
    %s36 = scalar_select %p33, %s35, %s17
    %p37 = scmp.ge.s32.totalorder %s36, 4
    %s38 = scalar_select %p37, 0, %s36
    %s39 = sadd.s32 1, %s16
    %s40 = scalar_select %p37, %s39, %s16
    %p41 = scmp.ge.s32.totalorder %s40, 2
    %s42 = scalar_select %p41, 0, %s40
    %s43 = ssub.s32 %s16, %s42
    %s44 = ssub.s32 %s17, %s38
    %s45 = sor.u32 %s43, %s44
    %s46 = ssub.s32 %s18, %s34
    %s47 = sor.u32 %s45, %s46
    %p48 = scmp.eq.s32.totalorder %s47, 0
    %s50 = sadd.s32 %s49, 1
    %s51 = scalar_select %p48, %s49, %s50
    %p54 = pneg %p48
    %p55 = scmp.eq.s32.totalorder %s9, 7
    %p56 = por %p54, %p55
    %p57 = scmp.ne.s32.totalorder %s49, %s52
    %p58 = scmp.eq.s32.totalorder %s9, 0
    %p59 = por %p57, %p58
    %p60 = scmp.ne.s32.totalorder %s49, %s52
    %p61 = scmp.eq.s32.totalorder %s14, 7
    %p62 = por %p60, %p61
    %p63 = scmp.ne.s32.totalorder %s52, %s53
    %p64 = scmp.eq.s32.totalorder %s14, 0
    %p65 = por %p63, %p64
    %p66 = scmp.ne.s32.totalorder %s52, %s53
    %p67 = scmp.eq.s32.totalorder %s15, 7
    %p68 = por %p66, %p67
    %p70 = scmp.ne.s32.totalorder %s53, %s69
    %p71 = scmp.eq.s32.totalorder %s15, 0
    %p72 = por %p70, %p71
    %s73 = ssub.s32 %s16, %s42
    %s74 = ssub.s32 %s17, %s38
    %s75 = sor.u32 %s73, %s74
    %s76 = ssub.s32 %s19, %s30
    %s77 = sor.u32 %s75, %s76
    %p78 = scmp.eq.s32.totalorder %s77, 0
    %s80 = sadd.s32 %s79, 1
    %s81 = scalar_select %p78, %s79, %s80
    %p84 = pneg %p78
    %p85 = scmp.eq.s32.totalorder %s9, 7
    %p86 = por %p84, %p85
    %p87 = scmp.ne.s32.totalorder %s79, %s82
    %p88 = scmp.eq.s32.totalorder %s9, 0
    %p89 = por %p87, %p88
    %p90 = scmp.ne.s32.totalorder %s79, %s82
    %p91 = scmp.eq.s32.totalorder %s14, 7
    %p92 = por %p90, %p91
    %p93 = scmp.ne.s32.totalorder %s82, %s83
    %p94 = scmp.eq.s32.totalorder %s14, 0
    %p95 = por %p93, %p94
    %p96 = scmp.ne.s32.totalorder %s82, %s83
    %p97 = scmp.eq.s32.totalorder %s15, 7
    %p98 = por %p96, %p97
    %p100 = scmp.ne.s32.totalorder %s83, %s99
    %p101 = scmp.eq.s32.totalorder %s15, 0
    %p102 = por %p100, %p101
    %s103 = ssub.s32 %s16, %s42
    %s104 = ssub.s32 %s17, %s38
    %s105 = sor.u32 %s103, %s104
    %s106 = ssub.s32 %s19, %s30
    %s107 = sor.u32 %s105, %s106
    %p108 = scmp.eq.s32.totalorder %s107, 0
    %s110 = sadd.s32 %s109, 1
    %s111 = scalar_select %p108, %s109, %s110
    %p114 = pneg %p108
    %p115 = scmp.eq.s32.totalorder %s9, 7
    %p116 = por %p114, %p115
    %p117 = scmp.ne.s32.totalorder %s109, %s112
    %p118 = scmp.eq.s32.totalorder %s9, 0
    %p119 = por %p117, %p118
    %p120 = scmp.ne.s32.totalorder %s109, %s112
    %p121 = scmp.eq.s32.totalorder %s14, 7
    %p122 = por %p120, %p121
    %p123 = scmp.ne.s32.totalorder %s112, %s113
    %p124 = scmp.eq.s32.totalorder %s14, 0
    %p125 = por %p123, %p124
    %p126 = scmp.ne.s32.totalorder %s112, %s113
    %p127 = scmp.eq.s32.totalorder %s15, 7
    %p128 = por %p126, %p127
    %p130 = scmp.ne.s32.totalorder %s113, %s129
    %p131 = scmp.eq.s32.totalorder %s15, 0
    %p132 = por %p130, %p131
    %s133 = ssub.s32 %s16, %s42
    %s134 = ssub.s32 %s17, %s38
    %s135 = sor.u32 %s133, %s134
    %s136 = ssub.s32 %s18, %s34
    %s137 = sor.u32 %s135, %s136
    %p138 = scmp.eq.s32.totalorder %s137, 0
    %s140 = sadd.s32 %s139, 1
    %s141 = scalar_select %p138, %s139, %s140
    %p144 = pneg %p138
    %p145 = scmp.eq.s32.totalorder %s9, 7
    %p146 = por %p144, %p145
    %p147 = scmp.ne.s32.totalorder %s139, %s142
    %p148 = scmp.eq.s32.totalorder %s9, 0
    %p149 = por %p147, %p148
    %p150 = scmp.ne.s32.totalorder %s139, %s142
    %p151 = scmp.eq.s32.totalorder %s14, 7
    %p152 = por %p150, %p151
    %p153 = scmp.ne.s32.totalorder %s142, %s143
    %p154 = scmp.eq.s32.totalorder %s14, 0
    %p155 = por %p153, %p154
    %p156 = scmp.ne.s32.totalorder %s142, %s143
    %p157 = scmp.eq.s32.totalorder %s15, 7
    %p158 = por %p156, %p157
    %p160 = scmp.ne.s32.totalorder %s143, %s159
    %p161 = scmp.eq.s32.totalorder %s15, 0
    %p162 = por %p160, %p161
    %p163 = scmp.le.s32.totalorder 1, %s9
    %p164 = scmp.lt.s32.totalorder %s9, 9
    %p165 = pnand %p163, %p164
    %p166 = pneg %p165
    // Predicated region
    $region9: #{decoder_layer_forward.9} parent=5 // pred_check
      _
    $region10: #{decoder_layer_forward.9} parent=5 // pred_check_branch
      %168 = sbr.rel (%p165) target = $region12
    $region11: #{decoder_layer_forward.9} parent=5 // pred_region
      %s169 = ssub.s32 %s9, 1
    $region12: #{decoder_layer_forward.9} parent=5 // pred_fallthru
      _
    %p170 = scmp.lt.s32.totalorder %s9, 8
    // Predicated region
    $region13: #{decoder_layer_forward.9} parent=5 // pred_check
      %p171 = pneg %p170
    $region14: #{decoder_layer_forward.9} parent=5 // pred_check_branch
      %173 = sbr.rel (%p171) target = $region16
    $region15: #{decoder_layer_forward.9} parent=5 // pred_region
      // Predicated region
      $region17: #{decoder_layer_forward.9} parent=15 // pred_check
        %p174 = pneg %p59
      $region18: #{decoder_layer_forward.9} parent=15 // pred_check_branch
        %176 = sbr.rel (%p174) target = $region20
      $region19: #{decoder_layer_forward.9} parent=15 // pred_region
        %p177 = scmp.lt.s32.totalorder %s16, 1
        %s178 = scalar_select %p177, %s16, 1
        %p179 = scmp.lt.s32.totalorder %s17, 3
        %s180 = scalar_select %p179, %s17, 3
        %p181 = scmp.lt.s32.totalorder %s18, 0
        %s182 = scalar_select %p181, %s18, 0
        %s183 = sadd.s32 %s182, %s180
        %s184 = smul.addr %s178, 4
        %s185 = sadd.s32 %s183, %s184
        %s186 = smul.addr %s185, 4
        %s187 = scalar_lea.vmem %s0, %s186
      $region20: #{decoder_layer_forward.9} parent=15 // pred_fallthru
        _
      // Predicated region
      $region21: #{decoder_layer_forward.9} parent=15 // pred_check
        %p188 = pneg %p89
      $region22: #{decoder_layer_forward.9} parent=15 // pred_check_branch
        %190 = sbr.rel (%p188) target = $region24
      $region23: #{decoder_layer_forward.9} parent=15 // pred_region
        %p191 = scmp.lt.s32.totalorder %s16, 1
        %s192 = scalar_select %p191, %s16, 1
        %p193 = scmp.lt.s32.totalorder %s17, 3
        %s194 = scalar_select %p193, %s17, 3
        %p195 = scmp.lt.s32.totalorder %s19, 0
        %s196 = scalar_select %p195, %s19, 0
        %s197 = sadd.s32 %s196, %s194
        %s198 = smul.addr %s192, 4
        %s199 = sadd.s32 %s197, %s198
        %s200 = smul.addr %s199, 4
        %s201 = scalar_lea.vmem %s1, %s200
      $region24: #{decoder_layer_forward.9} parent=15 // pred_fallthru
        _
      // Predicated region
      $region25: #{decoder_layer_forward.9} parent=15 // pred_check
        %p202 = pneg %p119
      $region26: #{decoder_layer_forward.9} parent=15 // pred_check_branch
        %204 = sbr.rel (%p202) target = $region28
      $region27: #{decoder_layer_forward.9} parent=15 // pred_region
        %p205 = scmp.lt.s32.totalorder %s16, 1
        %s206 = scalar_select %p205, %s16, 1
        %p207 = scmp.lt.s32.totalorder %s17, 3
        %s208 = scalar_select %p207, %s17, 3
        %p209 = scmp.lt.s32.totalorder %s19, 0
        %s210 = scalar_select %p209, %s19, 0
        %s211 = sadd.s32 %s210, %s208
        %s212 = smul.addr %s206, 4
        %s213 = sadd.s32 %s211, %s212
        %s214 = smul.addr %s213, 4
        %s215 = scalar_lea.vmem %s2, %s214
      $region28: #{decoder_layer_forward.9} parent=15 // pred_fallthru
        _
    $region16: #{decoder_layer_forward.9} parent=5 // pred_fallthru
      _
    %p216 = scmp.le.s32.totalorder 1, %s9
    %p217 = scmp.lt.s32.totalorder %s9, 9
    %p218 = pnand %p216, %p217
    %p219 = pneg %p218
    // Predicated region
    $region29: #{decoder_layer_forward.9} parent=5 // pred_check
      _
    $region30: #{decoder_layer_forward.9} parent=5 // pred_check_branch
      %221 = sbr.rel (%p218) target = $region32
    $region31: #{decoder_layer_forward.9} parent=5 // pred_region
      %s222 = ssub.s32 %s9, 1
      %p223 = scmp.lt.s32.totalorder %s20, 1
      %s224 = scalar_select %p223, %s20, 1
      %p225 = scmp.lt.s32.totalorder %s21, 3
      %s226 = scalar_select %p225, %s21, 3
      %p227 = scmp.lt.s32.totalorder %s22, 0
      %s228 = scalar_select %p227, %s22, 0
      %s229 = sadd.s32 %s228, %s226
      %s230 = smul.addr %s224, 4
      %s231 = sadd.s32 %s229, %s230
      %s232 = smul.addr %s231, 4
      %s233 = scalar_lea.vmem %s0, %s232
      %p234 = pneg %p65
      %p235 = pneg %p62
      %p236 = scmp.lt.s32.totalorder %s20, 1
      %s237 = scalar_select %p236, %s20, 1
      %p238 = scmp.lt.s32.totalorder %s21, 3
      %s239 = scalar_select %p238, %s21, 3
      %p240 = scmp.lt.s32.totalorder %s23, 0
      %s241 = scalar_select %p240, %s23, 0
      %s242 = sadd.s32 %s241, %s239
      %s243 = smul.addr %s237, 4
      %s244 = sadd.s32 %s242, %s243
      %s245 = smul.addr %s244, 4
      %s246 = scalar_lea.vmem %s1, %s245
      %p247 = pneg %p95
      %p248 = pneg %p92
      %p249 = scmp.lt.s32.totalorder %s20, 1
      %s250 = scalar_select %p249, %s20, 1
      %p251 = scmp.lt.s32.totalorder %s21, 3
      %s252 = scalar_select %p251, %s21, 3
      %p253 = scmp.lt.s32.totalorder %s23, 0
      %s254 = scalar_select %p253, %s23, 0
      %s255 = sadd.s32 %s254, %s252
      %s256 = smul.addr %s250, 4
      %s257 = sadd.s32 %s255, %s256
      %s258 = smul.addr %s257, 4
      %s259 = scalar_lea.vmem %s2, %s258
      %p260 = pneg %p125
      %p261 = pneg %p122
      %p262 = pneg %p155
      %p263 = pneg %p152
      %p264 = scmp.lt.s32.totalorder %s20, 1
      %s265 = scalar_select %p264, %s20, 1
      %p266 = scmp.lt.s32.totalorder %s21, 3
      %s267 = scalar_select %p266, %s21, 3
      %p268 = scmp.lt.s32.totalorder %s22, 0
      %s269 = scalar_select %p268, %s22, 0
      %s270 = sadd.s32 %s269, %s267
      %s271 = smul.addr %s265, 4
      %s272 = sadd.s32 %s270, %s271
      %s273 = smul.addr %s272, 4
      %s274 = scalar_lea.vmem %s3, %s273
      %p275 = scmp.lt.s32.totalorder %s20, 1
      %s276 = scalar_select %p275, %s20, 1
      %p277 = scmp.lt.s32.totalorder %s21, 3
      %s278 = scalar_select %p277, %s21, 3
      %p279 = scmp.lt.s32.totalorder %s22, 0
      %s280 = scalar_select %p279, %s22, 0
      %s281 = sadd.s32 %s280, %s278
      %s282 = smul.addr %s276, 4
      %s283 = sadd.s32 %s281, %s282
      %s284 = smul.addr %s283, 4
      %s285 = scalar_lea.vmem %s0, %s284
      %p286 = scmp.lt.s32.totalorder %s20, 1
      %s287 = scalar_select %p286, %s20, 1
      %p288 = scmp.lt.s32.totalorder %s21, 3
      %s289 = scalar_select %p288, %s21, 3
      %p290 = scmp.lt.s32.totalorder %s23, 0
      %s291 = scalar_select %p290, %s23, 0
      %s292 = sadd.s32 %s291, %s289
      %s293 = smul.addr %s287, 4
      %s294 = sadd.s32 %s292, %s293
      %s295 = smul.addr %s294, 4
      %s296 = scalar_lea.vmem %s1, %s295
      %p297 = scmp.lt.s32.totalorder %s20, 1
      %s298 = scalar_select %p297, %s20, 1
      %p299 = scmp.lt.s32.totalorder %s21, 3
      %s300 = scalar_select %p299, %s21, 3
      %p301 = scmp.lt.s32.totalorder %s23, 0
      %s302 = scalar_select %p301, %s23, 0
      %s303 = sadd.s32 %s302, %s300
      %s304 = smul.addr %s298, 4
      %s305 = sadd.s32 %s303, %s304
      %s306 = smul.addr %s305, 4
      %s307 = scalar_lea.vmem %s2, %s306
      %p308 = scmp.lt.s32.totalorder %s20, 1
      %s309 = scalar_select %p308, %s20, 1
      %p310 = scmp.lt.s32.totalorder %s21, 3
      %s311 = scalar_select %p310, %s21, 3
      %p312 = scmp.lt.s32.totalorder %s22, 0
      %s313 = scalar_select %p312, %s22, 0
      %s314 = sadd.s32 %s313, %s311
      %s315 = smul.addr %s309, 4
      %s316 = sadd.s32 %s314, %s315
      %s317 = smul.addr %s316, 4
      %s318 = scalar_lea.vmem %s3, %s317
      %p320 = scmp.eq.s32.totalorder %s23, 0
      // Predicated region
      $region33: #{decoder_layer_forward.9} parent=31 // pred_check
        %p321 = pneg %p320
      $region34: #{decoder_layer_forward.9} parent=31 // pred_check_branch
        %323 = sbr.rel (%p321) target = $region36
      $region35: #{decoder_layer_forward.9} parent=31 // pred_region
        %vm324 = vcmask 7168
        %325 = vst.msk [vmem:[#allocation2] sm:$0xff] %vm324, -inf
        %326 = vst.msk [vmem:[#allocation3] sm:$0xff] %vm324, 0.0
        %vm327 = vcmask 64512
        %328 = vst.msk [vmem:[#allocation4] sm:$0xff] %vm327, 0.0
      $region36: #{decoder_layer_forward.9} parent=31 // pred_fallthru
        _
      %v329 = vld [vmem:[%s285] sm:$0xf]
      %v330 = vunpack.c.l.bf16 %v329
      %v331 = vmul.f32 %v330, 0.35355338
      %v332 = vpack.c.bf16 %v331, %v331
      %v333 = vld [vmem:[%s296] sm:$0xf]
      %v334 = vld [vmem:[%s307] sm:$0xf]
      %vm335 = vcmask 64512
      %v337 = vsel %vm335, %v332, 0
      %v340 = vsel %vm335, %v333, 0
      %342 = vmatprep.subr.bf16.mxu0 0
      %343 = vmatpush1.bf16.xpose.msra.mxu0 %v340
      %344 = vmatprep.subr.bf16.mxu0 0
      %345 = vmatpush1.bf16.xpose.msra.mxu0 0
      %346 = vmatprep.subr.bf16.mxu0 0
      %347 = vmatpush1.bf16.xpose.msra.mxu0 0
      %348 = vmatprep.subr.bf16.mxu0 0
      %349 = vmatpush1.bf16.xpose.msra.mxu0 0
      %350 = vmatprep.subr.bf16.mxu0 0
      %351 = vmatpush1.bf16.xpose.msra.mxu0 0
      %352 = vmatprep.subr.bf16.mxu0 0
      %353 = vmatpush1.bf16.xpose.msra.mxu0 0
      %354 = vmatprep.subr.bf16.mxu0 0
      %355 = vmatpush1.bf16.xpose.msra.mxu0 0
      %356 = vmatprep.subr.bf16.mxu0 0
      %357 = vmatpush1.bf16.xpose.msra.mxu0 0
      %358 = vmatprep.subr.bf16.mxu0 0
      %359 = vmatpush1.bf16.xpose.msra.mxu0 0
      %360 = vmatprep.subr.bf16.mxu0 0
      %361 = vmatpush1.bf16.xpose.msra.mxu0 0
      %362 = vmatprep.subr.bf16.mxu0 0
      %363 = vmatpush1.bf16.xpose.msra.mxu0 0
      %364 = vmatprep.subr.bf16.mxu0 0
      %365 = vmatpush1.bf16.xpose.msra.mxu0 0
      %366 = vmatprep.subr.bf16.mxu0 0
      %367 = vmatpush1.bf16.xpose.msra.mxu0 0
      %368 = vmatprep.subr.bf16.mxu0 0
      %369 = vmatpush1.bf16.xpose.msra.mxu0 0
      %370 = vmatprep.subr.bf16.mxu0 0
      %371 = vmatpush1.bf16.xpose.msra.mxu0 0
      %372 = vmatprep.subr.bf16.mxu0 0
      %373 = vmatpush1.bf16.xpose.msra.mxu0 0
      %374 = vmatprep.mubr.bf16.mxu0 0
      %375 = vmatmul.mubr.bf16.gmra.mrb[0].mxu0 %v337
      %v376 = vpop.f32.mrb[0].mxu0
      %v377 = vadd.f32 0.0, %v376
      %v378 = vpop.f32.mrb[0].mxu0
      %v379 = vpop.f32.mrb[0].mxu0
      %v380 = vpop.f32.mrb[0].mxu0
      %381 = vdwg.mxu0
      %s382 = smul.u32 %s22, 8
      %v383 = vlaneseq
      %v384 = vshrl.u32 %v383, 7
      %v385 = vstv %s382
      %v386 = vadd.s32 %v385, %v384
      %s387 = smul.u32 %s23, 8
      %v388 = vlaneseq
      %v389 = vand.u32 %v388, 127
      %v390 = vstv %s387
      %v391 = vadd.s32 %v390, %v389
      %vm392 = vcmp.gt.s32.totalorder %v391, %v386
      %v393 = vsel %vm392, -1e+09, %v377
      %v394 = vld [vmem:[#allocation2] sm:$0xff]
      %v395 = vsel %vm335, %v393, -inf
      %396 = vmax.xlane.f32.xlu0 %v395
      %v397 = vpop.xlane.xlu0 %396
      %v398 = vmax.f32 %v394, %v397
      %v399 = vsub.f32 %v394, %v398
      %v400 = vmul.f32 %v399, 1.442695
      %v401 = vpow.pop %v400
      %403 = vset.pattern.permute.xlu0 0
      %404 = vperm.xlu0 %403, %v398
      %v405 = vpop.permute.xlu0 %404
      %v407 = vsub.f32 %v393, %v405
      %v408 = vmul.f32 %v407, 1.442695
      %v409 = vpow.pop %v408
      %v410 = vld [vmem:[#allocation3] sm:$0xff]
      %v411 = vmul.f32 %v401, %v410
      %v412 = vsel %vm335, %v409, 0.0
      %413 = vadd.xlane.f32.xlu0 %v412
      %v414 = vpop.xlane.xlu0 %413
      %v415 = vadd.f32 %v411, %v414
      %vm416 = vcmask 7168
      %417 = vst.msk [vmem:[#allocation3] sm:$0xff] %vm416, %v415
      %v418 = vld [vmem:[#allocation4] sm:$0xff]
      %420 = vset.pattern.permute.xlu0 0
      %421 = vperm.xlu0 %420, %v401
      %v422 = vpop.permute.xlu0 %421
      %v424 = vmul.f32 %v422, %v418
      %v425 = vpack.c.bf16 %v409, %v409
      %v427 = vsel %vm335, %v425, 0
      %vm429 = vcmask 1043456
      %v431 = vsel %vm429, %v334, 0
      %433 = vmatprep.subr.bf16.mxu0 0
      %434 = vmatpush1.bf16.msra.mxu0 %v431
      %435 = vmatprep.subr.bf16.mxu0 0
      %436 = vmatpush1.bf16.msra.mxu0 0
      %437 = vmatprep.subr.bf16.mxu0 0
      %438 = vmatpush1.bf16.msra.mxu0 0
      %439 = vmatprep.subr.bf16.mxu0 0
      %440 = vmatpush1.bf16.msra.mxu0 0
      %441 = vmatprep.subr.bf16.mxu0 0
      %442 = vmatpush1.bf16.msra.mxu0 0
      %443 = vmatprep.subr.bf16.mxu0 0
      %444 = vmatpush1.bf16.msra.mxu0 0
      %445 = vmatprep.subr.bf16.mxu0 0
      %446 = vmatpush1.bf16.msra.mxu0 0
      %447 = vmatprep.subr.bf16.mxu0 0
      %448 = vmatpush1.bf16.msra.mxu0 0
      %449 = vmatprep.subr.bf16.mxu0 0
      %450 = vmatpush1.bf16.msra.mxu0 0
      %451 = vmatprep.subr.bf16.mxu0 0
      %452 = vmatpush1.bf16.msra.mxu0 0
      %453 = vmatprep.subr.bf16.mxu0 0
      %454 = vmatpush1.bf16.msra.mxu0 0
      %455 = vmatprep.subr.bf16.mxu0 0
      %456 = vmatpush1.bf16.msra.mxu0 0
      %457 = vmatprep.subr.bf16.mxu0 0
      %458 = vmatpush1.bf16.msra.mxu0 0
      %459 = vmatprep.subr.bf16.mxu0 0
      %460 = vmatpush1.bf16.msra.mxu0 0
      %461 = vmatprep.subr.bf16.mxu0 0
      %462 = vmatpush1.bf16.msra.mxu0 0
      %463 = vmatprep.subr.bf16.mxu0 0
      %464 = vmatpush1.bf16.msra.mxu0 0
      %465 = vmatprep.mubr.bf16.mxu0 0
      %466 = vmatmul.mubr.bf16.gmra.mrb[0].mxu0 %v427
      %v467 = vpop.f32.mrb[0].mxu0
      %v468 = vadd.f32 0.0, %v467
      %v469 = vpop.f32.mrb[0].mxu0
      %v470 = vpop.f32.mrb[0].mxu0
      %v471 = vpop.f32.mrb[0].mxu0
      %472 = vdwg.mxu0
      %v473 = vadd.f32 %v424, %v468
      %474 = vst.msk [vmem:[#allocation4] sm:$0xff] %vm335, %v473
      %475 = vst.msk [vmem:[#allocation2] sm:$0xff] %vm416, %v398
      // Predicated region
      $region37: #{decoder_layer_forward.9} parent=31 // pred_check
        %p476 = pneg %p320
      $region38: #{decoder_layer_forward.9} parent=31 // pred_check_branch
        %478 = sbr.rel (%p476) target = $region40
      $region39: #{decoder_layer_forward.9} parent=31 // pred_region
        %v479 = vld [vmem:[#allocation4] sm:$0xff]
        %v480 = vld [vmem:[#allocation3] sm:$0xff]
        %482 = vset.pattern.permute.xlu0 0
        %483 = vperm.xlu0 %482, %v480
        %v484 = vpop.permute.xlu0 %483
        %v486 = vrcp.pop %v484
        %v487 = vmul.f32 %v479, %v486
        %v488 = vpack.c.bf16 %v487, %v487
        %vm489 = vcmask 60416
        %490 = vst.msk [vmem:[%s318] sm:$0xf] %vm489, %v488
      $region40: #{decoder_layer_forward.9} parent=31 // pred_fallthru
        _
      %p491 = scmp.lt.s32.totalorder %s20, 1
      %s492 = scalar_select %p491, %s20, 1
      %p493 = scmp.lt.s32.totalorder %s21, 3
      %s494 = scalar_select %p493, %s21, 3
      %p495 = scmp.lt.s32.totalorder %s22, 0
      %s496 = scalar_select %p495, %s22, 0
      %s497 = sadd.s32 %s496, %s494
      %s498 = smul.addr %s492, 4
      %s499 = sadd.s32 %s497, %s498
      %s500 = smul.addr %s499, 4
      %s501 = scalar_lea.vmem %s3, %s500
      // Predicated region
      $region41: #{decoder_layer_forward.9} parent=31 // pred_check
        %p502 = pneg %p152
      $region42: #{decoder_layer_forward.9} parent=31 // pred_check_branch
        %504 = sbr.rel (%p502) target = $region44
      $region43: #{decoder_layer_forward.9} parent=31 // pred_region
        _
      $region44: #{decoder_layer_forward.9} parent=31 // pred_fallthru
        _
    $region32: #{decoder_layer_forward.9} parent=5 // pred_fallthru
      _
    %p505 = scmp.le.s32.totalorder 2, %s9
    // Predicated region
    $region45: #{decoder_layer_forward.9} parent=5 // pred_check
      %p506 = pneg %p505
    $region46: #{decoder_layer_forward.9} parent=5 // pred_check_branch
      %508 = sbr.rel (%p506) target = $region48
    $region47: #{decoder_layer_forward.9} parent=5 // pred_region
      %s509 = ssub.s32 %s9, 2
      // Predicated region
      $region49: #{decoder_layer_forward.9} parent=47 // pred_check
        %p510 = pneg %p158
      $region50: #{decoder_layer_forward.9} parent=47 // pred_check_branch
        %512 = sbr.rel (%p510) target = $region52
      $region51: #{decoder_layer_forward.9} parent=47 // pred_region
        %p513 = scmp.lt.s32.totalorder %s24, 1
        %s514 = scalar_select %p513, %s24, 1
        %p515 = scmp.lt.s32.totalorder %s25, 3
        %s516 = scalar_select %p515, %s25, 3
        %p517 = scmp.lt.s32.totalorder %s26, 0
        %s518 = scalar_select %p517, %s26, 0
        %s519 = sadd.s32 %s518, %s516
        %s520 = smul.addr %s514, 4
        %s521 = sadd.s32 %s519, %s520
        %s522 = smul.addr %s521, 4
        %s523 = scalar_lea.vmem %s3, %s522
      $region52: #{decoder_layer_forward.9} parent=47 // pred_fallthru
        _
    $region48: #{decoder_layer_forward.9} parent=5 // pred_fallthru
      _
  $region6: #{decoder_layer_forward.9} parent=0 // loop_footer
    %s13 = sadd.s32 1, %s9
  $region7: #{decoder_layer_forward.9} parent=0 // loop_footer_branch
    %8 = sbr.rel target = $region3
  $region8: #{decoder_layer_forward.9} parent=0 // loop_exit
    _

// kernel: decoder_layer_forward.12
$region0: #{decoder_layer_forward.12}
  #allocation0 [shape = 'u32[]', space=smem, size = 0x4, offset = 0x4, fixed_abs, tag = 'smem constant byte address 0x4 - core index']
  #allocation1 [shape = 'u32[144,128]{1,0:T(1,128)}', space=vmem, size = 0x12000, scoped, tag = 'internal scratch']
  #allocation2 [shape = 'f32[16,64]{1,0:T(8,128)}', space=vmem, size = 0x2000, scoped, tag = 'scratch operand']
  %s0 = inlined_call_operand.vmem [shape: f32[16,32], index: 0, kind: input, shape index: {}]
  %s1 = inlined_call_operand.vmem [shape: bf16[32,64], index: 1, kind: input, shape index: {}]
  %s2 = inlined_call_operand.vmem [shape: f32[1,64], index: 2, kind: input, shape index: {}]
  %s3 = inlined_call_operand.vmem [shape: bf16[16,64], index: 3, kind: output, shape index: {}]
  %s4 = sld [smem:[#allocation0]]
  $region30: #{decoder_layer_forward.12} parent=0
    _
  %s6 = ssub.s32 1, %s4
  %s7 = scalar_select 0, %s6, %s4
  // Predicated region
  $region2: #{decoder_layer_forward.12} parent=0 // pred_check
    _
  $region3: #{decoder_layer_forward.12} parent=0 // pred_check_branch
    %9 = sbr.rel (0) target = $region5
  $region4: #{decoder_layer_forward.12} parent=0 // pred_region
    _
  $region5: #{decoder_layer_forward.12} parent=0 // pred_fallthru
    _
  // Predicated region
  $region6: #{decoder_layer_forward.12} parent=0 // pred_check
    _
  $region7: #{decoder_layer_forward.12} parent=0 // pred_check_branch
    %11 = sbr.rel (0) target = $region9
  $region8: #{decoder_layer_forward.12} parent=0 // pred_region
    _
  $region9: #{decoder_layer_forward.12} parent=0 // pred_fallthru
    _
  // Predicated region
  $region10: #{decoder_layer_forward.12} parent=0 // pred_check
    _
  $region11: #{decoder_layer_forward.12} parent=0 // pred_check_branch
    %13 = sbr.rel (0) target = $region13
  $region12: #{decoder_layer_forward.12} parent=0 // pred_region
    _
  $region13: #{decoder_layer_forward.12} parent=0 // pred_fallthru
    _
  %p15 = scmp.eq.s32.totalorder 0, 0
  // Predicated region
  $region14: #{decoder_layer_forward.12} parent=0 // pred_check
    %p16 = pneg %p15
  $region15: #{decoder_layer_forward.12} parent=0 // pred_check_branch
    %18 = sbr.rel (%p16) target = $region17
  $region16: #{decoder_layer_forward.12} parent=0 // pred_region
    %vm19 = vcmask 523264
    %20 = vst.msk [vmem:[#allocation2] sm:$0xff] %vm19, 0.0
    %21 = vst.msk [vmem:[#allocation2 + $0x8] sm:$0xff] %vm19, 0.0
  $region17: #{decoder_layer_forward.12} parent=0 // pred_fallthru
    _
  %v22 = vld [vmem:[#allocation2] sm:$0xff]
  %v23 = vld [vmem:[#allocation2 + $0x8] sm:$0xff]
  %v24 = vld [vmem:[%s0] sm:$0xff]
  %v25 = vld [vmem:[%s0 + $0x8] sm:$0xff]
  %v26 = vpack.c.bf16 %v25, %v24
  %v27 = vld [vmem:[%s1] sm:$0xf]
  %v28 = vld [vmem:[%s1 + $0x4] sm:$0xf]
  %v29 = vld [vmem:[%s1 + $0x8] sm:$0xf]
  %v30 = vld [vmem:[%s1 + $0xc] sm:$0xf]
  %v35 = vunpack.c.l.b16 %v27
  %v36 = vunpack.c.l.b16 %v28
  %v37 = vunpack.c.l.b16 %v29
  %v38 = vunpack.c.l.b16 %v30
  %v39 = vpack.c.b16 %v36, %v35
  %v40 = vpack.c.b16 %v38, %v37
  %vm43 = vcmask 261120
  %v45 = vsel %vm43, %v26, 0
  %47 = vmatprep.subr.bf16.mxu0 0
  %48 = vmatpush1.bf16.msra.mxu0 %v39
  %49 = vmatprep.subr.bf16.mxu0 0
  %50 = vmatpush1.bf16.msra.mxu0 %v40
  %51 = vmatprep.subr.bf16.mxu0 0
  %52 = vmatpush1.bf16.msra.mxu0 0
  %53 = vmatprep.subr.bf16.mxu0 0
  %54 = vmatpush1.bf16.msra.mxu0 0
  %55 = vmatprep.subr.bf16.mxu0 0
  %56 = vmatpush1.bf16.msra.mxu0 0
  %57 = vmatprep.subr.bf16.mxu0 0
  %58 = vmatpush1.bf16.msra.mxu0 0
  %59 = vmatprep.subr.bf16.mxu0 0
  %60 = vmatpush1.bf16.msra.mxu0 0
  %61 = vmatprep.subr.bf16.mxu0 0
  %62 = vmatpush1.bf16.msra.mxu0 0
  %63 = vmatprep.subr.bf16.mxu0 0
  %64 = vmatpush1.bf16.msra.mxu0 0
  %65 = vmatprep.subr.bf16.mxu0 0
  %66 = vmatpush1.bf16.msra.mxu0 0
  %67 = vmatprep.subr.bf16.mxu0 0
  %68 = vmatpush1.bf16.msra.mxu0 0
  %69 = vmatprep.subr.bf16.mxu0 0
  %70 = vmatpush1.bf16.msra.mxu0 0
  %71 = vmatprep.subr.bf16.mxu0 0
  %72 = vmatpush1.bf16.msra.mxu0 0
  %73 = vmatprep.subr.bf16.mxu0 0
  %74 = vmatpush1.bf16.msra.mxu0 0
  %75 = vmatprep.subr.bf16.mxu0 0
  %76 = vmatpush1.bf16.msra.mxu0 0
  %77 = vmatprep.subr.bf16.mxu0 0
  %78 = vmatpush1.bf16.msra.mxu0 0
  %79 = vmatprep.mubr.bf16.mxu0 0
  %80 = vmatmul.mubr.bf16.gmra.mrb[0].mxu0 %v45
  %v81 = vpop.f32.mrb[0].mxu0
  %v82 = vadd.f32 0.0, %v81
  %v83 = vpop.f32.mrb[0].mxu0
  %v84 = vpop.f32.mrb[0].mxu0
  %v85 = vadd.f32 0.0, %v84
  %v86 = vpop.f32.mrb[0].mxu0
  %87 = vdwg.mxu0
  %v88 = vadd.f32 %v22, %v82
  %v89 = vadd.f32 %v23, %v85
  %vm90 = vcmask 523264
  %91 = vst.msk [vmem:[#allocation2] sm:$0xff] %vm90, %v88
  %92 = vst.msk [vmem:[#allocation2 + $0x8] sm:$0xff] %vm90, %v89
  // Predicated region
  $region18: #{decoder_layer_forward.12} parent=0 // pred_check
    %p93 = pneg %p15
  $region19: #{decoder_layer_forward.12} parent=0 // pred_check_branch
    %95 = sbr.rel (%p93) target = $region21
  $region20: #{decoder_layer_forward.12} parent=0 // pred_region
    %v96 = vld [vmem:[#allocation2] sm:$0xff]
    %v97 = vld [vmem:[#allocation2 + $0x8] sm:$0xff]
    %v98 = vld [vmem:[%s2] sm:$0x1]
    %v100 = vlaneseq
    %v101 = vshrl.u32 %v100, 7
    %v102 = vsub.s32 0, %v101
    %v103 = vrot.slane %v98, %v102
    %v105 = vadd.f32 %v96, %v103
    %v106 = vadd.f32 %v97, %v103
    %v107 = vpack.c.bf16 %v106, %v105
    %v109 = vunpack.c.l.b16 %v107
    %v110 = vunpack.c.h.b16 %v107
    %v111 = vpack.c.b16 %v109, %v109
    %v112 = vpack.c.b16 %v110, %v110
    %vm115 = vcmask 519168
    %116 = vst.msk [vmem:[%s3] sm:$0xf] %vm115, %v111
    %117 = vst.msk [vmem:[%s3 + $0x4] sm:$0xf] %vm115, %v112
  $region21: #{decoder_layer_forward.12} parent=0 // pred_fallthru
    _
  // Predicated region
  $region22: #{decoder_layer_forward.12} parent=0 // pred_check
    _
  $region23: #{decoder_layer_forward.12} parent=0 // pred_check_branch
    %119 = sbr.rel (0) target = $region25
  $region24: #{decoder_layer_forward.12} parent=0 // pred_region
    _
  $region25: #{decoder_layer_forward.12} parent=0 // pred_fallthru
    _
  // Predicated region
  $region26: #{decoder_layer_forward.12} parent=0 // pred_check
    _
  $region27: #{decoder_layer_forward.12} parent=0 // pred_check_branch
    %121 = sbr.rel (0) target = $region29
  $region28: #{decoder_layer_forward.12} parent=0 // pred_region
    _
  $region29: #{decoder_layer_forward.12} parent=0 // pred_fallthru
    _

// kernel: decoder_layer_forward.13
$region0: #{decoder_layer_forward.13}
  #allocation0 [shape = 'u32[]', space=smem, size = 0x4, offset = 0x4, fixed_abs, tag = 'smem constant byte address 0x4 - core index']
  #allocation1 [shape = 'u32[144,128]{1,0:T(1,128)}', space=vmem, size = 0x12000, scoped, tag = 'internal scratch']
  #allocation2 [shape = 'f32[8,1]{1,0:T(8,128)}', space=vmem, size = 0x1000, scoped, tag = 'scratch operand']
  #allocation3 [shape = 'f32[8,1]{1,0:T(8,128)}', space=vmem, size = 0x1000, scoped, tag = 'scratch operand']
  #allocation4 [shape = 'f32[8,8]{1,0:T(8,128)}', space=vmem, size = 0x1000, scoped, tag = 'scratch operand']
  %s0 = inlined_call_operand.vmem [shape: bf16[2,4,8,8], index: 0, kind: input, shape index: {}]
  %s1 = inlined_call_operand.vmem [shape: bf16[2,4,8,8], index: 1, kind: input, shape index: {}]
  %s2 = inlined_call_operand.vmem [shape: bf16[2,4,8,8], index: 2, kind: input, shape index: {}]
  %s3 = inlined_call_operand.vmem [shape: bf16[2,4,8,8], index: 3, kind: output, shape index: {}]
  %s4 = sld [smem:[#allocation0]]
  $region53: #{decoder_layer_forward.13} parent=0
    _
  %s6 = ssub.s32 1, %s4
  %s7 = scalar_select 0, %s6, %s4
  loop: start=0, step=1, limit=10
  $region2: #{decoder_layer_forward.13} parent=0 // loop_pre_header
    _
  $region3: #{decoder_layer_forward.13} parent=0 // loop_header
    %s9 = sphi 0, %s13
    %p10 = scmp.ge.s32.totalorder %s9, 10
    %s16 = sphi 0, %s42
    %s17 = sphi 0, %s38
    %s18 = sphi 0, %s34
    %s19 = sphi 0, %s30
    %s20 = sphi 0, %s16
    %s21 = sphi 0, %s17
    %s22 = sphi 0, %s18
    %s23 = sphi 0, %s19
    %s24 = sphi 0, %s20
    %s25 = sphi 0, %s21
    %s26 = sphi 0, %s22
    %s27 = sphi 0, %s23
    %s49 = sphi 0, %s51
    %s52 = sphi 0, %s49
    %s53 = sphi 0, %s52
    %s69 = sphi 0, %s53
    %s79 = sphi 0, %s81
    %s82 = sphi 0, %s79
    %s83 = sphi 0, %s82
    %s99 = sphi 0, %s83
    %s109 = sphi 0, %s111
    %s112 = sphi 0, %s109
    %s113 = sphi 0, %s112
    %s129 = sphi 0, %s113
    %s139 = sphi 0, %s141
    %s142 = sphi 0, %s139
    %s143 = sphi 0, %s142
    %s159 = sphi 0, %s143
  $region4: #{decoder_layer_forward.13} parent=0 // loop_header_branch
    %12 = sbr.rel (%p10) target = $region8
  $region5: #{decoder_layer_forward.13} parent=0 // loop_body
    %s14 = ssub.s32 %s9, 1
    %s15 = ssub.s32 %s9, 2
    %s28 = sadd.s32 1, %s19
    %p29 = scmp.ge.s32.totalorder %s28, 1
    %s30 = scalar_select %p29, 0, %s28
    %s31 = sadd.s32 1, %s18
    %s32 = scalar_select %p29, %s31, %s18
    %p33 = scmp.ge.s32.totalorder %s32, 1
    %s34 = scalar_select %p33, 0, %s32
    %s35 = sadd.s32 1, %s17
    %s36 = scalar_select %p33, %s35, %s17
    %p37 = scmp.ge.s32.totalorder %s36, 4
    %s38 = scalar_select %p37, 0, %s36
    %s39 = sadd.s32 1, %s16
    %s40 = scalar_select %p37, %s39, %s16
    %p41 = scmp.ge.s32.totalorder %s40, 2
    %s42 = scalar_select %p41, 0, %s40
    %s43 = ssub.s32 %s16, %s42
    %s44 = ssub.s32 %s17, %s38
    %s45 = sor.u32 %s43, %s44
    %s46 = ssub.s32 %s18, %s34
    %s47 = sor.u32 %s45, %s46
    %p48 = scmp.eq.s32.totalorder %s47, 0
    %s50 = sadd.s32 %s49, 1
    %s51 = scalar_select %p48, %s49, %s50
    %p54 = pneg %p48
    %p55 = scmp.eq.s32.totalorder %s9, 7
    %p56 = por %p54, %p55
    %p57 = scmp.ne.s32.totalorder %s49, %s52
    %p58 = scmp.eq.s32.totalorder %s9, 0
    %p59 = por %p57, %p58
    %p60 = scmp.ne.s32.totalorder %s49, %s52
    %p61 = scmp.eq.s32.totalorder %s14, 7
    %p62 = por %p60, %p61
    %p63 = scmp.ne.s32.totalorder %s52, %s53
    %p64 = scmp.eq.s32.totalorder %s14, 0
    %p65 = por %p63, %p64
    %p66 = scmp.ne.s32.totalorder %s52, %s53
    %p67 = scmp.eq.s32.totalorder %s15, 7
    %p68 = por %p66, %p67
    %p70 = scmp.ne.s32.totalorder %s53, %s69
    %p71 = scmp.eq.s32.totalorder %s15, 0
    %p72 = por %p70, %p71
    %s73 = ssub.s32 %s16, %s42
    %s74 = ssub.s32 %s17, %s38
    %s75 = sor.u32 %s73, %s74
    %s76 = ssub.s32 %s19, %s30
    %s77 = sor.u32 %s75, %s76
    %p78 = scmp.eq.s32.totalorder %s77, 0
    %s80 = sadd.s32 %s79, 1
    %s81 = scalar_select %p78, %s79, %s80
    %p84 = pneg %p78
    %p85 = scmp.eq.s32.totalorder %s9, 7
    %p86 = por %p84, %p85
    %p87 = scmp.ne.s32.totalorder %s79, %s82
    %p88 = scmp.eq.s32.totalorder %s9, 0
    %p89 = por %p87, %p88
    %p90 = scmp.ne.s32.totalorder %s79, %s82
    %p91 = scmp.eq.s32.totalorder %s14, 7
    %p92 = por %p90, %p91
    %p93 = scmp.ne.s32.totalorder %s82, %s83
    %p94 = scmp.eq.s32.totalorder %s14, 0
    %p95 = por %p93, %p94
    %p96 = scmp.ne.s32.totalorder %s82, %s83
    %p97 = scmp.eq.s32.totalorder %s15, 7
    %p98 = por %p96, %p97
    %p100 = scmp.ne.s32.totalorder %s83, %s99
    %p101 = scmp.eq.s32.totalorder %s15, 0
    %p102 = por %p100, %p101
    %s103 = ssub.s32 %s16, %s42
    %s104 = ssub.s32 %s17, %s38
    %s105 = sor.u32 %s103, %s104
    %s106 = ssub.s32 %s19, %s30
    %s107 = sor.u32 %s105, %s106
    %p108 = scmp.eq.s32.totalorder %s107, 0
    %s110 = sadd.s32 %s109, 1
    %s111 = scalar_select %p108, %s109, %s110
    %p114 = pneg %p108
    %p115 = scmp.eq.s32.totalorder %s9, 7
    %p116 = por %p114, %p115
    %p117 = scmp.ne.s32.totalorder %s109, %s112
    %p118 = scmp.eq.s32.totalorder %s9, 0
    %p119 = por %p117, %p118
    %p120 = scmp.ne.s32.totalorder %s109, %s112
    %p121 = scmp.eq.s32.totalorder %s14, 7
    %p122 = por %p120, %p121
    %p123 = scmp.ne.s32.totalorder %s112, %s113
    %p124 = scmp.eq.s32.totalorder %s14, 0
    %p125 = por %p123, %p124
    %p126 = scmp.ne.s32.totalorder %s112, %s113
    %p127 = scmp.eq.s32.totalorder %s15, 7
    %p128 = por %p126, %p127
    %p130 = scmp.ne.s32.totalorder %s113, %s129
    %p131 = scmp.eq.s32.totalorder %s15, 0
    %p132 = por %p130, %p131
    %s133 = ssub.s32 %s16, %s42
    %s134 = ssub.s32 %s17, %s38
    %s135 = sor.u32 %s133, %s134
    %s136 = ssub.s32 %s18, %s34
    %s137 = sor.u32 %s135, %s136
    %p138 = scmp.eq.s32.totalorder %s137, 0
    %s140 = sadd.s32 %s139, 1
    %s141 = scalar_select %p138, %s139, %s140
    %p144 = pneg %p138
    %p145 = scmp.eq.s32.totalorder %s9, 7
    %p146 = por %p144, %p145
    %p147 = scmp.ne.s32.totalorder %s139, %s142
    %p148 = scmp.eq.s32.totalorder %s9, 0
    %p149 = por %p147, %p148
    %p150 = scmp.ne.s32.totalorder %s139, %s142
    %p151 = scmp.eq.s32.totalorder %s14, 7
    %p152 = por %p150, %p151
    %p153 = scmp.ne.s32.totalorder %s142, %s143
    %p154 = scmp.eq.s32.totalorder %s14, 0
    %p155 = por %p153, %p154
    %p156 = scmp.ne.s32.totalorder %s142, %s143
    %p157 = scmp.eq.s32.totalorder %s15, 7
    %p158 = por %p156, %p157
    %p160 = scmp.ne.s32.totalorder %s143, %s159
    %p161 = scmp.eq.s32.totalorder %s15, 0
    %p162 = por %p160, %p161
    %p163 = scmp.le.s32.totalorder 1, %s9
    %p164 = scmp.lt.s32.totalorder %s9, 9
    %p165 = pnand %p163, %p164
    %p166 = pneg %p165
    // Predicated region
    $region9: #{decoder_layer_forward.13} parent=5 // pred_check
      _
    $region10: #{decoder_layer_forward.13} parent=5 // pred_check_branch
      %168 = sbr.rel (%p165) target = $region12
    $region11: #{decoder_layer_forward.13} parent=5 // pred_region
      %s169 = ssub.s32 %s9, 1
    $region12: #{decoder_layer_forward.13} parent=5 // pred_fallthru
      _
    %p170 = scmp.lt.s32.totalorder %s9, 8
    // Predicated region
    $region13: #{decoder_layer_forward.13} parent=5 // pred_check
      %p171 = pneg %p170
    $region14: #{decoder_layer_forward.13} parent=5 // pred_check_branch
      %173 = sbr.rel (%p171) target = $region16
    $region15: #{decoder_layer_forward.13} parent=5 // pred_region
      // Predicated region
      $region17: #{decoder_layer_forward.13} parent=15 // pred_check
        %p174 = pneg %p59
      $region18: #{decoder_layer_forward.13} parent=15 // pred_check_branch
        %176 = sbr.rel (%p174) target = $region20
      $region19: #{decoder_layer_forward.13} parent=15 // pred_region
        %p177 = scmp.lt.s32.totalorder %s16, 1
        %s178 = scalar_select %p177, %s16, 1
        %p179 = scmp.lt.s32.totalorder %s17, 3
        %s180 = scalar_select %p179, %s17, 3
        %p181 = scmp.lt.s32.totalorder %s18, 0
        %s182 = scalar_select %p181, %s18, 0
        %s183 = sadd.s32 %s182, %s180
        %s184 = smul.addr %s178, 4
        %s185 = sadd.s32 %s183, %s184
        %s186 = smul.addr %s185, 4
        %s187 = scalar_lea.vmem %s0, %s186
      $region20: #{decoder_layer_forward.13} parent=15 // pred_fallthru
        _
      // Predicated region
      $region21: #{decoder_layer_forward.13} parent=15 // pred_check
        %p188 = pneg %p89
      $region22: #{decoder_layer_forward.13} parent=15 // pred_check_branch
        %190 = sbr.rel (%p188) target = $region24
      $region23: #{decoder_layer_forward.13} parent=15 // pred_region
        %p191 = scmp.lt.s32.totalorder %s16, 1
        %s192 = scalar_select %p191, %s16, 1
        %p193 = scmp.lt.s32.totalorder %s17, 3
        %s194 = scalar_select %p193, %s17, 3
        %p195 = scmp.lt.s32.totalorder %s19, 0
        %s196 = scalar_select %p195, %s19, 0
        %s197 = sadd.s32 %s196, %s194
        %s198 = smul.addr %s192, 4
        %s199 = sadd.s32 %s197, %s198
        %s200 = smul.addr %s199, 4
        %s201 = scalar_lea.vmem %s1, %s200
      $region24: #{decoder_layer_forward.13} parent=15 // pred_fallthru
        _
      // Predicated region
      $region25: #{decoder_layer_forward.13} parent=15 // pred_check
        %p202 = pneg %p119
      $region26: #{decoder_layer_forward.13} parent=15 // pred_check_branch
        %204 = sbr.rel (%p202) target = $region28
      $region27: #{decoder_layer_forward.13} parent=15 // pred_region
        %p205 = scmp.lt.s32.totalorder %s16, 1
        %s206 = scalar_select %p205, %s16, 1
        %p207 = scmp.lt.s32.totalorder %s17, 3
        %s208 = scalar_select %p207, %s17, 3
        %p209 = scmp.lt.s32.totalorder %s19, 0
        %s210 = scalar_select %p209, %s19, 0
        %s211 = sadd.s32 %s210, %s208
        %s212 = smul.addr %s206, 4
        %s213 = sadd.s32 %s211, %s212
        %s214 = smul.addr %s213, 4
        %s215 = scalar_lea.vmem %s2, %s214
      $region28: #{decoder_layer_forward.13} parent=15 // pred_fallthru
        _
    $region16: #{decoder_layer_forward.13} parent=5 // pred_fallthru
      _
    %p216 = scmp.le.s32.totalorder 1, %s9
    %p217 = scmp.lt.s32.totalorder %s9, 9
    %p218 = pnand %p216, %p217
    %p219 = pneg %p218
    // Predicated region
    $region29: #{decoder_layer_forward.13} parent=5 // pred_check
      _
    $region30: #{decoder_layer_forward.13} parent=5 // pred_check_branch
      %221 = sbr.rel (%p218) target = $region32
    $region31: #{decoder_layer_forward.13} parent=5 // pred_region
      %s222 = ssub.s32 %s9, 1
      %p223 = scmp.lt.s32.totalorder %s20, 1
      %s224 = scalar_select %p223, %s20, 1
      %p225 = scmp.lt.s32.totalorder %s21, 3
      %s226 = scalar_select %p225, %s21, 3
      %p227 = scmp.lt.s32.totalorder %s22, 0
      %s228 = scalar_select %p227, %s22, 0
      %s229 = sadd.s32 %s228, %s226
      %s230 = smul.addr %s224, 4
      %s231 = sadd.s32 %s229, %s230
      %s232 = smul.addr %s231, 4
      %s233 = scalar_lea.vmem %s0, %s232
      %p234 = pneg %p65
      %p235 = pneg %p62
      %p236 = scmp.lt.s32.totalorder %s20, 1
      %s237 = scalar_select %p236, %s20, 1
      %p238 = scmp.lt.s32.totalorder %s21, 3
      %s239 = scalar_select %p238, %s21, 3
      %p240 = scmp.lt.s32.totalorder %s23, 0
      %s241 = scalar_select %p240, %s23, 0
      %s242 = sadd.s32 %s241, %s239
      %s243 = smul.addr %s237, 4
      %s244 = sadd.s32 %s242, %s243
      %s245 = smul.addr %s244, 4
      %s246 = scalar_lea.vmem %s1, %s245
      %p247 = pneg %p95
      %p248 = pneg %p92
      %p249 = scmp.lt.s32.totalorder %s20, 1
      %s250 = scalar_select %p249, %s20, 1
      %p251 = scmp.lt.s32.totalorder %s21, 3
      %s252 = scalar_select %p251, %s21, 3
      %p253 = scmp.lt.s32.totalorder %s23, 0
      %s254 = scalar_select %p253, %s23, 0
      %s255 = sadd.s32 %s254, %s252
      %s256 = smul.addr %s250, 4
      %s257 = sadd.s32 %s255, %s256
      %s258 = smul.addr %s257, 4
      %s259 = scalar_lea.vmem %s2, %s258
      %p260 = pneg %p125
      %p261 = pneg %p122
      %p262 = pneg %p155
      %p263 = pneg %p152
      %p264 = scmp.lt.s32.totalorder %s20, 1
      %s265 = scalar_select %p264, %s20, 1
      %p266 = scmp.lt.s32.totalorder %s21, 3
      %s267 = scalar_select %p266, %s21, 3
      %p268 = scmp.lt.s32.totalorder %s22, 0
      %s269 = scalar_select %p268, %s22, 0
      %s270 = sadd.s32 %s269, %s267
      %s271 = smul.addr %s265, 4
      %s272 = sadd.s32 %s270, %s271
      %s273 = smul.addr %s272, 4
      %s274 = scalar_lea.vmem %s3, %s273
      %p275 = scmp.lt.s32.totalorder %s20, 1
      %s276 = scalar_select %p275, %s20, 1
      %p277 = scmp.lt.s32.totalorder %s21, 3
      %s278 = scalar_select %p277, %s21, 3
      %p279 = scmp.lt.s32.totalorder %s22, 0
      %s280 = scalar_select %p279, %s22, 0
      %s281 = sadd.s32 %s280, %s278
      %s282 = smul.addr %s276, 4
      %s283 = sadd.s32 %s281, %s282
      %s284 = smul.addr %s283, 4
      %s285 = scalar_lea.vmem %s0, %s284
      %p286 = scmp.lt.s32.totalorder %s20, 1
      %s287 = scalar_select %p286, %s20, 1
      %p288 = scmp.lt.s32.totalorder %s21, 3
      %s289 = scalar_select %p288, %s21, 3
      %p290 = scmp.lt.s32.totalorder %s23, 0
      %s291 = scalar_select %p290, %s23, 0
      %s292 = sadd.s32 %s291, %s289
      %s293 = smul.addr %s287, 4
      %s294 = sadd.s32 %s292, %s293
      %s295 = smul.addr %s294, 4
      %s296 = scalar_lea.vmem %s1, %s295
      %p297 = scmp.lt.s32.totalorder %s20, 1
      %s298 = scalar_select %p297, %s20, 1
      %p299 = scmp.lt.s32.totalorder %s21, 3
      %s300 = scalar_select %p299, %s21, 3
      %p301 = scmp.lt.s32.totalorder %s23, 0
      %s302 = scalar_select %p301, %s23, 0
      %s303 = sadd.s32 %s302, %s300
      %s304 = smul.addr %s298, 4
      %s305 = sadd.s32 %s303, %s304
      %s306 = smul.addr %s305, 4
      %s307 = scalar_lea.vmem %s2, %s306
      %p308 = scmp.lt.s32.totalorder %s20, 1
      %s309 = scalar_select %p308, %s20, 1
      %p310 = scmp.lt.s32.totalorder %s21, 3
      %s311 = scalar_select %p310, %s21, 3
      %p312 = scmp.lt.s32.totalorder %s22, 0
      %s313 = scalar_select %p312, %s22, 0
      %s314 = sadd.s32 %s313, %s311
      %s315 = smul.addr %s309, 4
      %s316 = sadd.s32 %s314, %s315
      %s317 = smul.addr %s316, 4
      %s318 = scalar_lea.vmem %s3, %s317
      %p320 = scmp.eq.s32.totalorder %s23, 0
      // Predicated region
      $region33: #{decoder_layer_forward.13} parent=31 // pred_check
        %p321 = pneg %p320
      $region34: #{decoder_layer_forward.13} parent=31 // pred_check_branch
        %323 = sbr.rel (%p321) target = $region36
      $region35: #{decoder_layer_forward.13} parent=31 // pred_region
        %vm324 = vcmask 7168
        %325 = vst.msk [vmem:[#allocation2] sm:$0xff] %vm324, -inf
        %326 = vst.msk [vmem:[#allocation3] sm:$0xff] %vm324, 0.0
        %vm327 = vcmask 64512
        %328 = vst.msk [vmem:[#allocation4] sm:$0xff] %vm327, 0.0
      $region36: #{decoder_layer_forward.13} parent=31 // pred_fallthru
        _
      %v329 = vld [vmem:[%s285] sm:$0xf]
      %v330 = vunpack.c.l.bf16 %v329
      %v331 = vmul.f32 %v330, 0.35355338
      %v332 = vpack.c.bf16 %v331, %v331
      %v333 = vld [vmem:[%s296] sm:$0xf]
      %v334 = vld [vmem:[%s307] sm:$0xf]
      %vm335 = vcmask 64512
      %v337 = vsel %vm335, %v332, 0
      %v340 = vsel %vm335, %v333, 0
      %342 = vmatprep.subr.bf16.mxu0 0
      %343 = vmatpush1.bf16.xpose.msra.mxu0 %v340
      %344 = vmatprep.subr.bf16.mxu0 0
      %345 = vmatpush1.bf16.xpose.msra.mxu0 0
      %346 = vmatprep.subr.bf16.mxu0 0
      %347 = vmatpush1.bf16.xpose.msra.mxu0 0
      %348 = vmatprep.subr.bf16.mxu0 0
      %349 = vmatpush1.bf16.xpose.msra.mxu0 0
      %350 = vmatprep.subr.bf16.mxu0 0
      %351 = vmatpush1.bf16.xpose.msra.mxu0 0
      %352 = vmatprep.subr.bf16.mxu0 0
      %353 = vmatpush1.bf16.xpose.msra.mxu0 0
      %354 = vmatprep.subr.bf16.mxu0 0
      %355 = vmatpush1.bf16.xpose.msra.mxu0 0
      %356 = vmatprep.subr.bf16.mxu0 0
      %357 = vmatpush1.bf16.xpose.msra.mxu0 0
      %358 = vmatprep.subr.bf16.mxu0 0
      %359 = vmatpush1.bf16.xpose.msra.mxu0 0
      %360 = vmatprep.subr.bf16.mxu0 0
      %361 = vmatpush1.bf16.xpose.msra.mxu0 0
      %362 = vmatprep.subr.bf16.mxu0 0
      %363 = vmatpush1.bf16.xpose.msra.mxu0 0
      %364 = vmatprep.subr.bf16.mxu0 0
      %365 = vmatpush1.bf16.xpose.msra.mxu0 0
      %366 = vmatprep.subr.bf16.mxu0 0
      %367 = vmatpush1.bf16.xpose.msra.mxu0 0
      %368 = vmatprep.subr.bf16.mxu0 0
      %369 = vmatpush1.bf16.xpose.msra.mxu0 0
      %370 = vmatprep.subr.bf16.mxu0 0
      %371 = vmatpush1.bf16.xpose.msra.mxu0 0
      %372 = vmatprep.subr.bf16.mxu0 0
      %373 = vmatpush1.bf16.xpose.msra.mxu0 0
      %374 = vmatprep.mubr.bf16.mxu0 0
      %375 = vmatmul.mubr.bf16.gmra.mrb[0].mxu0 %v337
      %v376 = vpop.f32.mrb[0].mxu0
      %v377 = vadd.f32 0.0, %v376
      %v378 = vpop.f32.mrb[0].mxu0
      %v379 = vpop.f32.mrb[0].mxu0
      %v380 = vpop.f32.mrb[0].mxu0
      %381 = vdwg.mxu0
      %v382 = vld [vmem:[#allocation2] sm:$0xff]
      %v383 = vsel %vm335, %v377, -inf
      %384 = vmax.xlane.f32.xlu0 %v383
      %v385 = vpop.xlane.xlu0 %384
      %v386 = vmax.f32 %v382, %v385
      %v387 = vsub.f32 %v382, %v386
      %v388 = vmul.f32 %v387, 1.442695
      %v389 = vpow.pop %v388
      %391 = vset.pattern.permute.xlu0 0
      %392 = vperm.xlu0 %391, %v386
      %v393 = vpop.permute.xlu0 %392
      %v395 = vsub.f32 %v377, %v393
      %v396 = vmul.f32 %v395, 1.442695
      %v397 = vpow.pop %v396
      %v398 = vld [vmem:[#allocation3] sm:$0xff]
      %v399 = vmul.f32 %v389, %v398
      %v400 = vsel %vm335, %v397, 0.0
      %401 = vadd.xlane.f32.xlu0 %v400
      %v402 = vpop.xlane.xlu0 %401
      %v403 = vadd.f32 %v399, %v402
      %vm404 = vcmask 7168
      %405 = vst.msk [vmem:[#allocation3] sm:$0xff] %vm404, %v403
      %v406 = vld [vmem:[#allocation4] sm:$0xff]
      %408 = vset.pattern.permute.xlu0 0
      %409 = vperm.xlu0 %408, %v389
      %v410 = vpop.permute.xlu0 %409
      %v412 = vmul.f32 %v410, %v406
      %v413 = vpack.c.bf16 %v397, %v397
      %v415 = vsel %vm335, %v413, 0
      %vm417 = vcmask 1043456
      %v419 = vsel %vm417, %v334, 0
      %421 = vmatprep.subr.bf16.mxu0 0
      %422 = vmatpush1.bf16.msra.mxu0 %v419
      %423 = vmatprep.subr.bf16.mxu0 0
      %424 = vmatpush1.bf16.msra.mxu0 0
      %425 = vmatprep.subr.bf16.mxu0 0
      %426 = vmatpush1.bf16.msra.mxu0 0
      %427 = vmatprep.subr.bf16.mxu0 0
      %428 = vmatpush1.bf16.msra.mxu0 0
      %429 = vmatprep.subr.bf16.mxu0 0
      %430 = vmatpush1.bf16.msra.mxu0 0
      %431 = vmatprep.subr.bf16.mxu0 0
      %432 = vmatpush1.bf16.msra.mxu0 0
      %433 = vmatprep.subr.bf16.mxu0 0
      %434 = vmatpush1.bf16.msra.mxu0 0
      %435 = vmatprep.subr.bf16.mxu0 0
      %436 = vmatpush1.bf16.msra.mxu0 0
      %437 = vmatprep.subr.bf16.mxu0 0
      %438 = vmatpush1.bf16.msra.mxu0 0
      %439 = vmatprep.subr.bf16.mxu0 0
      %440 = vmatpush1.bf16.msra.mxu0 0
      %441 = vmatprep.subr.bf16.mxu0 0
      %442 = vmatpush1.bf16.msra.mxu0 0
      %443 = vmatprep.subr.bf16.mxu0 0
      %444 = vmatpush1.bf16.msra.mxu0 0
      %445 = vmatprep.subr.bf16.mxu0 0
      %446 = vmatpush1.bf16.msra.mxu0 0
      %447 = vmatprep.subr.bf16.mxu0 0
      %448 = vmatpush1.bf16.msra.mxu0 0
      %449 = vmatprep.subr.bf16.mxu0 0
      %450 = vmatpush1.bf16.msra.mxu0 0
      %451 = vmatprep.subr.bf16.mxu0 0
      %452 = vmatpush1.bf16.msra.mxu0 0
      %453 = vmatprep.mubr.bf16.mxu0 0
      %454 = vmatmul.mubr.bf16.gmra.mrb[0].mxu0 %v415
      %v455 = vpop.f32.mrb[0].mxu0
      %v456 = vadd.f32 0.0, %v455
      %v457 = vpop.f32.mrb[0].mxu0
      %v458 = vpop.f32.mrb[0].mxu0
      %v459 = vpop.f32.mrb[0].mxu0
      %460 = vdwg.mxu0
      %v461 = vadd.f32 %v412, %v456
      %462 = vst.msk [vmem:[#allocation4] sm:$0xff] %vm335, %v461
      %463 = vst.msk [vmem:[#allocation2] sm:$0xff] %vm404, %v386
      // Predicated region
      $region37: #{decoder_layer_forward.13} parent=31 // pred_check
        %p464 = pneg %p320
      $region38: #{decoder_layer_forward.13} parent=31 // pred_check_branch
        %466 = sbr.rel (%p464) target = $region40
      $region39: #{decoder_layer_forward.13} parent=31 // pred_region
        %v467 = vld [vmem:[#allocation4] sm:$0xff]
        %v468 = vld [vmem:[#allocation3] sm:$0xff]
        %470 = vset.pattern.permute.xlu0 0
        %471 = vperm.xlu0 %470, %v468
        %v472 = vpop.permute.xlu0 %471
        %v474 = vrcp.pop %v472
        %v475 = vmul.f32 %v467, %v474
        %v476 = vpack.c.bf16 %v475, %v475
        %vm477 = vcmask 60416
        %478 = vst.msk [vmem:[%s318] sm:$0xf] %vm477, %v476
      $region40: #{decoder_layer_forward.13} parent=31 // pred_fallthru
        _
      %p479 = scmp.lt.s32.totalorder %s20, 1
      %s480 = scalar_select %p479, %s20, 1
      %p481 = scmp.lt.s32.totalorder %s21, 3
      %s482 = scalar_select %p481, %s21, 3
      %p483 = scmp.lt.s32.totalorder %s22, 0
      %s484 = scalar_select %p483, %s22, 0
      %s485 = sadd.s32 %s484, %s482
      %s486 = smul.addr %s480, 4
      %s487 = sadd.s32 %s485, %s486
      %s488 = smul.addr %s487, 4
      %s489 = scalar_lea.vmem %s3, %s488
      // Predicated region
      $region41: #{decoder_layer_forward.13} parent=31 // pred_check
        %p490 = pneg %p152
      $region42: #{decoder_layer_forward.13} parent=31 // pred_check_branch
        %492 = sbr.rel (%p490) target = $region44
      $region43: #{decoder_layer_forward.13} parent=31 // pred_region
        _
      $region44: #{decoder_layer_forward.13} parent=31 // pred_fallthru
        _
    $region32: #{decoder_layer_forward.13} parent=5 // pred_fallthru
      _
    %p493 = scmp.le.s32.totalorder 2, %s9
    // Predicated region
    $region45: #{decoder_layer_forward.13} parent=5 // pred_check
      %p494 = pneg %p493
    $region46: #{decoder_layer_forward.13} parent=5 // pred_check_branch
      %496 = sbr.rel (%p494) target = $region48
    $region47: #{decoder_layer_forward.13} parent=5 // pred_region
      %s497 = ssub.s32 %s9, 2
      // Predicated region
      $region49: #{decoder_layer_forward.13} parent=47 // pred_check
        %p498 = pneg %p158
      $region50: #{decoder_layer_forward.13} parent=47 // pred_check_branch
        %500 = sbr.rel (%p498) target = $region52
      $region51: #{decoder_layer_forward.13} parent=47 // pred_region
        %p501 = scmp.lt.s32.totalorder %s24, 1
        %s502 = scalar_select %p501, %s24, 1
        %p503 = scmp.lt.s32.totalorder %s25, 3
        %s504 = scalar_select %p503, %s25, 3
        %p505 = scmp.lt.s32.totalorder %s26, 0
        %s506 = scalar_select %p505, %s26, 0
        %s507 = sadd.s32 %s506, %s504
        %s508 = smul.addr %s502, 4
        %s509 = sadd.s32 %s507, %s508
        %s510 = smul.addr %s509, 4
        %s511 = scalar_lea.vmem %s3, %s510
      $region52: #{decoder_layer_forward.13} parent=47 // pred_fallthru
        _
    $region48: #{decoder_layer_forward.13} parent=5 // pred_fallthru
      _
  $region6: #{decoder_layer_forward.13} parent=0 // loop_footer
    %s13 = sadd.s32 1, %s9
  $region7: #{decoder_layer_forward.13} parent=0 // loop_footer_branch
    %8 = sbr.rel target = $region3
  $region8: #{decoder_layer_forward.13} parent=0 // loop_exit
    _

// kernel: decoder_layer_forward.15
$region0: #{decoder_layer_forward.15}
  #allocation0 [shape = 'u32[]', space=smem, size = 0x4, offset = 0x4, fixed_abs, tag = 'smem constant byte address 0x4 - core index']
  #allocation1 [shape = 'u32[144,128]{1,0:T(1,128)}', space=vmem, size = 0x12000, scoped, tag = 'internal scratch']
  #allocation2 [shape = 'f32[16,32]{1,0:T(8,128)}', space=vmem, size = 0x2000, scoped, tag = 'scratch operand']
  %s0 = inlined_call_operand.vmem [shape: f32[16,32], index: 0, kind: input, shape index: {}, may-alias: {0,7}]
  %s1 = inlined_call_operand.vmem [shape: bf16[32,64], index: 1, kind: input, shape index: {}]
  %s2 = inlined_call_operand.vmem [shape: f32[1,64], index: 2, kind: input, shape index: {}]
  %s3 = inlined_call_operand.vmem [shape: bf16[64,32], index: 3, kind: input, shape index: {}]
  %s4 = inlined_call_operand.vmem [shape: f32[1,32], index: 4, kind: input, shape index: {}]
  %s5 = inlined_call_operand.vmem [shape: f32[1,32], index: 5, kind: input, shape index: {}]
  %s6 = inlined_call_operand.vmem [shape: f32[1,32], index: 6, kind: input, shape index: {}]
  %s7 = inlined_call_operand.vmem [shape: f32[16,32], index: 7, kind: output, shape index: {}, may-alias: {0,7}]
  %s8 = sld [smem:[#allocation0]]
  $region46: #{decoder_layer_forward.15} parent=0
    _
  %s10 = ssub.s32 1, %s8
  %s11 = scalar_select 0, %s10, %s8
  // Predicated region
  $region2: #{decoder_layer_forward.15} parent=0 // pred_check
    _
  $region3: #{decoder_layer_forward.15} parent=0 // pred_check_branch
    %13 = sbr.rel (0) target = $region5
  $region4: #{decoder_layer_forward.15} parent=0 // pred_region
    _
  $region5: #{decoder_layer_forward.15} parent=0 // pred_fallthru
    _
  // Predicated region
  $region6: #{decoder_layer_forward.15} parent=0 // pred_check
    _
  $region7: #{decoder_layer_forward.15} parent=0 // pred_check_branch
    %15 = sbr.rel (0) target = $region9
  $region8: #{decoder_layer_forward.15} parent=0 // pred_region
    _
  $region9: #{decoder_layer_forward.15} parent=0 // pred_fallthru
    _
  // Predicated region
  $region10: #{decoder_layer_forward.15} parent=0 // pred_check
    _
  $region11: #{decoder_layer_forward.15} parent=0 // pred_check_branch
    %17 = sbr.rel (0) target = $region13
  $region12: #{decoder_layer_forward.15} parent=0 // pred_region
    _
  $region13: #{decoder_layer_forward.15} parent=0 // pred_fallthru
    _
  // Predicated region
  $region14: #{decoder_layer_forward.15} parent=0 // pred_check
    _
  $region15: #{decoder_layer_forward.15} parent=0 // pred_check_branch
    %19 = sbr.rel (0) target = $region17
  $region16: #{decoder_layer_forward.15} parent=0 // pred_region
    _
  $region17: #{decoder_layer_forward.15} parent=0 // pred_fallthru
    _
  // Predicated region
  $region18: #{decoder_layer_forward.15} parent=0 // pred_check
    _
  $region19: #{decoder_layer_forward.15} parent=0 // pred_check_branch
    %21 = sbr.rel (0) target = $region21
  $region20: #{decoder_layer_forward.15} parent=0 // pred_region
    _
  $region21: #{decoder_layer_forward.15} parent=0 // pred_fallthru
    _
  // Predicated region
  $region22: #{decoder_layer_forward.15} parent=0 // pred_check
    _
  $region23: #{decoder_layer_forward.15} parent=0 // pred_check_branch
    %23 = sbr.rel (0) target = $region25
  $region24: #{decoder_layer_forward.15} parent=0 // pred_region
    _
  $region25: #{decoder_layer_forward.15} parent=0 // pred_fallthru
    _
  // Predicated region
  $region26: #{decoder_layer_forward.15} parent=0 // pred_check
    _
  $region27: #{decoder_layer_forward.15} parent=0 // pred_check_branch
    %25 = sbr.rel (0) target = $region29
  $region28: #{decoder_layer_forward.15} parent=0 // pred_region
    _
  $region29: #{decoder_layer_forward.15} parent=0 // pred_fallthru
    _
  %p27 = scmp.eq.s32.totalorder 0, 0
  // Predicated region
  $region30: #{decoder_layer_forward.15} parent=0 // pred_check
    %p28 = pneg %p27
  $region31: #{decoder_layer_forward.15} parent=0 // pred_check_branch
    %30 = sbr.rel (%p28) target = $region33
  $region32: #{decoder_layer_forward.15} parent=0 // pred_region
    %vm31 = vcmask 261120
    %32 = vst.msk [vmem:[#allocation2] sm:$0xff] %vm31, 0.0
    %33 = vst.msk [vmem:[#allocation2 + $0x8] sm:$0xff] %vm31, 0.0
  $region33: #{decoder_layer_forward.15} parent=0 // pred_fallthru
    _
  %v34 = vld [vmem:[%s0] sm:$0xff]
  %v35 = vld [vmem:[%s0 + $0x8] sm:$0xff]
  %v36 = vpack.c.bf16 %v35, %v34
  %v37 = vld [vmem:[%s1] sm:$0xf]
  %v38 = vld [vmem:[%s1 + $0x4] sm:$0xf]
  %v39 = vld [vmem:[%s1 + $0x8] sm:$0xf]
  %v40 = vld [vmem:[%s1 + $0xc] sm:$0xf]
  %v41 = vld [vmem:[%s2] sm:$0x1]
  %v43 = vlaneseq
  %v44 = vshrl.u32 %v43, 7
  %v45 = vsub.s32 0, %v44
  %v46 = vrot.slane %v41, %v45
  %v52 = vunpack.c.l.b16 %v37
  %v53 = vunpack.c.l.b16 %v38
  %v54 = vunpack.c.l.b16 %v39
  %v55 = vunpack.c.l.b16 %v40
  %v56 = vpack.c.b16 %v53, %v52
  %v57 = vpack.c.b16 %v55, %v54
  %vm60 = vcmask 261120
  %v62 = vsel %vm60, %v36, 0
  %64 = vmatprep.subr.bf16.mxu0 0
  %65 = vmatpush1.bf16.msra.mxu0 %v56
  %66 = vmatprep.subr.bf16.mxu0 0
  %67 = vmatpush1.bf16.msra.mxu0 %v57
  %68 = vmatprep.subr.bf16.mxu0 0
  %69 = vmatpush1.bf16.msra.mxu0 0
  %70 = vmatprep.subr.bf16.mxu0 0
  %71 = vmatpush1.bf16.msra.mxu0 0
  %72 = vmatprep.subr.bf16.mxu0 0
  %73 = vmatpush1.bf16.msra.mxu0 0
  %74 = vmatprep.subr.bf16.mxu0 0
  %75 = vmatpush1.bf16.msra.mxu0 0
  %76 = vmatprep.subr.bf16.mxu0 0
  %77 = vmatpush1.bf16.msra.mxu0 0
  %78 = vmatprep.subr.bf16.mxu0 0
  %79 = vmatpush1.bf16.msra.mxu0 0
  %80 = vmatprep.subr.bf16.mxu0 0
  %81 = vmatpush1.bf16.msra.mxu0 0
  %82 = vmatprep.subr.bf16.mxu0 0
  %83 = vmatpush1.bf16.msra.mxu0 0
  %84 = vmatprep.subr.bf16.mxu0 0
  %85 = vmatpush1.bf16.msra.mxu0 0
  %86 = vmatprep.subr.bf16.mxu0 0
  %87 = vmatpush1.bf16.msra.mxu0 0
  %88 = vmatprep.subr.bf16.mxu0 0
  %89 = vmatpush1.bf16.msra.mxu0 0
  %90 = vmatprep.subr.bf16.mxu0 0
  %91 = vmatpush1.bf16.msra.mxu0 0
  %92 = vmatprep.subr.bf16.mxu0 0
  %93 = vmatpush1.bf16.msra.mxu0 0
  %94 = vmatprep.subr.bf16.mxu0 0
  %95 = vmatpush1.bf16.msra.mxu0 0
  %96 = vmatprep.mubr.bf16.mxu0 0
  %97 = vmatmul.mubr.bf16.gmra.mrb[0].mxu0 %v62
  %v98 = vpop.f32.mrb[0].mxu0
  %v99 = vadd.f32 %v46, %v98
  %v100 = vpop.f32.mrb[0].mxu0
  %v101 = vpop.f32.mrb[0].mxu0
  %v102 = vadd.f32 %v46, %v101
  %v103 = vpop.f32.mrb[0].mxu0
  %104 = vdwg.mxu0
  %v105 = vmax.f32 %v99, 0.0
  %v106 = vmax.f32 %v102, 0.0
  %v107 = vld [vmem:[#allocation2] sm:$0xff]
  %v108 = vld [vmem:[#allocation2 + $0x8] sm:$0xff]
  %v109 = vpack.c.bf16 %v106, %v105
  %v110 = vld [vmem:[%s3] sm:$0xf]
  %v111 = vld [vmem:[%s3 + $0x4] sm:$0xf]
  %v112 = vld [vmem:[%s3 + $0x8] sm:$0xf]
  %v113 = vld [vmem:[%s3 + $0xc] sm:$0xf]
  %v114 = vld [vmem:[%s3 + $0x10] sm:$0xf]
  %v115 = vld [vmem:[%s3 + $0x14] sm:$0xf]
  %v116 = vld [vmem:[%s3 + $0x18] sm:$0xf]
  %v117 = vld [vmem:[%s3 + $0x1c] sm:$0xf]
  %v126 = vunpack.c.l.b16 %v110
  %v127 = vunpack.c.l.b16 %v111
  %v128 = vunpack.c.l.b16 %v112
  %v129 = vunpack.c.l.b16 %v113
  %v130 = vunpack.c.l.b16 %v114
  %v131 = vunpack.c.l.b16 %v115
  %v132 = vunpack.c.l.b16 %v116
  %v133 = vunpack.c.l.b16 %v117
  %v134 = vpack.c.b16 %v127, %v126
  %v135 = vpack.c.b16 %v129, %v128
  %v136 = vpack.c.b16 %v131, %v130
  %v137 = vpack.c.b16 %v133, %v132
  %vm142 = vcmask 523264
  %v144 = vsel %vm142, %v109, 0
  %146 = vmatprep.subr.bf16.mxu0 0
  %147 = vmatpush1.bf16.msra.mxu0 %v134
  %148 = vmatprep.subr.bf16.mxu0 0
  %149 = vmatpush1.bf16.msra.mxu0 %v135
  %150 = vmatprep.subr.bf16.mxu0 0
  %151 = vmatpush1.bf16.msra.mxu0 %v136
  %152 = vmatprep.subr.bf16.mxu0 0
  %153 = vmatpush1.bf16.msra.mxu0 %v137
  %154 = vmatprep.subr.bf16.mxu0 0
  %155 = vmatpush1.bf16.msra.mxu0 0
  %156 = vmatprep.subr.bf16.mxu0 0
  %157 = vmatpush1.bf16.msra.mxu0 0
  %158 = vmatprep.subr.bf16.mxu0 0
  %159 = vmatpush1.bf16.msra.mxu0 0
  %160 = vmatprep.subr.bf16.mxu0 0
  %161 = vmatpush1.bf16.msra.mxu0 0
  %162 = vmatprep.subr.bf16.mxu0 0
  %163 = vmatpush1.bf16.msra.mxu0 0
  %164 = vmatprep.subr.bf16.mxu0 0
  %165 = vmatpush1.bf16.msra.mxu0 0
  %166 = vmatprep.subr.bf16.mxu0 0
  %167 = vmatpush1.bf16.msra.mxu0 0
  %168 = vmatprep.subr.bf16.mxu0 0
  %169 = vmatpush1.bf16.msra.mxu0 0
  %170 = vmatprep.subr.bf16.mxu0 0
  %171 = vmatpush1.bf16.msra.mxu0 0
  %172 = vmatprep.subr.bf16.mxu0 0
  %173 = vmatpush1.bf16.msra.mxu0 0
  %174 = vmatprep.subr.bf16.mxu0 0
  %175 = vmatpush1.bf16.msra.mxu0 0
  %176 = vmatprep.subr.bf16.mxu0 0
  %177 = vmatpush1.bf16.msra.mxu0 0
  %178 = vmatprep.mubr.bf16.mxu0 0
  %179 = vmatmul.mubr.bf16.gmra.mrb[0].mxu0 %v144
  %v180 = vpop.f32.mrb[0].mxu0
  %v181 = vadd.f32 0.0, %v180
  %v182 = vpop.f32.mrb[0].mxu0
  %v183 = vpop.f32.mrb[0].mxu0
  %v184 = vadd.f32 0.0, %v183
  %v185 = vpop.f32.mrb[0].mxu0
  %186 = vdwg.mxu0
  %v187 = vadd.f32 %v107, %v181
  %v188 = vadd.f32 %v108, %v184
  %189 = vst.msk [vmem:[#allocation2] sm:$0xff] %vm60, %v187
  %190 = vst.msk [vmem:[#allocation2 + $0x8] sm:$0xff] %vm60, %v188
  // Predicated region
  $region34: #{decoder_layer_forward.15} parent=0 // pred_check
    %p191 = pneg %p27
  $region35: #{decoder_layer_forward.15} parent=0 // pred_check_branch
    %193 = sbr.rel (%p191) target = $region37
  $region36: #{decoder_layer_forward.15} parent=0 // pred_region
    %v194 = vld [vmem:[%s0] sm:$0xff]
    %v195 = vld [vmem:[%s0 + $0x8] sm:$0xff]
    %v196 = vld [vmem:[#allocation2] sm:$0xff]
    %v197 = vld [vmem:[#allocation2 + $0x8] sm:$0xff]
    %v198 = vadd.f32 %v194, %v196
    %v199 = vadd.f32 %v195, %v197
    %v200 = vld [vmem:[%s4] sm:$0x1]
    %v202 = vlaneseq
    %v203 = vshrl.u32 %v202, 7
    %v204 = vsub.s32 0, %v203
    %v205 = vrot.slane %v200, %v204
    %v207 = vadd.f32 %v198, %v205
    %v208 = vadd.f32 %v199, %v205
    %v209 = vsel %vm60, %v207, 0.0
    %210 = vadd.xlane.f32.xlu0 %v209
    %v211 = vpop.xlane.xlu0 %210
    %v212 = vsel %vm60, %v208, 0.0
    %213 = vadd.xlane.f32.xlu0 %v212
    %v214 = vpop.xlane.xlu0 %213
    %v215 = vrcp.pop 32.0
    %v216 = vmul.f32 %v211, %v215
    %v217 = vmul.f32 %v214, %v215
    %v218 = vsub.f32 %v207, %v216
    %v219 = vsub.f32 %v208, %v217
    %v220 = vmul.f32 %v218, %v218
    %v221 = vmul.f32 %v219, %v219
    %v222 = vsel %vm60, %v220, 0.0
    %223 = vadd.xlane.f32.xlu0 %v222
    %v224 = vpop.xlane.xlu0 %223
    %v225 = vsel %vm60, %v221, 0.0
    %226 = vadd.xlane.f32.xlu0 %v225
    %v227 = vpop.xlane.xlu0 %226
    %v228 = vmul.f32 %v224, %v215
    %v229 = vmul.f32 %v227, %v215
    %v230 = vadd.f32 %v228, 1e-05
    %v231 = vadd.f32 %v229, 1e-05
    %v232 = vrsqrt.pop %v230
    %v233 = vrsqrt.pop %v231
    %v234 = vmul.f32 %v218, %v232
    %v235 = vmul.f32 %v219, %v233
    %v236 = vld [vmem:[%s5] sm:$0x1]
    %v238 = vlaneseq
    %v239 = vshrl.u32 %v238, 7
    %v240 = vsub.s32 0, %v239
    %v241 = vrot.slane %v236, %v240
    %v243 = vmul.f32 %v234, %v241
    %v244 = vmul.f32 %v235, %v241
    %v245 = vld [vmem:[%s6] sm:$0x1]
    %v247 = vlaneseq
    %v248 = vshrl.u32 %v247, 7
    %v249 = vsub.s32 0, %v248
    %v250 = vrot.slane %v245, %v249
    %v252 = vadd.f32 %v243, %v250
    %v253 = vadd.f32 %v244, %v250
    %254 = vst.msk [vmem:[%s7] sm:$0xff] %vm60, %v252
    %255 = vst.msk [vmem:[%s7 + $0x8] sm:$0xff] %vm60, %v253
  $region37: #{decoder_layer_forward.15} parent=0 // pred_fallthru
    _
  // Predicated region
  $region38: #{decoder_layer_forward.15} parent=0 // pred_check
    _
  $region39: #{decoder_layer_forward.15} parent=0 // pred_check_branch
    %257 = sbr.rel (0) target = $region41
  $region40: #{decoder_layer_forward.15} parent=0 // pred_region
    _
  $region41: #{decoder_layer_forward.15} parent=0 // pred_fallthru
    _
  // Predicated region
  $region42: #{decoder_layer_forward.15} parent=0 // pred_check
    _
  $region43: #{decoder_layer_forward.15} parent=0 // pred_check_branch
    %259 = sbr.rel (0) target = $region45
  $region44: #{decoder_layer_forward.15} parent=0 // pred_region
    _
  $region45: #{decoder_layer_forward.15} parent=0 // pred_fallthru
    _

</llo_original>
